<compile_context>
chip_gen: v5e
topology: v5e:2x2
jax: 0.10.0
libtpu: 0.0.40
codegen_flags: <defaults>
</compile_context>

<pallas_src>
from functools import partial

import jax
import jax.numpy as jnp
import numpy as np
from jax import lax
from jax.experimental import pallas as pl
from jax.experimental.pallas import tpu as pltpu


# ---------------------------------------------------------------------------
# Per-generation VMEM capacity (for tile sizing); conservative fallback = v7x.
# ---------------------------------------------------------------------------
_VMEM_CAP = None


def _vmem_capacity_bytes():
    global _VMEM_CAP
    if _VMEM_CAP is None:
        cap = 64 * 1024 * 1024  # v7x per-TensorCore VMEM (smallest generation)
        try:
            info = pltpu.get_tpu_info()
            for name in ("vmem_capacity_bytes", "vmem_size_bytes", "vmem_bytes"):
                val = getattr(info, name, None)
                if val:
                    cap = int(val)
                    break
        except Exception:
            pass
        _VMEM_CAP = cap
    return _VMEM_CAP


def _round_up(x, m):
    return ((x + m - 1) // m) * m


# ---------------------------------------------------------------------------
# Fused Bottleneck kernel (one grid step = one batch element x one row tile)
# ---------------------------------------------------------------------------
def _bottleneck_kernel(*refs, kh, kw, ph, pw, tile_h, width, n_h_tiles,
                       has_halo, accumulate_taps, matmul_precision):
    if has_halo:
        (xc_ref, xu_ref, xd_ref,
         w1_ref, b1_ref, w2_ref, b2_ref, w3_ref, b3_ref,
         o_ref, xp_ref, h2p_ref) = refs
    else:
        (xc_ref,
         w1_ref, b1_ref, w2_ref, b2_ref, w3_ref, b3_ref,
         o_ref, xp_ref, h2p_ref) = refs
        xu_ref = xd_ref = None

    t = pl.program_id(1)
    W = width
    he = tile_h + 2 * ph          # conv1/conv2 rows computed (tile + conv3 halo)
    halo = 2 * ph                 # input halo rows needed above/below the tile
    cin = xp_ref.shape[0]
    cmid = h2p_ref.shape[0]
    cout = o_ref.shape[1]
    sdt = xp_ref.dtype            # scratch dtype (f32)
    mdt = w1_ref.dtype            # MXU feed dtype (weights pre-cast in wrapper)
    neg = jnp.float32(0.2)

    # ---- 1. zero-padded input tile in VMEM:
    #      xp[c, u, v] == x[c, t*tile_h - 2*ph + u, v - pw], zero outside image.
    #      Only the pad columns + boundary halo rows get zero fills; every region
    #      the convolutions read is rewritten on every grid step.
    if pw > 0:
        zcol = jnp.zeros((cin, tile_h + 2 * halo, pw), sdt)
        xp_ref[:, :, 0:pw] = zcol
        xp_ref[:, :, pw + W:pw + W + pw] = zcol
    xp_ref[:, halo:halo + tile_h, pw:pw + W] = xc_ref[0].astype(sdt)
    if halo > 0:
        zrow = jnp.zeros((cin, halo, W), sdt)
        if has_halo:
            hr = xu_ref.shape[2]  # 8-row halo source blocks

            @pl.when(t > 0)                                  # rows above the tile
            def _():
                xp_ref[:, 0:halo, pw:pw + W] = (
                    xu_ref[0, :, hr - halo:hr, :].astype(sdt))

            @pl.when(t == 0)
            def _():
                xp_ref[:, 0:halo, pw:pw + W] = zrow

            @pl.when(t < n_h_tiles - 1)                      # rows below the tile
            def _():
                xp_ref[:, halo + tile_h:halo + tile_h + halo, pw:pw + W] = (
                    xd_ref[0, :, 0:halo, :].astype(sdt))

            @pl.when(t == n_h_tiles - 1)
            def _():
                xp_ref[:, halo + tile_h:halo + tile_h + halo, pw:pw + W] = zrow
        else:
            xp_ref[:, 0:halo, pw:pw + W] = zrow
            xp_ref[:, halo + tile_h:halo + tile_h + halo, pw:pw + W] = zrow

    # ---- shared k x k conv: one im2col matmul, or k*k accumulated matmuls
    def conv_kxk(src_ref, w_ref, b_ref, out_rows, src_ch):
        taps = []
        for ky in range(kh):
            for kx in range(kw):
                taps.append(src_ref[:, ky:ky + out_rows, kx:kx + W]
                            .reshape(src_ch, out_rows * W).astype(mdt))
        if accumulate_taps:
            # No materialized im2col buffer: k*k accumulated matmuls
            # (cheap on v7x's MRB; saves the biggest hidden VMEM consumer).
            acc = None
            for i in range(kh * kw):
                p = jnp.dot(w_ref[i], taps[i], precision=matmul_precision,
                            preferred_element_type=jnp.float32)
                acc = p if acc is None else acc + p
        else:
            # Single im2col matmul; patches built directly in the MXU dtype.
            patches = taps[0] if len(taps) == 1 else jnp.concatenate(taps, axis=0)
            acc = jnp.dot(w_ref[...], patches, precision=matmul_precision,
                          preferred_element_type=jnp.float32)
        return acc + b_ref[...]

    # ---- 2. conv1 (k x k) + LeakyReLU(0.2)
    h = conv_kxk(xp_ref, w1_ref, b1_ref, he, cin)
    h = jnp.where(h >= 0, h, neg * h)

    # ---- 3. conv2 (1 x 1) + LeakyReLU(0.2): epilogue matmul on the same tile
    h = jnp.dot(w2_ref[...], h.astype(mdt), precision=matmul_precision,
                preferred_element_type=jnp.float32) + b2_ref[...]
    h = jnp.where(h >= 0, h, neg * h)

    # ---- 4. conv3 zero-pads the *conv2 output*: assemble padded h2 in VMEM
    if pw > 0:
        zcol2 = jnp.zeros((cmid, he, pw), sdt)
        h2p_ref[:, :, 0:pw] = zcol2
        h2p_ref[:, :, pw + W:pw + W + pw] = zcol2
    h2p_ref[:, :, pw:pw + W] = h.reshape(cmid, he, W).astype(sdt)
    if ph > 0:
        zpad = jnp.zeros((cmid, ph, W + 2 * pw), sdt)
        if has_halo:
            @pl.when(t == 0)                      # image rows < 0 -> zero padding
            def _():
                h2p_ref[:, 0:ph, :] = zpad

            @pl.when(t == n_h_tiles - 1)          # image rows >= H -> zero padding
            def _():
                h2p_ref[:, he - ph:he, :] = zpad
        else:
            h2p_ref[:, 0:ph, :] = zpad
            h2p_ref[:, he - ph:he, :] = zpad

    # ---- 5. conv3 (k x k); lane-dense NCHW store
    out = conv_kxk(h2p_ref, w3_ref, b3_ref, tile_h, cmid)
    o_ref[...] = out.reshape(1, cout, tile_h * W).astype(o_ref.dtype)


# ---------------------------------------------------------------------------
# VMEM accounting (incl. the hidden im2col buffers) and tile picking
# ---------------------------------------------------------------------------
def _est_vmem_bytes(tile_h, H, W, cin, cmid, cout, k, ph, pw, msize, accumulate_taps):
    he = tile_h + 2 * ph
    f32 = 4
    b = 2 * cin * tile_h * W * f32                        # x tile (double-buffered)
    if H // tile_h > 1:
        b += 2 * 2 * cin * 8 * W * f32                    # up/down halo blocks
    b += 2 * cout * tile_h * W * f32                      # output block
    b += 2 * (k * k * cin * cmid + cmid * cmid + k * k * cmid * cout) * msize
    b += 2 * 3 * max(cmid, cout) * 128 * f32              # bias columns (lane-padded)
    b += cin * (tile_h + 4 * ph) * (W + 2 * pw) * f32     # xp scratch
    b += cmid * he * (W + 2 * pw) * f32                   # h2p scratch
    if not accumulate_taps:                               # materialized im2col
        b += k * k * cin * he * W * msize
        b += k * k * cmid * tile_h * W * msize
    b += 3 * cmid * he * W * f32                          # f32 h / temporaries
    b += cout * tile_h * W * f32                          # f32 result before cast
    return b


def _pick_tile_h(H, W, N, est_fn, budget, min_steps=4):
    # Valid tiles: multiple of 8 sublanes dividing H with (tile*W) % 128 == 0
    # (unmasked lane-dense stores), or the full height.
    cands = [t for t in range(8, H, 8) if H % t == 0 and (t * W) % 128 == 0]
    cands.append(H)
    cands = sorted(set(cands))
    fitting = [t for t in cands if est_fn(t) <= budget] or cands[:1]
    i = len(fitting) - 1                     # largest tile that fits the budget
    # Keep >= a few grid steps so v7x's 2 TensorCores / double-buffering get work.
    if i > 0 and N * (H // fitting[i]) < min_steps:
        i -= 1
    return fitting[i]


# ---------------------------------------------------------------------------
# Wrapper
# ---------------------------------------------------------------------------
@partial(jax.jit, static_argnames=("mxu_dtype", "accumulate_taps"))
def bottleneck_forward(x, params, mxu_dtype=jnp.float32, accumulate_taps=False):
    """Fused Bottleneck forward. x: (N, Cin, H, W) NCHW -> (N, Cout, H, W).

    mxu_dtype:       dtype fed to the MXU (jnp.bfloat16 recommended in
                     production; jnp.float32 for exact-reference testing).
    accumulate_taps: True  -> k*k accumulated matmuls, no materialized im2col
                              (preferred on v7x: 64 MiB VMEM, MRB accumulate).
                     False -> single im2col matmul per conv (v5e/v6e default).
    """
    N, Cin, H, W = x.shape
    w1, b1 = params["w1"], params["b1"]
    w2, b2 = params["w2"], params["b2"]
    w3, b3 = params["w3"], params["b3"]
    Cmid, Cout = w1.shape[0], w3.shape[0]
    k = int(w1.shape[-1])
    assert w1.shape[2] == k and w3.shape[2] == w3.shape[3] == k
    assert w2.shape[2] == 1 and w2.shape[3] == 1
    assert k % 2 == 1, "only odd kernel_size reproduces PyTorch same-padding"
    ph = pw = (k - 1) // 2
    assert 2 * ph <= 8, "halo must fit inside one 8-row sublane block"

    mdt = jnp.dtype(mxu_dtype)
    msize = mdt.itemsize
    sub = 8 if msize >= 4 else 16            # sublane packing of the MXU feed
    Cin_p, Cmid_p, Cout_p = (_round_up(c, sub) for c in (Cin, Cmid, Cout))

    # --- per-generation VMEM budget -> largest row tile that fits
    cap = _vmem_capacity_bytes()
    budget = int(0.5 * cap)                  # headroom for uncounted temporaries
    vmem_limit = max(32 * 1024 * 1024, min(int(0.9 * cap), 128 * 1024 * 1024))
    est = lambda th: _est_vmem_bytes(th, H, W, Cin_p, Cmid_p, Cout_p, k, ph, pw,
                                     msize, accumulate_taps)
    tile_h = _pick_tile_h(H, W, N, est, budget)
    n_h_tiles = H // tile_h
    has_halo = n_h_tiles > 1
    rb = tile_h // 8 if has_halo else 1      # 8-row halo blocks per row tile
    n_hblk = H // 8 if has_halo else 1

    # --- pad channels to sublane multiples (zero rows/cols: result is exact)
    if Cin_p != Cin:
        x = jnp.pad(x, ((0, 0), (0, Cin_p - Cin), (0, 0), (0, 0)))

    def pad_oihw(w, co_p, ci_p):
        return jnp.pad(w, ((0, co_p - w.shape[0]), (0, ci_p - w.shape[1]),
                           (0, 0), (0, 0)))

    w1p = pad_oihw(w1, Cmid_p, Cin_p)
    w2p = pad_oihw(w2, Cmid_p, Cmid_p)
    w3p = pad_oihw(w3, Cout_p, Cmid_p)
    if accumulate_taps:   # (k*k, Cout, Cin): one weight slab per tap
        w1m = jnp.transpose(w1p, (2, 3, 0, 1)).reshape(k * k, Cmid_p, Cin_p).astype(mdt)
        w3m = jnp.transpose(w3p, (2, 3, 0, 1)).reshape(k * k, Cout_p, Cmid_p).astype(mdt)
    else:                 # (Cout, k*k*Cin): tap-major contraction dim
        w1m = jnp.transpose(w1p, (0, 2, 3, 1)).reshape(Cmid_p, k * k * Cin_p).astype(mdt)
        w3m = jnp.transpose(w3p, (0, 2, 3, 1)).reshape(Cout_p, k * k * Cmid_p).astype(mdt)
    w2m = w2p.reshape(Cmid_p, Cmid_p).astype(mdt)
    b1c = jnp.pad(b1, (0, Cmid_p - Cmid)).reshape(Cmid_p, 1).astype(jnp.float32)
    b2c = jnp.pad(b2, (0, Cmid_p - Cmid)).reshape(Cmid_p, 1).astype(jnp.float32)
    b3c = jnp.pad(b3, (0, Cout_p - Cout)).reshape(Cout_p, 1).astype(jnp.float32)

    matmul_precision = (lax.Precision.HIGHEST if mdt == jnp.dtype(jnp.float32)
                        else lax.Precision.DEFAULT)
    kernel = partial(_bottleneck_kernel, kh=k, kw=k, ph=ph, pw=pw, tile_h=tile_h,
                     width=W, n_h_tiles=n_h_tiles, has_halo=has_halo,
                     accumulate_taps=accumulate_taps,
                     matmul_precision=matmul_precision)

    def const_spec(shape):
        zeros = (0,) * len(shape)
        return pl.BlockSpec(shape, lambda n, t: zeros)

    in_specs = [pl.BlockSpec((1, Cin_p, tile_h, W), lambda n, t: (n, 0, t, 0))]
    args = [x]
    if has_halo:   # 8-row blocks just above / below the tile (clamped at edges)
        in_specs += [
            pl.BlockSpec((1, Cin_p, 8, W),
                         lambda n, t: (n, 0, jnp.maximum(t * rb - 1, 0), 0)),
            pl.BlockSpec((1, Cin_p, 8, W),
                         lambda n, t: (n, 0, jnp.minimum(t * rb + rb, n_hblk - 1), 0)),
        ]
        args += [x, x]
    in_specs += [const_spec(w1m.shape), const_spec(b1c.shape),
                 const_spec(w2m.shape), const_spec(b2c.shape),
                 const_spec(w3m.shape), const_spec(b3c.shape)]
    args += [w1m, b1c, w2m, b2c, w3m, b3c]

    out_flat = pl.pallas_call(
        kernel,
        out_shape=jax.ShapeDtypeStruct((N, Cout_p, H * W), x.dtype),
        grid=(N, n_h_tiles),
        in_specs=in_specs,
        out_specs=pl.BlockSpec((1, Cout_p, tile_h * W), lambda n, t: (n, 0, t)),
        scratch_shapes=[
            pltpu.VMEM((Cin_p, tile_h + 4 * ph, W + 2 * pw), jnp.float32),
            pltpu.VMEM((Cmid_p, tile_h + 2 * ph, W + 2 * pw), jnp.float32),
        ],
        compiler_params=pltpu.CompilerParams(
            dimension_semantics=("parallel", "parallel"),
            vmem_limit_bytes=vmem_limit),
    )(*args)

    out = out_flat.reshape(N, Cout_p, H, W)
    return out[:, :Cout] if Cout_p != Cout else out


# ---------------------------------------------------------------------------
# Parameter init (mirrors the PyTorch module's __init__) + random params
# ---------------------------------------------------------------------------
def _xavier_normal(key, cout, cin, kh, kw, scale):
    fan_in, fan_out = cin * kh * kw, cout * kh * kw
    std = float(np.sqrt(2.0 / (fan_in + fan_out)))
    return scale * std * jax.random.normal(key, (cout, cin, kh, kw), jnp.float32)


def make_bottleneck_params(key, in_channels, out_channels, kernel_size):
    k1, k2, _ = jax.random.split(key, 3)
    # conv1/conv2: xavier_normal * 0.1, zero bias; conv3: kaiming * 0 -> zeros.
    w1 = _xavier_normal(k1, out_channels, in_channels, kernel_size, kernel_size, 0.1)
    w2 = _xavier_normal(k2, out_channels, out_channels, 1, 1, 0.1)
    w3 = jnp.zeros((out_channels, out_channels, kernel_size, kernel_size), jnp.float32)
    z = jnp.zeros((out_channels,), jnp.float32)
    return dict(w1=w1, b1=z, w2=w2, b2=z, w3=w3, b3=z)


def make_random_params(key, in_channels, out_channels, kernel_size, scale=0.3):
    ks = jax.random.split(key, 6)
    w1 = scale * jax.random.normal(ks[0], (out_channels, in_channels,
                                           kernel_size, kernel_size), jnp.float32)
    b1 = 0.1 * jax.random.normal(ks[1], (out_channels,), jnp.float32)
    w2 = scale * jax.random.normal(ks[2], (out_channels, out_channels, 1, 1), jnp.float32)
    b2 = 0.1 * jax.random.normal(ks[3], (out_channels,), jnp.float32)
    w3 = scale * jax.random.normal(ks[4], (out_channels, out_channels,
                                           kernel_size, kernel_size), jnp.float32)
    b3 = 0.1 * jax.random.normal(ks[5], (out_channels,), jnp.float32)
    return dict(w1=w1, b1=b1, w2=w2, b2=b2, w3=w3, b3=b3)


# ---------------------------------------------------------------------------
# Plain-lax reference (for correctness checks)
# ---------------------------------------------------------------------------
def bottleneck_reference(x_nchw, params):
    def conv(x, w, b, pad):
        y = lax.conv_general_dilated(
            x, w, window_strides=(1, 1), padding=[(pad, pad), (pad, pad)],
            dimension_numbers=("NCHW", "OIHW", "NCHW"),
            precision=lax.Precision.HIGHEST)
        return y + b[None, :, None, None]

    k = params["w1"].shape[-1]
    p = (k - 1) // 2
    h = conv(x_nchw, params["w1"], params["b1"], p)
    h = jnp.where(h >= 0, h, 0.2 * h)
    h = conv(h, params["w2"], params["b2"], 0)
    h = jnp.where(h >= 0, h, 0.2 * h)
    return conv(h, params["w3"], params["b3"], p)


if __name__ == "__main__":
    key = jax.random.PRNGKey(0)
    kx, kp, kr, kx2, kr2, kx3, kr3 = jax.random.split(key, 7)

    # Bottleneck(in_channels=4, out_channels=8, kernel_size=3); x: (2, 4, 16, 16)
    N, Cin, H, W, Cout, K = 2, 4, 16, 16, 8, 3
    x = jax.random.normal(kx, (N, Cin, H, W), jnp.float32)

    # (a) exact PyTorch init (conv3 is zero-initialized -> output exactly zero)
    params = make_bottleneck_params(kp, Cin, Cout, K)
    out = jax.block_until_ready(bottleneck_forward(x, params))
    assert out.shape == (N, Cout, H, W)
    np.testing.assert_allclose(np.asarray(out),
                               np.asarray(bottleneck_reference(x, params)),
                               atol=5e-4, rtol=5e-4)

    # (b) non-zero conv3 weights so the whole path is exercised; multi-row-tile
    params_nz = make_random_params(kr, Cin, Cout, K)
    out_nz = jax.block_until_ready(bottleneck_forward(x, params_nz))
    np.testing.assert_allclose(np.asarray(out_nz),
                               np.asarray(bottleneck_reference(x, params_nz)),
                               atol=5e-4, rtol=5e-4)

    # (c) odd channel counts (padded to sublane multiples) + an interior row tile
    x2 = jax.random.normal(kx2, (1, 3, 24, 16), jnp.float32)
    params2 = make_random_params(kr2, 3, 5, K)
    out2 = jax.block_until_ready(bottleneck_forward(x2, params2))
    np.testing.assert_allclose(np.asarray(out2),
                               np.asarray(bottleneck_reference(x2, params2)),
                               atol=5e-4, rtol=5e-4)

    # (d) single-row-tile geometry (halo inputs dropped) + accumulated-tap path
    x3 = jax.random.normal(kx3, (2, 4, 8, 16), jnp.float32)
    params3 = make_random_params(kr3, 4, 8, K)
    out3 = jax.block_until_ready(bottleneck_forward(x3, params3,
                                                    accumulate_taps=True))
    np.testing.assert_allclose(np.asarray(out3),
                               np.asarray(bottleneck_reference(x3, params3)),
                               atol=5e-4, rtol=5e-4)

    # (e) production bf16 MXU path (f32 accumulate): loose tolerance vs f32 ref
    out_bf = jax.block_until_ready(bottleneck_forward(x, params_nz,
                                                      mxu_dtype=jnp.bfloat16))
    np.testing.assert_allclose(np.asarray(out_bf),
                               np.asarray(bottleneck_reference(x, params_nz)),
                               atol=0.3, rtol=0.1)

    print("KERNEL_OK")
</pallas_src>

<mosaic_0001>
module attributes {stable_mosaic.version = 11 : i64} {
  func.func @_bottleneck_kernel(%arg0: i32, %arg1: i32, %arg2: memref<1x8x8x16xf32, #tpu.memory_space<vmem>>, %arg3: memref<1x8x8x16xf32, #tpu.memory_space<vmem>>, %arg4: memref<1x8x8x16xf32, #tpu.memory_space<vmem>>, %arg5: memref<8x72xf32, #tpu.memory_space<vmem>>, %arg6: memref<8x1xf32, #tpu.memory_space<vmem>>, %arg7: memref<8x8xf32, #tpu.memory_space<vmem>>, %arg8: memref<8x1xf32, #tpu.memory_space<vmem>>, %arg9: memref<8x72xf32, #tpu.memory_space<vmem>>, %arg10: memref<8x1xf32, #tpu.memory_space<vmem>>, %arg11: memref<1x8x128xf32, #tpu.memory_space<vmem>>, %arg12: memref<8x12x18xf32, #tpu.memory_space<vmem>>, %arg13: memref<8x10x18xf32, #tpu.memory_space<vmem>>) attributes {dimension_semantics = [#tpu.dimension_semantics<parallel>, #tpu.dimension_semantics<parallel>], iteration_bounds = array<i64: 2, 2>, scalar_prefetch = 0 : i64, scratch_operands = 2 : i64, tpu.core_type = #tpu.core_type<tc>, window_params = [{transform_indices = @transform_0, window_bounds = array<i64: 1, 8, 8, 16>}, {transform_indices = @transform_1, window_bounds = array<i64: 1, 8, 8, 16>}, {transform_indices = @transform_2, window_bounds = array<i64: 1, 8, 8, 16>}, {pipeline_mode = #tpu.pipeline_mode<synchronous>, transform_indices = @transform_3, window_bounds = array<i64: 8, 72>}, {pipeline_mode = #tpu.pipeline_mode<synchronous>, transform_indices = @transform_4, window_bounds = array<i64: 8, 1>}, {pipeline_mode = #tpu.pipeline_mode<synchronous>, transform_indices = @transform_5, window_bounds = array<i64: 8, 8>}, {pipeline_mode = #tpu.pipeline_mode<synchronous>, transform_indices = @transform_6, window_bounds = array<i64: 8, 1>}, {pipeline_mode = #tpu.pipeline_mode<synchronous>, transform_indices = @transform_7, window_bounds = array<i64: 8, 72>}, {pipeline_mode = #tpu.pipeline_mode<synchronous>, transform_indices = @transform_8, window_bounds = array<i64: 8, 1>}, {transform_indices = @transform_9, window_bounds = array<i64: 1, 8, 128>}]} {
    %cst = arith.constant 0.000000e+00 : f32
    %0 = vector.broadcast %cst : f32 to vector<8x12x1xf32>
    %c0 = arith.constant 0 : index
    %c0_0 = arith.constant 0 : index
    %c0_1 = arith.constant 0 : index
    %1 = vector.load %arg12[%c0, %c0_0, %c0_1] : memref<8x12x18xf32, #tpu.memory_space<vmem>>, vector<8x12x1xf32>
    tpu.vector_store %arg12[%c0, %c0_0, %c0_1], %0 {strides = array<i32>} : memref<8x12x18xf32, #tpu.memory_space<vmem>>, vector<8x12x1xf32>,
    %c0_2 = arith.constant 0 : index
    %c0_3 = arith.constant 0 : index
    %c17 = arith.constant 17 : index
    %2 = vector.load %arg12[%c0_2, %c0_3, %c17] : memref<8x12x18xf32, #tpu.memory_space<vmem>>, vector<8x12x1xf32>
    tpu.vector_store %arg12[%c0_2, %c0_3, %c17], %0 {strides = array<i32>} : memref<8x12x18xf32, #tpu.memory_space<vmem>>, vector<8x12x1xf32>,
    %c0_4 = arith.constant 0 : index
    %c0_5 = arith.constant 0 : index
    %c0_6 = arith.constant 0 : index
    %c0_7 = arith.constant 0 : index
    %3 = vector.load %arg2[%c0_4, %c0_5, %c0_6, %c0_7] : memref<1x8x8x16xf32, #tpu.memory_space<vmem>>, vector<1x8x8x16xf32>
    %4 = vector.shape_cast %3 : vector<1x8x8x16xf32> to vector<8x8x16xf32>
    %c0_8 = arith.constant 0 : index
    %c2 = arith.constant 2 : index
    %c1 = arith.constant 1 : index
    %5 = vector.load %arg12[%c0_8, %c2, %c1] : memref<8x12x18xf32, #tpu.memory_space<vmem>>, vector<8x8x16xf32>
    tpu.vector_store %arg12[%c0_8, %c2, %c1], %4 {strides = array<i32>} : memref<8x12x18xf32, #tpu.memory_space<vmem>>, vector<8x8x16xf32>,
    %cst_9 = arith.constant 0.000000e+00 : f32
    %6 = vector.broadcast %cst_9 : f32 to vector<8x2x16xf32>
    %c0_i32 = arith.constant 0 : i32
    %7 = arith.cmpi sgt, %arg1, %c0_i32 : i32
    %8 = arith.extui %7 : i1 to i32
    %c0_i32_10 = arith.constant 0 : i32
    %9 = arith.cmpi ne, %8, %c0_i32_10 : i32
    scf.if %9 {
      %c0_107 = arith.constant 0 : index
      %c0_108 = arith.constant 0 : index
      %c6 = arith.constant 6 : index
      %c0_109 = arith.constant 0 : index
      %96 = vector.load %arg3[%c0_107, %c0_108, %c6, %c0_109] : memref<1x8x8x16xf32, #tpu.memory_space<vmem>>, vector<1x8x2x16xf32>
      %97 = vector.shape_cast %96 : vector<1x8x2x16xf32> to vector<8x2x16xf32>
      %c0_110 = arith.constant 0 : index
      %c0_111 = arith.constant 0 : index
      %c1_112 = arith.constant 1 : index
      %98 = vector.load %arg12[%c0_110, %c0_111, %c1_112] : memref<8x12x18xf32, #tpu.memory_space<vmem>>, vector<8x2x16xf32>
      tpu.vector_store %arg12[%c0_110, %c0_111, %c1_112], %97 {strides = array<i32>} : memref<8x12x18xf32, #tpu.memory_space<vmem>>, vector<8x2x16xf32>,
    } else {
    }
    %c0_i32_11 = arith.constant 0 : i32
    %10 = arith.cmpi eq, %arg1, %c0_i32_11 : i32
    %11 = arith.extui %10 : i1 to i32
    %c0_i32_12 = arith.constant 0 : i32
    %12 = arith.cmpi ne, %11, %c0_i32_12 : i32
    scf.if %12 {
      %c0_107 = arith.constant 0 : index
      %c0_108 = arith.constant 0 : index
      %c1_109 = arith.constant 1 : index
      %96 = vector.load %arg12[%c0_107, %c0_108, %c1_109] : memref<8x12x18xf32, #tpu.memory_space<vmem>>, vector<8x2x16xf32>
      tpu.vector_store %arg12[%c0_107, %c0_108, %c1_109], %6 {strides = array<i32>} : memref<8x12x18xf32, #tpu.memory_space<vmem>>, vector<8x2x16xf32>,
    } else {
    }
    %c1_i32 = arith.constant 1 : i32
    %13 = arith.cmpi slt, %arg1, %c1_i32 : i32
    %14 = arith.extui %13 : i1 to i32
    %c0_i32_13 = arith.constant 0 : i32
    %15 = arith.cmpi ne, %14, %c0_i32_13 : i32
    scf.if %15 {
      %c0_107 = arith.constant 0 : index
      %c0_108 = arith.constant 0 : index
      %c0_109 = arith.constant 0 : index
      %c0_110 = arith.constant 0 : index
      %96 = vector.load %arg4[%c0_107, %c0_108, %c0_109, %c0_110] : memref<1x8x8x16xf32, #tpu.memory_space<vmem>>, vector<1x8x2x16xf32>
      %97 = vector.shape_cast %96 : vector<1x8x2x16xf32> to vector<8x2x16xf32>
      %c0_111 = arith.constant 0 : index
      %c10 = arith.constant 10 : index
      %c1_112 = arith.constant 1 : index
      %98 = vector.load %arg12[%c0_111, %c10, %c1_112] : memref<8x12x18xf32, #tpu.memory_space<vmem>>, vector<8x2x16xf32>
      tpu.vector_store %arg12[%c0_111, %c10, %c1_112], %97 {strides = array<i32>} : memref<8x12x18xf32, #tpu.memory_space<vmem>>, vector<8x2x16xf32>,
    } else {
    }
    %c1_i32_14 = arith.constant 1 : i32
    %16 = arith.cmpi eq, %arg1, %c1_i32_14 : i32
    %17 = arith.extui %16 : i1 to i32
    %c0_i32_15 = arith.constant 0 : i32
    %18 = arith.cmpi ne, %17, %c0_i32_15 : i32
    scf.if %18 {
      %c0_107 = arith.constant 0 : index
      %c10 = arith.constant 10 : index
      %c1_108 = arith.constant 1 : index
      %96 = vector.load %arg12[%c0_107, %c10, %c1_108] : memref<8x12x18xf32, #tpu.memory_space<vmem>>, vector<8x2x16xf32>
      tpu.vector_store %arg12[%c0_107, %c10, %c1_108], %6 {strides = array<i32>} : memref<8x12x18xf32, #tpu.memory_space<vmem>>, vector<8x2x16xf32>,
    } else {
    }
    %c0_16 = arith.constant 0 : index
    %c0_17 = arith.constant 0 : index
    %c0_18 = arith.constant 0 : index
    %19 = vector.load %arg12[%c0_16, %c0_17, %c0_18] : memref<8x12x18xf32, #tpu.memory_space<vmem>>, vector<8x10x16xf32>
    %20 = vector.shape_cast %19 : vector<8x10x16xf32> to vector<8x160xf32>
    %c0_19 = arith.constant 0 : index
    %c0_20 = arith.constant 0 : index
    %c1_21 = arith.constant 1 : index
    %21 = vector.load %arg12[%c0_19, %c0_20, %c1_21] : memref<8x12x18xf32, #tpu.memory_space<vmem>>, vector<8x10x16xf32>
    %22 = vector.shape_cast %21 : vector<8x10x16xf32> to vector<8x160xf32>
    %c0_22 = arith.constant 0 : index
    %c0_23 = arith.constant 0 : index
    %c2_24 = arith.constant 2 : index
    %23 = vector.load %arg12[%c0_22, %c0_23, %c2_24] : memref<8x12x18xf32, #tpu.memory_space<vmem>>, vector<8x10x16xf32>
    %24 = vector.shape_cast %23 : vector<8x10x16xf32> to vector<8x160xf32>
    %c0_25 = arith.constant 0 : index
    %c1_26 = arith.constant 1 : index
    %c0_27 = arith.constant 0 : index
    %25 = vector.load %arg12[%c0_25, %c1_26, %c0_27] : memref<8x12x18xf32, #tpu.memory_space<vmem>>, vector<8x10x16xf32>
    %26 = vector.shape_cast %25 : vector<8x10x16xf32> to vector<8x160xf32>
    %c0_28 = arith.constant 0 : index
    %c1_29 = arith.constant 1 : index
    %c1_30 = arith.constant 1 : index
    %27 = vector.load %arg12[%c0_28, %c1_29, %c1_30] : memref<8x12x18xf32, #tpu.memory_space<vmem>>, vector<8x10x16xf32>
    %28 = vector.shape_cast %27 : vector<8x10x16xf32> to vector<8x160xf32>
    %c0_31 = arith.constant 0 : index
    %c1_32 = arith.constant 1 : index
    %c2_33 = arith.constant 2 : index
    %29 = vector.load %arg12[%c0_31, %c1_32, %c2_33] : memref<8x12x18xf32, #tpu.memory_space<vmem>>, vector<8x10x16xf32>
    %30 = vector.shape_cast %29 : vector<8x10x16xf32> to vector<8x160xf32>
    %c0_34 = arith.constant 0 : index
    %c2_35 = arith.constant 2 : index
    %c0_36 = arith.constant 0 : index
    %31 = vector.load %arg12[%c0_34, %c2_35, %c0_36] : memref<8x12x18xf32, #tpu.memory_space<vmem>>, vector<8x10x16xf32>
    %32 = vector.shape_cast %31 : vector<8x10x16xf32> to vector<8x160xf32>
    %c0_37 = arith.constant 0 : index
    %c2_38 = arith.constant 2 : index
    %c1_39 = arith.constant 1 : index
    %33 = vector.load %arg12[%c0_37, %c2_38, %c1_39] : memref<8x12x18xf32, #tpu.memory_space<vmem>>, vector<8x10x16xf32>
    %34 = vector.shape_cast %33 : vector<8x10x16xf32> to vector<8x160xf32>
    %c0_40 = arith.constant 0 : index
    %c2_41 = arith.constant 2 : index
    %c2_42 = arith.constant 2 : index
    %35 = vector.load %arg12[%c0_40, %c2_41, %c2_42] : memref<8x12x18xf32, #tpu.memory_space<vmem>>, vector<8x10x16xf32>
    %36 = vector.shape_cast %35 : vector<8x10x16xf32> to vector<8x160xf32>
    %37 = tpu.concatenate %20, %22, %24, %26, %28, %30, %32, %34, %36 in 0 : vector<8x160xf32>, vector<8x160xf32>, vector<8x160xf32>, vector<8x160xf32>, vector<8x160xf32>, vector<8x160xf32>, vector<8x160xf32>, vector<8x160xf32>, vector<8x160xf32> -> vector<72x160xf32>
    %c0_43 = arith.constant 0 : index
    %c0_44 = arith.constant 0 : index
    %38 = vector.load %arg5[%c0_43, %c0_44] : memref<8x72xf32, #tpu.memory_space<vmem>>, vector<8x72xf32>
    %cst_45 = arith.constant dense<0.000000e+00> : vector<8x160xf32>
    %39 = tpu.matmul %38, %37, %cst_45 {dimension_numbers = #tpu.dot_dimension_numbers<[1], [0], [0], [1], [0, 0, 1, 1], [], []>, precision = #tpu.contract_precision<fp32>} : vector<8x72xf32>, vector<72x160xf32>, vector<8x160xf32> -> vector<8x160xf32>
    %c0_46 = arith.constant 0 : index
    %c0_47 = arith.constant 0 : index
    %40 = vector.load %arg6[%c0_46, %c0_47] : memref<8x1xf32, #tpu.memory_space<vmem>>, vector<8x1xf32>
    %41 = vector.broadcast %40 : vector<8x1xf32> to vector<8x160xf32>
    %42 = arith.addf %39, %41 : vector<8x160xf32>
    %cst_48 = arith.constant 0.000000e+00 : f32
    %43 = vector.broadcast %cst_48 : f32 to vector<8x160xf32>
    %44 = arith.cmpf oge, %42, %43 : vector<8x160xf32>
    %cst_49 = arith.constant 2.000000e-01 : f32
    %45 = vector.broadcast %cst_49 : f32 to vector<8x160xf32>
    %46 = arith.mulf %45, %42 : vector<8x160xf32>
    %47 = arith.select %44, %42, %46 : vector<8x160xi1>, vector<8x160xf32>
    %c0_50 = arith.constant 0 : index
    %c0_51 = arith.constant 0 : index
    %48 = vector.load %arg7[%c0_50, %c0_51] : memref<8x8xf32, #tpu.memory_space<vmem>>, vector<8x8xf32>
    %cst_52 = arith.constant dense<0.000000e+00> : vector<8x160xf32>
    %49 = tpu.matmul %48, %47, %cst_52 {dimension_numbers = #tpu.dot_dimension_numbers<[1], [0], [0], [1], [0, 0, 1, 1], [], []>, precision = #tpu.contract_precision<fp32>} : vector<8x8xf32>, vector<8x160xf32>, vector<8x160xf32> -> vector<8x160xf32>
    %c0_53 = arith.constant 0 : index
    %c0_54 = arith.constant 0 : index
    %50 = vector.load %arg8[%c0_53, %c0_54] : memref<8x1xf32, #tpu.memory_space<vmem>>, vector<8x1xf32>
    %51 = vector.broadcast %50 : vector<8x1xf32> to vector<8x160xf32>
    %52 = arith.addf %49, %51 : vector<8x160xf32>
    %cst_55 = arith.constant 0.000000e+00 : f32
    %53 = vector.broadcast %cst_55 : f32 to vector<8x160xf32>
    %54 = arith.cmpf oge, %52, %53 : vector<8x160xf32>
    %cst_56 = arith.constant 2.000000e-01 : f32
    %55 = vector.broadcast %cst_56 : f32 to vector<8x160xf32>
    %56 = arith.mulf %55, %52 : vector<8x160xf32>
    %57 = arith.select %54, %52, %56 : vector<8x160xi1>, vector<8x160xf32>
    %cst_57 = arith.constant 0.000000e+00 : f32
    %58 = vector.broadcast %cst_57 : f32 to vector<8x10x1xf32>
    %c0_58 = arith.constant 0 : index
    %c0_59 = arith.constant 0 : index
    %c0_60 = arith.constant 0 : index
    %59 = vector.load %arg13[%c0_58, %c0_59, %c0_60] : memref<8x10x18xf32, #tpu.memory_space<vmem>>, vector<8x10x1xf32>
    tpu.vector_store %arg13[%c0_58, %c0_59, %c0_60], %58 {strides = array<i32>} : memref<8x10x18xf32, #tpu.memory_space<vmem>>, vector<8x10x1xf32>,
    %c0_61 = arith.constant 0 : index
    %c0_62 = arith.constant 0 : index
    %c17_63 = arith.constant 17 : index
    %60 = vector.load %arg13[%c0_61, %c0_62, %c17_63] : memref<8x10x18xf32, #tpu.memory_space<vmem>>, vector<8x10x1xf32>
    tpu.vector_store %arg13[%c0_61, %c0_62, %c17_63], %58 {strides = array<i32>} : memref<8x10x18xf32, #tpu.memory_space<vmem>>, vector<8x10x1xf32>,
    %61 = vector.shape_cast %57 : vector<8x160xf32> to vector<8x10x16xf32>
    %c0_64 = arith.constant 0 : index
    %c0_65 = arith.constant 0 : index
    %c1_66 = arith.constant 1 : index
    %62 = vector.load %arg13[%c0_64, %c0_65, %c1_66] : memref<8x10x18xf32, #tpu.memory_space<vmem>>, vector<8x10x16xf32>
    tpu.vector_store %arg13[%c0_64, %c0_65, %c1_66], %61 {strides = array<i32>} : memref<8x10x18xf32, #tpu.memory_space<vmem>>, vector<8x10x16xf32>,
    %cst_67 = arith.constant 0.000000e+00 : f32
    %63 = vector.broadcast %cst_67 : f32 to vector<8x1x18xf32>
    %c0_i32_68 = arith.constant 0 : i32
    %64 = arith.cmpi eq, %arg1, %c0_i32_68 : i32
    %65 = arith.extui %64 : i1 to i32
    %c0_i32_69 = arith.constant 0 : i32
    %66 = arith.cmpi ne, %65, %c0_i32_69 : i32
    scf.if %66 {
      %c0_107 = arith.constant 0 : index
      %c0_108 = arith.constant 0 : index
      %c0_109 = arith.constant 0 : index
      %96 = vector.load %arg13[%c0_107, %c0_108, %c0_109] : memref<8x10x18xf32, #tpu.memory_space<vmem>>, vector<8x1x18xf32>
      tpu.vector_store %arg13[%c0_107, %c0_108, %c0_109], %63 {strides = array<i32>} : memref<8x10x18xf32, #tpu.memory_space<vmem>>, vector<8x1x18xf32>,
    } else {
    }
    %c1_i32_70 = arith.constant 1 : i32
    %67 = arith.cmpi eq, %arg1, %c1_i32_70 : i32
    %68 = arith.extui %67 : i1 to i32
    %c0_i32_71 = arith.constant 0 : i32
    %69 = arith.cmpi ne, %68, %c0_i32_71 : i32
    scf.if %69 {
      %c0_107 = arith.constant 0 : index
      %c9 = arith.constant 9 : index
      %c0_108 = arith.constant 0 : index
      %96 = vector.load %arg13[%c0_107, %c9, %c0_108] : memref<8x10x18xf32, #tpu.memory_space<vmem>>, vector<8x1x18xf32>
      tpu.vector_store %arg13[%c0_107, %c9, %c0_108], %63 {strides = array<i32>} : memref<8x10x18xf32, #tpu.memory_space<vmem>>, vector<8x1x18xf32>,
    } else {
    }
    %c0_72 = arith.constant 0 : index
    %c0_73 = arith.constant 0 : index
    %c0_74 = arith.constant 0 : index
    %70 = vector.load %arg13[%c0_72, %c0_73, %c0_74] : memref<8x10x18xf32, #tpu.memory_space<vmem>>, vector<8x8x16xf32>
    %71 = vector.shape_cast %70 : vector<8x8x16xf32> to vector<8x128xf32>
    %c0_75 = arith.constant 0 : index
    %c0_76 = arith.constant 0 : index
    %c1_77 = arith.constant 1 : index
    %72 = vector.load %arg13[%c0_75, %c0_76, %c1_77] : memref<8x10x18xf32, #tpu.memory_space<vmem>>, vector<8x8x16xf32>
    %73 = vector.shape_cast %72 : vector<8x8x16xf32> to vector<8x128xf32>
    %c0_78 = arith.constant 0 : index
    %c0_79 = arith.constant 0 : index
    %c2_80 = arith.constant 2 : index
    %74 = vector.load %arg13[%c0_78, %c0_79, %c2_80] : memref<8x10x18xf32, #tpu.memory_space<vmem>>, vector<8x8x16xf32>
    %75 = vector.shape_cast %74 : vector<8x8x16xf32> to vector<8x128xf32>
    %c0_81 = arith.constant 0 : index
    %c1_82 = arith.constant 1 : index
    %c0_83 = arith.constant 0 : index
    %76 = vector.load %arg13[%c0_81, %c1_82, %c0_83] : memref<8x10x18xf32, #tpu.memory_space<vmem>>, vector<8x8x16xf32>
    %77 = vector.shape_cast %76 : vector<8x8x16xf32> to vector<8x128xf32>
    %c0_84 = arith.constant 0 : index
    %c1_85 = arith.constant 1 : index
    %c1_86 = arith.constant 1 : index
    %78 = vector.load %arg13[%c0_84, %c1_85, %c1_86] : memref<8x10x18xf32, #tpu.memory_space<vmem>>, vector<8x8x16xf32>
    %79 = vector.shape_cast %78 : vector<8x8x16xf32> to vector<8x128xf32>
    %c0_87 = arith.constant 0 : index
    %c1_88 = arith.constant 1 : index
    %c2_89 = arith.constant 2 : index
    %80 = vector.load %arg13[%c0_87, %c1_88, %c2_89] : memref<8x10x18xf32, #tpu.memory_space<vmem>>, vector<8x8x16xf32>
    %81 = vector.shape_cast %80 : vector<8x8x16xf32> to vector<8x128xf32>
    %c0_90 = arith.constant 0 : index
    %c2_91 = arith.constant 2 : index
    %c0_92 = arith.constant 0 : index
    %82 = vector.load %arg13[%c0_90, %c2_91, %c0_92] : memref<8x10x18xf32, #tpu.memory_space<vmem>>, vector<8x8x16xf32>
    %83 = vector.shape_cast %82 : vector<8x8x16xf32> to vector<8x128xf32>
    %c0_93 = arith.constant 0 : index
    %c2_94 = arith.constant 2 : index
    %c1_95 = arith.constant 1 : index
    %84 = vector.load %arg13[%c0_93, %c2_94, %c1_95] : memref<8x10x18xf32, #tpu.memory_space<vmem>>, vector<8x8x16xf32>
    %85 = vector.shape_cast %84 : vector<8x8x16xf32> to vector<8x128xf32>
    %c0_96 = arith.constant 0 : index
    %c2_97 = arith.constant 2 : index
    %c2_98 = arith.constant 2 : index
    %86 = vector.load %arg13[%c0_96, %c2_97, %c2_98] : memref<8x10x18xf32, #tpu.memory_space<vmem>>, vector<8x8x16xf32>
    %87 = vector.shape_cast %86 : vector<8x8x16xf32> to vector<8x128xf32>
    %88 = tpu.concatenate %71, %73, %75, %77, %79, %81, %83, %85, %87 in 0 : vector<8x128xf32>, vector<8x128xf32>, vector<8x128xf32>, vector<8x128xf32>, vector<8x128xf32>, vector<8x128xf32>, vector<8x128xf32>, vector<8x128xf32>, vector<8x128xf32> -> vector<72x128xf32>
    %c0_99 = arith.constant 0 : index
    %c0_100 = arith.constant 0 : index
    %89 = vector.load %arg9[%c0_99, %c0_100] : memref<8x72xf32, #tpu.memory_space<vmem>>, vector<8x72xf32>
    %cst_101 = arith.constant dense<0.000000e+00> : vector<8x128xf32>
    %90 = tpu.matmul %89, %88, %cst_101 {dimension_numbers = #tpu.dot_dimension_numbers<[1], [0], [0], [1], [0, 0, 1, 1], [], []>, precision = #tpu.contract_precision<fp32>} : vector<8x72xf32>, vector<72x128xf32>, vector<8x128xf32> -> vector<8x128xf32>
    %c0_102 = arith.constant 0 : index
    %c0_103 = arith.constant 0 : index
    %91 = vector.load %arg10[%c0_102, %c0_103] : memref<8x1xf32, #tpu.memory_space<vmem>>, vector<8x1xf32>
    %92 = vector.broadcast %91 : vector<8x1xf32> to vector<8x128xf32>
    %93 = arith.addf %90, %92 : vector<8x128xf32>
    %94 = vector.shape_cast %93 : vector<8x128xf32> to vector<1x8x128xf32>
    %c0_104 = arith.constant 0 : index
    %c0_105 = arith.constant 0 : index
    %c0_106 = arith.constant 0 : index
    %95 = vector.load %arg11[%c0_104, %c0_105, %c0_106] : memref<1x8x128xf32, #tpu.memory_space<vmem>>, vector<1x8x128xf32>
    tpu.vector_store %arg11[%c0_104, %c0_105, %c0_106], %94 {strides = array<i32>} : memref<1x8x128xf32, #tpu.memory_space<vmem>>, vector<1x8x128xf32>,
    return
  }
  func.func @transform_0(%arg0: i32, %arg1: i32) -> (i32, i32, i32, i32) {
    %c0_i32 = arith.constant 0 : i32
    %c0_i32_0 = arith.constant 0 : i32
    %c0_i32_1 = arith.constant 0 : i32
    return %arg0, %c0_i32, %arg1, %c0_i32_0 : i32, i32, i32, i32
  }
  func.func @transform_1(%arg0: i32, %arg1: i32) -> (i32, i32, i32, i32) {
    %c1_i32 = arith.constant 1 : i32
    %0 = arith.muli %arg1, %c1_i32 : i32
    %c1_i32_0 = arith.constant 1 : i32
    %1 = arith.subi %0, %c1_i32_0 : i32
    %c0_i32 = arith.constant 0 : i32
    %2 = arith.maxsi %1, %c0_i32 : i32
    %c0_i32_1 = arith.constant 0 : i32
    %c0_i32_2 = arith.constant 0 : i32
    %c0_i32_3 = arith.constant 0 : i32
    return %arg0, %c0_i32_1, %2, %c0_i32_2 : i32, i32, i32, i32
  }
  func.func @transform_2(%arg0: i32, %arg1: i32) -> (i32, i32, i32, i32) {
    %c1_i32 = arith.constant 1 : i32
    %0 = arith.muli %arg1, %c1_i32 : i32
    %c1_i32_0 = arith.constant 1 : i32
    %1 = arith.addi %0, %c1_i32_0 : i32
    %c1_i32_1 = arith.constant 1 : i32
    %2 = arith.minsi %1, %c1_i32_1 : i32
    %c0_i32 = arith.constant 0 : i32
    %c0_i32_2 = arith.constant 0 : i32
    %c0_i32_3 = arith.constant 0 : i32
    return %arg0, %c0_i32, %2, %c0_i32_2 : i32, i32, i32, i32
  }
  func.func @transform_3(%arg0: i32, %arg1: i32) -> (i32, i32) {
    %c0_i32 = arith.constant 0 : i32
    %c0_i32_0 = arith.constant 0 : i32
    %c0_i32_1 = arith.constant 0 : i32
    return %c0_i32, %c0_i32_0 : i32, i32
  }
  func.func @transform_4(%arg0: i32, %arg1: i32) -> (i32, i32) {
    %c0_i32 = arith.constant 0 : i32
    %c0_i32_0 = arith.constant 0 : i32
    %c0_i32_1 = arith.constant 0 : i32
    return %c0_i32, %c0_i32_0 : i32, i32
  }
  func.func @transform_5(%arg0: i32, %arg1: i32) -> (i32, i32) {
    %c0_i32 = arith.constant 0 : i32
    %c0_i32_0 = arith.constant 0 : i32
    %c0_i32_1 = arith.constant 0 : i32
    return %c0_i32, %c0_i32_0 : i32, i32
  }
  func.func @transform_6(%arg0: i32, %arg1: i32) -> (i32, i32) {
    %c0_i32 = arith.constant 0 : i32
    %c0_i32_0 = arith.constant 0 : i32
    %c0_i32_1 = arith.constant 0 : i32
    return %c0_i32, %c0_i32_0 : i32, i32
  }
  func.func @transform_7(%arg0: i32, %arg1: i32) -> (i32, i32) {
    %c0_i32 = arith.constant 0 : i32
    %c0_i32_0 = arith.constant 0 : i32
    %c0_i32_1 = arith.constant 0 : i32
    return %c0_i32, %c0_i32_0 : i32, i32
  }
  func.func @transform_8(%arg0: i32, %arg1: i32) -> (i32, i32) {
    %c0_i32 = arith.constant 0 : i32
    %c0_i32_0 = arith.constant 0 : i32
    %c0_i32_1 = arith.constant 0 : i32
    return %c0_i32, %c0_i32_0 : i32, i32
  }
  func.func @transform_9(%arg0: i32, %arg1: i32) -> (i32, i32, i32) {
    %c0_i32 = arith.constant 0 : i32
    %c0_i32_0 = arith.constant 0 : i32
    return %arg0, %c0_i32, %arg1 : i32, i32, i32
  }
}

</mosaic_0001>

<llo_original>
// kernel: bottleneck_forward.1
$region0: #{bottleneck_forward.1}
  #allocation0 [shape = 'u32[]', space=smem, size = 0x4, offset = 0x4, fixed_abs, tag = 'smem constant byte address 0x4 - core index']
  #allocation1 [shape = 'u32[72,128]{1,0:T(1,128)}', space=vmem, size = 0x9000, scoped, tag = 'internal scratch']
  #allocation2 [shape = 'f32[8,12,18]{2,1,0:T(8,128)}', space=vmem, size = 0x10000, scoped, tag = 'scratch operand']
  #allocation3 [shape = 'f32[8,10,18]{2,1,0:T(8,128)}', space=vmem, size = 0x10000, scoped, tag = 'scratch operand']
  %s0 = inlined_call_operand.vmem [shape: f32[2,8,16,16], index: 0, kind: input, shape index: {}, may-alias: {0,1,2}]
  %s1 = inlined_call_operand.vmem [shape: f32[2,8,16,16], index: 1, kind: input, shape index: {}, may-alias: {0,1,2}]
  %s2 = inlined_call_operand.vmem [shape: f32[2,8,16,16], index: 2, kind: input, shape index: {}, may-alias: {0,1,2}]
  %s3 = inlined_call_operand.vmem [shape: f32[8,72], index: 3, kind: input, shape index: {}]
  %s4 = inlined_call_operand.vmem [shape: f32[8,1], index: 4, kind: input, shape index: {}]
  %s5 = inlined_call_operand.vmem [shape: f32[8,8], index: 5, kind: input, shape index: {}]
  %s6 = inlined_call_operand.vmem [shape: f32[8,1], index: 6, kind: input, shape index: {}]
  %s7 = inlined_call_operand.vmem [shape: f32[8,72], index: 7, kind: input, shape index: {}]
  %s8 = inlined_call_operand.vmem [shape: f32[8,1], index: 8, kind: input, shape index: {}]
  %s9 = inlined_call_operand.vmem [shape: f32[2,8,256], index: 9, kind: output, shape index: {}]
  %s10 = sld [smem:[#allocation0]]
  $region207: #{bottleneck_forward.1} parent=0
    _
  %s12 = ssub.s32 1, %s10
  %s13 = scalar_select 0, %s12, %s10
  $region1: #{bottleneck_forward.1} parent=0
    #allocation4 [shape = 'u8[65536]{0}', space=vmem, size = 0x10000, scoped, tag = 'input window, operand 0']
    #allocation5 [shape = 'u8[65536]{0}', space=vmem, size = 0x10000, scoped, tag = 'input window, operand 1']
    #allocation6 [shape = 'u8[65536]{0}', space=vmem, size = 0x10000, scoped, tag = 'input window, operand 2']
    loop: start=0, step=1, limit=6
    $region2: #{bottleneck_forward.1} parent=1 // loop_pre_header
      _
    $region3: #{bottleneck_forward.1} parent=1 // loop_header
      %s15 = sphi 0, %s19
      %p16 = scmp.ge.s32.totalorder %s15, 6
      %s22 = sphi 0, %s34
      %s23 = sphi 0, %s30
      %s24 = sphi 0, %s22
      %s25 = sphi 0, %s23
      %s26 = sphi 0, %s24
      %s27 = sphi 0, %s25
      %s39 = sphi 0, %s41
      %s42 = sphi 0, %s39
      %s43 = sphi 0, %s42
      %s59 = sphi 0, %s43
      %s73 = sphi 0, %s75
      %s76 = sphi 0, %s73
      %s77 = sphi 0, %s76
      %s93 = sphi 0, %s77
      %s107 = sphi 0, %s109
      %s110 = sphi 0, %s107
      %s111 = sphi 0, %s110
      %s127 = sphi 0, %s111
      %s131 = sphi 0, %s131
      %s133 = sphi 0, %s131
      %s134 = sphi 0, %s133
      %s148 = sphi 0, %s134
      %s152 = sphi 0, %s152
      %s154 = sphi 0, %s152
      %s155 = sphi 0, %s154
      %s169 = sphi 0, %s155
      %s173 = sphi 0, %s173
      %s175 = sphi 0, %s173
      %s176 = sphi 0, %s175
      %s190 = sphi 0, %s176
      %s194 = sphi 0, %s194
      %s196 = sphi 0, %s194
      %s197 = sphi 0, %s196
      %s211 = sphi 0, %s197
      %s215 = sphi 0, %s215
      %s217 = sphi 0, %s215
      %s218 = sphi 0, %s217
      %s232 = sphi 0, %s218
      %s236 = sphi 0, %s236
      %s238 = sphi 0, %s236
      %s239 = sphi 0, %s238
      %s253 = sphi 0, %s239
      %s261 = sphi 0, %s263
      %s264 = sphi 0, %s261
      %s265 = sphi 0, %s264
      %s281 = sphi 0, %s265
    $region4: #{bottleneck_forward.1} parent=1 // loop_header_branch
      %18 = sbr.rel (%p16) target = $region8
    $region5: #{bottleneck_forward.1} parent=1 // loop_body
      %s20 = ssub.s32 %s15, 1
      %s21 = ssub.s32 %s15, 2
      %s28 = sadd.s32 1, %s23
      %p29 = scmp.ge.s32.totalorder %s28, 2
      %s30 = scalar_select %p29, 0, %s28
      %s31 = sadd.s32 1, %s22
      %s32 = scalar_select %p29, %s31, %s22
      %p33 = scmp.ge.s32.totalorder %s32, 2
      %s34 = scalar_select %p33, 0, %s32
      %s35 = ssub.s32 %s22, %s34
      %s36 = ssub.s32 %s23, %s30
      %s37 = sor.u32 %s35, %s36
      %p38 = scmp.eq.s32.totalorder %s37, 0
      %s40 = sadd.s32 %s39, 1
      %s41 = scalar_select %p38, %s39, %s40
      %p44 = pneg %p38
      %p45 = scmp.eq.s32.totalorder %s15, 3
      %p46 = por %p44, %p45
      %p47 = scmp.ne.s32.totalorder %s39, %s42
      %p48 = scmp.eq.s32.totalorder %s15, 0
      %p49 = por %p47, %p48
      %p50 = scmp.ne.s32.totalorder %s39, %s42
      %p51 = scmp.eq.s32.totalorder %s20, 3
      %p52 = por %p50, %p51
      %p53 = scmp.ne.s32.totalorder %s42, %s43
      %p54 = scmp.eq.s32.totalorder %s20, 0
      %p55 = por %p53, %p54
      %p56 = scmp.ne.s32.totalorder %s42, %s43
      %p57 = scmp.eq.s32.totalorder %s21, 3
      %p58 = por %p56, %p57
      %p60 = scmp.ne.s32.totalorder %s43, %s59
      %p61 = scmp.eq.s32.totalorder %s21, 0
      %p62 = por %p60, %p61
      %s63 = ssub.s32 %s23, 1
      %p64 = scmp.gt.s32.totalorder %s63, 0
      %s65 = scalar_select %p64, %s63, 0
      %s66 = ssub.s32 %s30, 1
      %p67 = scmp.gt.s32.totalorder %s66, 0
      %s68 = scalar_select %p67, %s66, 0
      %s69 = ssub.s32 %s22, %s34
      %s70 = ssub.s32 %s65, %s68
      %s71 = sor.u32 %s69, %s70
      %p72 = scmp.eq.s32.totalorder %s71, 0
      %s74 = sadd.s32 %s73, 1
      %s75 = scalar_select %p72, %s73, %s74
      %p78 = pneg %p72
      %p79 = scmp.eq.s32.totalorder %s15, 3
      %p80 = por %p78, %p79
      %p81 = scmp.ne.s32.totalorder %s73, %s76
      %p82 = scmp.eq.s32.totalorder %s15, 0
      %p83 = por %p81, %p82
      %p84 = scmp.ne.s32.totalorder %s73, %s76
      %p85 = scmp.eq.s32.totalorder %s20, 3
      %p86 = por %p84, %p85
      %p87 = scmp.ne.s32.totalorder %s76, %s77
      %p88 = scmp.eq.s32.totalorder %s20, 0
      %p89 = por %p87, %p88
      %p90 = scmp.ne.s32.totalorder %s76, %s77
      %p91 = scmp.eq.s32.totalorder %s21, 3
      %p92 = por %p90, %p91
      %p94 = scmp.ne.s32.totalorder %s77, %s93
      %p95 = scmp.eq.s32.totalorder %s21, 0
      %p96 = por %p94, %p95
      %s97 = sadd.s32 %s23, 1
      %p98 = scmp.lt.s32.totalorder %s97, 1
      %s99 = scalar_select %p98, %s97, 1
      %s100 = sadd.s32 %s30, 1
      %p101 = scmp.lt.s32.totalorder %s100, 1
      %s102 = scalar_select %p101, %s100, 1
      %s103 = ssub.s32 %s22, %s34
      %s104 = ssub.s32 %s99, %s102
      %s105 = sor.u32 %s103, %s104
      %p106 = scmp.eq.s32.totalorder %s105, 0
      %s108 = sadd.s32 %s107, 1
      %s109 = scalar_select %p106, %s107, %s108
      %p112 = pneg %p106
      %p113 = scmp.eq.s32.totalorder %s15, 3
      %p114 = por %p112, %p113
      %p115 = scmp.ne.s32.totalorder %s107, %s110
      %p116 = scmp.eq.s32.totalorder %s15, 0
      %p117 = por %p115, %p116
      %p118 = scmp.ne.s32.totalorder %s107, %s110
      %p119 = scmp.eq.s32.totalorder %s20, 3
      %p120 = por %p118, %p119
      %p121 = scmp.ne.s32.totalorder %s110, %s111
      %p122 = scmp.eq.s32.totalorder %s20, 0
      %p123 = por %p121, %p122
      %p124 = scmp.ne.s32.totalorder %s110, %s111
      %p125 = scmp.eq.s32.totalorder %s21, 3
      %p126 = por %p124, %p125
      %p128 = scmp.ne.s32.totalorder %s111, %s127
      %p129 = scmp.eq.s32.totalorder %s21, 0
      %p130 = por %p128, %p129
      %s132 = sadd.s32 %s131, 1
      %p135 = scmp.eq.s32.totalorder %s15, 3
      %p136 = scmp.ne.s32.totalorder %s131, %s133
      %p137 = scmp.eq.s32.totalorder %s15, 0
      %p138 = por %p136, %p137
      %p139 = scmp.ne.s32.totalorder %s131, %s133
      %p140 = scmp.eq.s32.totalorder %s20, 3
      %p141 = por %p139, %p140
      %p142 = scmp.ne.s32.totalorder %s133, %s134
      %p143 = scmp.eq.s32.totalorder %s20, 0
      %p144 = por %p142, %p143
      %p145 = scmp.ne.s32.totalorder %s133, %s134
      %p146 = scmp.eq.s32.totalorder %s21, 3
      %p147 = por %p145, %p146
      %p149 = scmp.ne.s32.totalorder %s134, %s148
      %p150 = scmp.eq.s32.totalorder %s21, 0
      %p151 = por %p149, %p150
      %s153 = sadd.s32 %s152, 1
      %p156 = scmp.eq.s32.totalorder %s15, 3
      %p157 = scmp.ne.s32.totalorder %s152, %s154
      %p158 = scmp.eq.s32.totalorder %s15, 0
      %p159 = por %p157, %p158
      %p160 = scmp.ne.s32.totalorder %s152, %s154
      %p161 = scmp.eq.s32.totalorder %s20, 3
      %p162 = por %p160, %p161
      %p163 = scmp.ne.s32.totalorder %s154, %s155
      %p164 = scmp.eq.s32.totalorder %s20, 0
      %p165 = por %p163, %p164
      %p166 = scmp.ne.s32.totalorder %s154, %s155
      %p167 = scmp.eq.s32.totalorder %s21, 3
      %p168 = por %p166, %p167
      %p170 = scmp.ne.s32.totalorder %s155, %s169
      %p171 = scmp.eq.s32.totalorder %s21, 0
      %p172 = por %p170, %p171
      %s174 = sadd.s32 %s173, 1
      %p177 = scmp.eq.s32.totalorder %s15, 3
      %p178 = scmp.ne.s32.totalorder %s173, %s175
      %p179 = scmp.eq.s32.totalorder %s15, 0
      %p180 = por %p178, %p179
      %p181 = scmp.ne.s32.totalorder %s173, %s175
      %p182 = scmp.eq.s32.totalorder %s20, 3
      %p183 = por %p181, %p182
      %p184 = scmp.ne.s32.totalorder %s175, %s176
      %p185 = scmp.eq.s32.totalorder %s20, 0
      %p186 = por %p184, %p185
      %p187 = scmp.ne.s32.totalorder %s175, %s176
      %p188 = scmp.eq.s32.totalorder %s21, 3
      %p189 = por %p187, %p188
      %p191 = scmp.ne.s32.totalorder %s176, %s190
      %p192 = scmp.eq.s32.totalorder %s21, 0
      %p193 = por %p191, %p192
      %s195 = sadd.s32 %s194, 1
      %p198 = scmp.eq.s32.totalorder %s15, 3
      %p199 = scmp.ne.s32.totalorder %s194, %s196
      %p200 = scmp.eq.s32.totalorder %s15, 0
      %p201 = por %p199, %p200
      %p202 = scmp.ne.s32.totalorder %s194, %s196
      %p203 = scmp.eq.s32.totalorder %s20, 3
      %p204 = por %p202, %p203
      %p205 = scmp.ne.s32.totalorder %s196, %s197
      %p206 = scmp.eq.s32.totalorder %s20, 0
      %p207 = por %p205, %p206
      %p208 = scmp.ne.s32.totalorder %s196, %s197
      %p209 = scmp.eq.s32.totalorder %s21, 3
      %p210 = por %p208, %p209
      %p212 = scmp.ne.s32.totalorder %s197, %s211
      %p213 = scmp.eq.s32.totalorder %s21, 0
      %p214 = por %p212, %p213
      %s216 = sadd.s32 %s215, 1
      %p219 = scmp.eq.s32.totalorder %s15, 3
      %p220 = scmp.ne.s32.totalorder %s215, %s217
      %p221 = scmp.eq.s32.totalorder %s15, 0
      %p222 = por %p220, %p221
      %p223 = scmp.ne.s32.totalorder %s215, %s217
      %p224 = scmp.eq.s32.totalorder %s20, 3
      %p225 = por %p223, %p224
      %p226 = scmp.ne.s32.totalorder %s217, %s218
      %p227 = scmp.eq.s32.totalorder %s20, 0
      %p228 = por %p226, %p227
      %p229 = scmp.ne.s32.totalorder %s217, %s218
      %p230 = scmp.eq.s32.totalorder %s21, 3
      %p231 = por %p229, %p230
      %p233 = scmp.ne.s32.totalorder %s218, %s232
      %p234 = scmp.eq.s32.totalorder %s21, 0
      %p235 = por %p233, %p234
      %s237 = sadd.s32 %s236, 1
      %p240 = scmp.eq.s32.totalorder %s15, 3
      %p241 = scmp.ne.s32.totalorder %s236, %s238
      %p242 = scmp.eq.s32.totalorder %s15, 0
      %p243 = por %p241, %p242
      %p244 = scmp.ne.s32.totalorder %s236, %s238
      %p245 = scmp.eq.s32.totalorder %s20, 3
      %p246 = por %p244, %p245
      %p247 = scmp.ne.s32.totalorder %s238, %s239
      %p248 = scmp.eq.s32.totalorder %s20, 0
      %p249 = por %p247, %p248
      %p250 = scmp.ne.s32.totalorder %s238, %s239
      %p251 = scmp.eq.s32.totalorder %s21, 3
      %p252 = por %p250, %p251
      %p254 = scmp.ne.s32.totalorder %s239, %s253
      %p255 = scmp.eq.s32.totalorder %s21, 0
      %p256 = por %p254, %p255
      %s257 = ssub.s32 %s22, %s34
      %s258 = ssub.s32 %s23, %s30
      %s259 = sor.u32 %s257, %s258
      %p260 = scmp.eq.s32.totalorder %s259, 0
      %s262 = sadd.s32 %s261, 1
      %s263 = scalar_select %p260, %s261, %s262
      %p266 = pneg %p260
      %p267 = scmp.eq.s32.totalorder %s15, 3
      %p268 = por %p266, %p267
      %p269 = scmp.ne.s32.totalorder %s261, %s264
      %p270 = scmp.eq.s32.totalorder %s15, 0
      %p271 = por %p269, %p270
      %p272 = scmp.ne.s32.totalorder %s261, %s264
      %p273 = scmp.eq.s32.totalorder %s20, 3
      %p274 = por %p272, %p273
      %p275 = scmp.ne.s32.totalorder %s264, %s265
      %p276 = scmp.eq.s32.totalorder %s20, 0
      %p277 = por %p275, %p276
      %p278 = scmp.ne.s32.totalorder %s264, %s265
      %p279 = scmp.eq.s32.totalorder %s21, 3
      %p280 = por %p278, %p279
      %p282 = scmp.ne.s32.totalorder %s265, %s281
      %p283 = scmp.eq.s32.totalorder %s21, 0
      %p284 = por %p282, %p283
      %p285 = scmp.le.s32.totalorder 1, %s15
      %p286 = scmp.lt.s32.totalorder %s15, 5
      %p287 = pnand %p285, %p286
      %p288 = pneg %p287
      // Predicated region
      $region9: #{bottleneck_forward.1} parent=5 // pred_check
        _
      $region10: #{bottleneck_forward.1} parent=5 // pred_check_branch
        %290 = sbr.rel (%p287) target = $region12
      $region11: #{bottleneck_forward.1} parent=5 // pred_region
        %s291 = ssub.s32 %s15, 1
        // Predicated region
        $region13: #{bottleneck_forward.1} parent=11 // pred_check
          %p292 = pneg %p144
        $region14: #{bottleneck_forward.1} parent=11 // pred_check_branch
          %294 = sbr.rel (%p292) target = $region16
        $region15: #{bottleneck_forward.1} parent=11 // pred_region
          _
        $region16: #{bottleneck_forward.1} parent=11 // pred_fallthru
          _
        // Predicated region
        $region17: #{bottleneck_forward.1} parent=11 // pred_check
          %p295 = pneg %p165
        $region18: #{bottleneck_forward.1} parent=11 // pred_check_branch
          %297 = sbr.rel (%p295) target = $region20
        $region19: #{bottleneck_forward.1} parent=11 // pred_region
          _
        $region20: #{bottleneck_forward.1} parent=11 // pred_fallthru
          _
        // Predicated region
        $region21: #{bottleneck_forward.1} parent=11 // pred_check
          %p298 = pneg %p186
        $region22: #{bottleneck_forward.1} parent=11 // pred_check_branch
          %300 = sbr.rel (%p298) target = $region24
        $region23: #{bottleneck_forward.1} parent=11 // pred_region
          _
        $region24: #{bottleneck_forward.1} parent=11 // pred_fallthru
          _
        // Predicated region
        $region25: #{bottleneck_forward.1} parent=11 // pred_check
          %p301 = pneg %p207
        $region26: #{bottleneck_forward.1} parent=11 // pred_check_branch
          %303 = sbr.rel (%p301) target = $region28
        $region27: #{bottleneck_forward.1} parent=11 // pred_region
          _
        $region28: #{bottleneck_forward.1} parent=11 // pred_fallthru
          _
        // Predicated region
        $region29: #{bottleneck_forward.1} parent=11 // pred_check
          %p304 = pneg %p228
        $region30: #{bottleneck_forward.1} parent=11 // pred_check_branch
          %306 = sbr.rel (%p304) target = $region32
        $region31: #{bottleneck_forward.1} parent=11 // pred_region
          _
        $region32: #{bottleneck_forward.1} parent=11 // pred_fallthru
          _
        // Predicated region
        $region33: #{bottleneck_forward.1} parent=11 // pred_check
          %p307 = pneg %p249
        $region34: #{bottleneck_forward.1} parent=11 // pred_check_branch
          %309 = sbr.rel (%p307) target = $region36
        $region35: #{bottleneck_forward.1} parent=11 // pred_region
          _
        $region36: #{bottleneck_forward.1} parent=11 // pred_fallthru
          _
      $region12: #{bottleneck_forward.1} parent=5 // pred_fallthru
        _
      %p310 = scmp.lt.s32.totalorder %s15, 4
      // Predicated region
      $region37: #{bottleneck_forward.1} parent=5 // pred_check
        %p311 = pneg %p310
      $region38: #{bottleneck_forward.1} parent=5 // pred_check_branch
        %313 = sbr.rel (%p311) target = $region40
      $region39: #{bottleneck_forward.1} parent=5 // pred_region
        // Predicated region
        $region41: #{bottleneck_forward.1} parent=39 // pred_check
          %p314 = pneg %p49
        $region42: #{bottleneck_forward.1} parent=39 // pred_check_branch
          %316 = sbr.rel (%p314) target = $region44
        $region43: #{bottleneck_forward.1} parent=39 // pred_region
          %s317 = sand.u32 %s39, 1
          %s318 = sand.u32 %s39, 1
          %s319 = smul.addr %s318, 64
          %s320 = scalar_lea.vmem [#allocation4], %s319
          %s321 = smul.addr %s22, 16
          %s322 = sadd.s32 %s23, %s321
          %s323 = smul.addr %s322, 8
          %s324 = scalar_lea.vmem %s0, %s323
          // Predicated region
          $region45: #{bottleneck_forward.1} parent=43 // pred_check
            _
          $region46: #{bottleneck_forward.1} parent=43 // pred_check_branch
            %326 = sbr.rel (0) target = $region48
          $region47: #{bottleneck_forward.1} parent=43 // pred_region
            // Predicated region
            $region49: #{bottleneck_forward.1} parent=47 // pred_check
              _
            $region50: #{bottleneck_forward.1} parent=47 // pred_check_branch
              %328 = sbr.rel (0) target = $region52
            $region51: #{bottleneck_forward.1} parent=47 // pred_region
              // Predicated region
              $region64: #{bottleneck_forward.1} parent=51 // pred_check
                _
              $region65: #{bottleneck_forward.1} parent=51 // pred_check_branch
                %358 = sbr.rel (0) target = $region67
              $region66: #{bottleneck_forward.1} parent=51 // pred_region
                loop: start=0, step=1, limit=1
                $region68: #{bottleneck_forward.1} parent=66 // loop_pre_header
                  _
                $region69: #{bottleneck_forward.1} parent=66 // loop_header
                  %s360 = sphi 0, %s364
                  %p361 = scmp.ge.s32.totalorder %s360, 1
                  %s365 = sphi %s324, %s324
                  %s366 = sphi %s320, %s320
                $region70: #{bottleneck_forward.1} parent=66 // loop_header_branch
                  %363 = sbr.rel (%p361) target = $region74
                $region71: #{bottleneck_forward.1} parent=66 // loop_body
                  %v367 = vld [vmem:[%s365] sm:$0xff]
                  %368 = vst [vmem:[%s366] sm:$0xff] %v367
                  %v369 = vld [vmem:[%s365 + $0x10] sm:$0xff]
                  %370 = vst [vmem:[%s366 + $0x8] sm:$0xff] %v369
                  %v371 = vld [vmem:[%s365 + $0x20] sm:$0xff]
                  %372 = vst [vmem:[%s366 + $0x10] sm:$0xff] %v371
                  %v373 = vld [vmem:[%s365 + $0x30] sm:$0xff]
                  %374 = vst [vmem:[%s366 + $0x18] sm:$0xff] %v373
                  %v375 = vld [vmem:[%s365 + $0x40] sm:$0xff]
                  %376 = vst [vmem:[%s366 + $0x20] sm:$0xff] %v375
                  %v377 = vld [vmem:[%s365 + $0x50] sm:$0xff]
                  %378 = vst [vmem:[%s366 + $0x28] sm:$0xff] %v377
                  %v379 = vld [vmem:[%s365 + $0x60] sm:$0xff]
                  %380 = vst [vmem:[%s366 + $0x30] sm:$0xff] %v379
                  %v381 = vld [vmem:[%s365 + $0x70] sm:$0xff]
                  %382 = vst [vmem:[%s366 + $0x38] sm:$0xff] %v381
                $region72: #{bottleneck_forward.1} parent=66 // loop_footer
                  %s364 = sadd.s32 1, %s360
                $region73: #{bottleneck_forward.1} parent=66 // loop_footer_branch
                  %359 = sbr.rel target = $region69
                $region74: #{bottleneck_forward.1} parent=66 // loop_exit
                  _
              $region67: #{bottleneck_forward.1} parent=51 // pred_fallthru
                _
              // Predicated region
              $region75: #{bottleneck_forward.1} parent=51 // pred_check
                _
              $region76: #{bottleneck_forward.1} parent=51 // pred_check_branch
                %384 = sbr.rel target = $region78
              $region77: #{bottleneck_forward.1} parent=51 // pred_region
                _
              $region78: #{bottleneck_forward.1} parent=51 // pred_fallthru
                _
            $region52: #{bottleneck_forward.1} parent=47 // pred_fallthru
              _
            // Predicated region
            $region53: #{bottleneck_forward.1} parent=47 // pred_check
              _
            $region54: #{bottleneck_forward.1} parent=47 // pred_check_branch
              %330 = sbr.rel target = $region56
            $region55: #{bottleneck_forward.1} parent=47 // pred_region
              %s332 = ssub.s32 256, 1
              loop: start=0, step=1, limit=1
              $region57: #{bottleneck_forward.1} parent=55 // loop_pre_header
                _
              $region58: #{bottleneck_forward.1} parent=55 // loop_header
                %s334 = sphi 0, %s338
                %p335 = scmp.ge.s32.totalorder %s334, 1
                %s339 = sphi %s324, %s324
                %s340 = sphi %s320, %s320
              $region59: #{bottleneck_forward.1} parent=55 // loop_header_branch
                %337 = sbr.rel (%p335) target = $region63
              $region60: #{bottleneck_forward.1} parent=55 // loop_body
                %v341 = vld [vmem:[%s339] sm:%s332]
                %342 = vst [vmem:[%s340] sm:%s332] %v341
                %v343 = vld [vmem:[%s339 + $0x10] sm:%s332]
                %344 = vst [vmem:[%s340 + $0x8] sm:%s332] %v343
                %v345 = vld [vmem:[%s339 + $0x20] sm:%s332]
                %346 = vst [vmem:[%s340 + $0x10] sm:%s332] %v345
                %v347 = vld [vmem:[%s339 + $0x30] sm:%s332]
                %348 = vst [vmem:[%s340 + $0x18] sm:%s332] %v347
                %v349 = vld [vmem:[%s339 + $0x40] sm:%s332]
                %350 = vst [vmem:[%s340 + $0x20] sm:%s332] %v349
                %v351 = vld [vmem:[%s339 + $0x50] sm:%s332]
                %352 = vst [vmem:[%s340 + $0x28] sm:%s332] %v351
                %v353 = vld [vmem:[%s339 + $0x60] sm:%s332]
                %354 = vst [vmem:[%s340 + $0x30] sm:%s332] %v353
                %v355 = vld [vmem:[%s339 + $0x70] sm:%s332]
                %356 = vst [vmem:[%s340 + $0x38] sm:%s332] %v355
              $region61: #{bottleneck_forward.1} parent=55 // loop_footer
                %s338 = sadd.s32 1, %s334
              $region62: #{bottleneck_forward.1} parent=55 // loop_footer_branch
                %333 = sbr.rel target = $region58
              $region63: #{bottleneck_forward.1} parent=55 // loop_exit
                _
            $region56: #{bottleneck_forward.1} parent=47 // pred_fallthru
              _
          $region48: #{bottleneck_forward.1} parent=43 // pred_fallthru
            _
          %385 = vnop
        $region44: #{bottleneck_forward.1} parent=39 // pred_fallthru
          _
        // Predicated region
        $region79: #{bottleneck_forward.1} parent=39 // pred_check
          %p386 = pneg %p83
        $region80: #{bottleneck_forward.1} parent=39 // pred_check_branch
          %388 = sbr.rel (%p386) target = $region82
        $region81: #{bottleneck_forward.1} parent=39 // pred_region
          %s389 = sand.u32 %s73, 1
          %s390 = sand.u32 %s73, 1
          %s391 = smul.addr %s390, 64
          %s392 = scalar_lea.vmem [#allocation5], %s391
          %s393 = ssub.s32 %s23, 1
          %p394 = scmp.gt.s32.totalorder %s393, 0
          %s395 = scalar_select %p394, %s393, 0
          %s396 = smul.addr %s22, 16
          %s397 = sadd.s32 %s395, %s396
          %s398 = smul.addr %s397, 8
          %s399 = scalar_lea.vmem %s1, %s398
          // Predicated region
          $region83: #{bottleneck_forward.1} parent=81 // pred_check
            _
          $region84: #{bottleneck_forward.1} parent=81 // pred_check_branch
            %401 = sbr.rel (0) target = $region86
          $region85: #{bottleneck_forward.1} parent=81 // pred_region
            // Predicated region
            $region87: #{bottleneck_forward.1} parent=85 // pred_check
              _
            $region88: #{bottleneck_forward.1} parent=85 // pred_check_branch
              %403 = sbr.rel (0) target = $region90
            $region89: #{bottleneck_forward.1} parent=85 // pred_region
              // Predicated region
              $region102: #{bottleneck_forward.1} parent=89 // pred_check
                _
              $region103: #{bottleneck_forward.1} parent=89 // pred_check_branch
                %433 = sbr.rel (0) target = $region105
              $region104: #{bottleneck_forward.1} parent=89 // pred_region
                loop: start=0, step=1, limit=1
                $region106: #{bottleneck_forward.1} parent=104 // loop_pre_header
                  _
                $region107: #{bottleneck_forward.1} parent=104 // loop_header
                  %s435 = sphi 0, %s439
                  %p436 = scmp.ge.s32.totalorder %s435, 1
                  %s440 = sphi %s399, %s399
                  %s441 = sphi %s392, %s392
                $region108: #{bottleneck_forward.1} parent=104 // loop_header_branch
                  %438 = sbr.rel (%p436) target = $region112
                $region109: #{bottleneck_forward.1} parent=104 // loop_body
                  %v442 = vld [vmem:[%s440] sm:$0xff]
                  %443 = vst [vmem:[%s441] sm:$0xff] %v442
                  %v444 = vld [vmem:[%s440 + $0x10] sm:$0xff]
                  %445 = vst [vmem:[%s441 + $0x8] sm:$0xff] %v444
                  %v446 = vld [vmem:[%s440 + $0x20] sm:$0xff]
                  %447 = vst [vmem:[%s441 + $0x10] sm:$0xff] %v446
                  %v448 = vld [vmem:[%s440 + $0x30] sm:$0xff]
                  %449 = vst [vmem:[%s441 + $0x18] sm:$0xff] %v448
                  %v450 = vld [vmem:[%s440 + $0x40] sm:$0xff]
                  %451 = vst [vmem:[%s441 + $0x20] sm:$0xff] %v450
                  %v452 = vld [vmem:[%s440 + $0x50] sm:$0xff]
                  %453 = vst [vmem:[%s441 + $0x28] sm:$0xff] %v452
                  %v454 = vld [vmem:[%s440 + $0x60] sm:$0xff]
                  %455 = vst [vmem:[%s441 + $0x30] sm:$0xff] %v454
                  %v456 = vld [vmem:[%s440 + $0x70] sm:$0xff]
                  %457 = vst [vmem:[%s441 + $0x38] sm:$0xff] %v456
                $region110: #{bottleneck_forward.1} parent=104 // loop_footer
                  %s439 = sadd.s32 1, %s435
                $region111: #{bottleneck_forward.1} parent=104 // loop_footer_branch
                  %434 = sbr.rel target = $region107
                $region112: #{bottleneck_forward.1} parent=104 // loop_exit
                  _
              $region105: #{bottleneck_forward.1} parent=89 // pred_fallthru
                _
              // Predicated region
              $region113: #{bottleneck_forward.1} parent=89 // pred_check
                _
              $region114: #{bottleneck_forward.1} parent=89 // pred_check_branch
                %459 = sbr.rel target = $region116
              $region115: #{bottleneck_forward.1} parent=89 // pred_region
                _
              $region116: #{bottleneck_forward.1} parent=89 // pred_fallthru
                _
            $region90: #{bottleneck_forward.1} parent=85 // pred_fallthru
              _
            // Predicated region
            $region91: #{bottleneck_forward.1} parent=85 // pred_check
              _
            $region92: #{bottleneck_forward.1} parent=85 // pred_check_branch
              %405 = sbr.rel target = $region94
            $region93: #{bottleneck_forward.1} parent=85 // pred_region
              %s407 = ssub.s32 256, 1
              loop: start=0, step=1, limit=1
              $region95: #{bottleneck_forward.1} parent=93 // loop_pre_header
                _
              $region96: #{bottleneck_forward.1} parent=93 // loop_header
                %s409 = sphi 0, %s413
                %p410 = scmp.ge.s32.totalorder %s409, 1
                %s414 = sphi %s399, %s399
                %s415 = sphi %s392, %s392
              $region97: #{bottleneck_forward.1} parent=93 // loop_header_branch
                %412 = sbr.rel (%p410) target = $region101
              $region98: #{bottleneck_forward.1} parent=93 // loop_body
                %v416 = vld [vmem:[%s414] sm:%s407]
                %417 = vst [vmem:[%s415] sm:%s407] %v416
                %v418 = vld [vmem:[%s414 + $0x10] sm:%s407]
                %419 = vst [vmem:[%s415 + $0x8] sm:%s407] %v418
                %v420 = vld [vmem:[%s414 + $0x20] sm:%s407]
                %421 = vst [vmem:[%s415 + $0x10] sm:%s407] %v420
                %v422 = vld [vmem:[%s414 + $0x30] sm:%s407]
                %423 = vst [vmem:[%s415 + $0x18] sm:%s407] %v422
                %v424 = vld [vmem:[%s414 + $0x40] sm:%s407]
                %425 = vst [vmem:[%s415 + $0x20] sm:%s407] %v424
                %v426 = vld [vmem:[%s414 + $0x50] sm:%s407]
                %427 = vst [vmem:[%s415 + $0x28] sm:%s407] %v426
                %v428 = vld [vmem:[%s414 + $0x60] sm:%s407]
                %429 = vst [vmem:[%s415 + $0x30] sm:%s407] %v428
                %v430 = vld [vmem:[%s414 + $0x70] sm:%s407]
                %431 = vst [vmem:[%s415 + $0x38] sm:%s407] %v430
              $region99: #{bottleneck_forward.1} parent=93 // loop_footer
                %s413 = sadd.s32 1, %s409
              $region100: #{bottleneck_forward.1} parent=93 // loop_footer_branch
                %408 = sbr.rel target = $region96
              $region101: #{bottleneck_forward.1} parent=93 // loop_exit
                _
            $region94: #{bottleneck_forward.1} parent=85 // pred_fallthru
              _
          $region86: #{bottleneck_forward.1} parent=81 // pred_fallthru
            _
          %460 = vnop
        $region82: #{bottleneck_forward.1} parent=39 // pred_fallthru
          _
        // Predicated region
        $region117: #{bottleneck_forward.1} parent=39 // pred_check
          %p461 = pneg %p117
        $region118: #{bottleneck_forward.1} parent=39 // pred_check_branch
          %463 = sbr.rel (%p461) target = $region120
        $region119: #{bottleneck_forward.1} parent=39 // pred_region
          %s464 = sand.u32 %s107, 1
          %s465 = sand.u32 %s107, 1
          %s466 = smul.addr %s465, 64
          %s467 = scalar_lea.vmem [#allocation6], %s466
          %s468 = sadd.s32 %s23, 1
          %p469 = scmp.lt.s32.totalorder %s468, 1
          %s470 = scalar_select %p469, %s468, 1
          %s471 = smul.addr %s22, 16
          %s472 = sadd.s32 %s470, %s471
          %s473 = smul.addr %s472, 8
          %s474 = scalar_lea.vmem %s2, %s473
          // Predicated region
          $region121: #{bottleneck_forward.1} parent=119 // pred_check
            _
          $region122: #{bottleneck_forward.1} parent=119 // pred_check_branch
            %476 = sbr.rel (0) target = $region124
          $region123: #{bottleneck_forward.1} parent=119 // pred_region
            // Predicated region
            $region125: #{bottleneck_forward.1} parent=123 // pred_check
              _
            $region126: #{bottleneck_forward.1} parent=123 // pred_check_branch
              %478 = sbr.rel (0) target = $region128
            $region127: #{bottleneck_forward.1} parent=123 // pred_region
              // Predicated region
              $region140: #{bottleneck_forward.1} parent=127 // pred_check
                _
              $region141: #{bottleneck_forward.1} parent=127 // pred_check_branch
                %508 = sbr.rel (0) target = $region143
              $region142: #{bottleneck_forward.1} parent=127 // pred_region
                loop: start=0, step=1, limit=1
                $region144: #{bottleneck_forward.1} parent=142 // loop_pre_header
                  _
                $region145: #{bottleneck_forward.1} parent=142 // loop_header
                  %s510 = sphi 0, %s514
                  %p511 = scmp.ge.s32.totalorder %s510, 1
                  %s515 = sphi %s474, %s474
                  %s516 = sphi %s467, %s467
                $region146: #{bottleneck_forward.1} parent=142 // loop_header_branch
                  %513 = sbr.rel (%p511) target = $region150
                $region147: #{bottleneck_forward.1} parent=142 // loop_body
                  %v517 = vld [vmem:[%s515] sm:$0xff]
                  %518 = vst [vmem:[%s516] sm:$0xff] %v517
                  %v519 = vld [vmem:[%s515 + $0x10] sm:$0xff]
                  %520 = vst [vmem:[%s516 + $0x8] sm:$0xff] %v519
                  %v521 = vld [vmem:[%s515 + $0x20] sm:$0xff]
                  %522 = vst [vmem:[%s516 + $0x10] sm:$0xff] %v521
                  %v523 = vld [vmem:[%s515 + $0x30] sm:$0xff]
                  %524 = vst [vmem:[%s516 + $0x18] sm:$0xff] %v523
                  %v525 = vld [vmem:[%s515 + $0x40] sm:$0xff]
                  %526 = vst [vmem:[%s516 + $0x20] sm:$0xff] %v525
                  %v527 = vld [vmem:[%s515 + $0x50] sm:$0xff]
                  %528 = vst [vmem:[%s516 + $0x28] sm:$0xff] %v527
                  %v529 = vld [vmem:[%s515 + $0x60] sm:$0xff]
                  %530 = vst [vmem:[%s516 + $0x30] sm:$0xff] %v529
                  %v531 = vld [vmem:[%s515 + $0x70] sm:$0xff]
                  %532 = vst [vmem:[%s516 + $0x38] sm:$0xff] %v531
                $region148: #{bottleneck_forward.1} parent=142 // loop_footer
                  %s514 = sadd.s32 1, %s510
                $region149: #{bottleneck_forward.1} parent=142 // loop_footer_branch
                  %509 = sbr.rel target = $region145
                $region150: #{bottleneck_forward.1} parent=142 // loop_exit
                  _
              $region143: #{bottleneck_forward.1} parent=127 // pred_fallthru
                _
              // Predicated region
              $region151: #{bottleneck_forward.1} parent=127 // pred_check
                _
              $region152: #{bottleneck_forward.1} parent=127 // pred_check_branch
                %534 = sbr.rel target = $region154
              $region153: #{bottleneck_forward.1} parent=127 // pred_region
                _
              $region154: #{bottleneck_forward.1} parent=127 // pred_fallthru
                _
            $region128: #{bottleneck_forward.1} parent=123 // pred_fallthru
              _
            // Predicated region
            $region129: #{bottleneck_forward.1} parent=123 // pred_check
              _
            $region130: #{bottleneck_forward.1} parent=123 // pred_check_branch
              %480 = sbr.rel target = $region132
            $region131: #{bottleneck_forward.1} parent=123 // pred_region
              %s482 = ssub.s32 256, 1
              loop: start=0, step=1, limit=1
              $region133: #{bottleneck_forward.1} parent=131 // loop_pre_header
                _
              $region134: #{bottleneck_forward.1} parent=131 // loop_header
                %s484 = sphi 0, %s488
                %p485 = scmp.ge.s32.totalorder %s484, 1
                %s489 = sphi %s474, %s474
                %s490 = sphi %s467, %s467
              $region135: #{bottleneck_forward.1} parent=131 // loop_header_branch
                %487 = sbr.rel (%p485) target = $region139
              $region136: #{bottleneck_forward.1} parent=131 // loop_body
                %v491 = vld [vmem:[%s489] sm:%s482]
                %492 = vst [vmem:[%s490] sm:%s482] %v491
                %v493 = vld [vmem:[%s489 + $0x10] sm:%s482]
                %494 = vst [vmem:[%s490 + $0x8] sm:%s482] %v493
                %v495 = vld [vmem:[%s489 + $0x20] sm:%s482]
                %496 = vst [vmem:[%s490 + $0x10] sm:%s482] %v495
                %v497 = vld [vmem:[%s489 + $0x30] sm:%s482]
                %498 = vst [vmem:[%s490 + $0x18] sm:%s482] %v497
                %v499 = vld [vmem:[%s489 + $0x40] sm:%s482]
                %500 = vst [vmem:[%s490 + $0x20] sm:%s482] %v499
                %v501 = vld [vmem:[%s489 + $0x50] sm:%s482]
                %502 = vst [vmem:[%s490 + $0x28] sm:%s482] %v501
                %v503 = vld [vmem:[%s489 + $0x60] sm:%s482]
                %504 = vst [vmem:[%s490 + $0x30] sm:%s482] %v503
                %v505 = vld [vmem:[%s489 + $0x70] sm:%s482]
                %506 = vst [vmem:[%s490 + $0x38] sm:%s482] %v505
              $region137: #{bottleneck_forward.1} parent=131 // loop_footer
                %s488 = sadd.s32 1, %s484
              $region138: #{bottleneck_forward.1} parent=131 // loop_footer_branch
                %483 = sbr.rel target = $region134
              $region139: #{bottleneck_forward.1} parent=131 // loop_exit
                _
            $region132: #{bottleneck_forward.1} parent=123 // pred_fallthru
              _
          $region124: #{bottleneck_forward.1} parent=119 // pred_fallthru
            _
          %535 = vnop
        $region120: #{bottleneck_forward.1} parent=39 // pred_fallthru
          _
      $region40: #{bottleneck_forward.1} parent=5 // pred_fallthru
        _
      %p536 = scmp.le.s32.totalorder 1, %s15
      %p537 = scmp.lt.s32.totalorder %s15, 5
      %p538 = pnand %p536, %p537
      %p539 = pneg %p538
      // Predicated region
      $region155: #{bottleneck_forward.1} parent=5 // pred_check
        _
      $region156: #{bottleneck_forward.1} parent=5 // pred_check_branch
        %541 = sbr.rel (%p538) target = $region158
      $region157: #{bottleneck_forward.1} parent=5 // pred_region
        %s542 = ssub.s32 %s15, 1
        %s543 = sand.u32 %s42, 1
        %s544 = sand.u32 %s42, 1
        %s545 = smul.addr %s544, 64
        %s546 = scalar_lea.vmem [#allocation4], %s545
        // Predicated region
        $region159: #{bottleneck_forward.1} parent=157 // pred_check
          %p547 = pneg %p55
        $region160: #{bottleneck_forward.1} parent=157 // pred_check_branch
          %549 = sbr.rel (%p547) target = $region162
        $region161: #{bottleneck_forward.1} parent=157 // pred_region
          _
        $region162: #{bottleneck_forward.1} parent=157 // pred_fallthru
          _
        %s550 = sand.u32 %s76, 1
        %s551 = sand.u32 %s76, 1
        %s552 = smul.addr %s551, 64
        %s553 = scalar_lea.vmem [#allocation5], %s552
        // Predicated region
        $region163: #{bottleneck_forward.1} parent=157 // pred_check
          %p554 = pneg %p89
        $region164: #{bottleneck_forward.1} parent=157 // pred_check_branch
          %556 = sbr.rel (%p554) target = $region166
        $region165: #{bottleneck_forward.1} parent=157 // pred_region
          _
        $region166: #{bottleneck_forward.1} parent=157 // pred_fallthru
          _
        %s557 = sand.u32 %s110, 1
        %s558 = sand.u32 %s110, 1
        %s559 = smul.addr %s558, 64
        %s560 = scalar_lea.vmem [#allocation6], %s559
        // Predicated region
        $region167: #{bottleneck_forward.1} parent=157 // pred_check
          %p561 = pneg %p123
        $region168: #{bottleneck_forward.1} parent=157 // pred_check_branch
          %563 = sbr.rel (%p561) target = $region170
        $region169: #{bottleneck_forward.1} parent=157 // pred_region
          _
        $region170: #{bottleneck_forward.1} parent=157 // pred_fallthru
          _
        %s564 = sand.u32 %s42, 1
        %s565 = sand.u32 %s42, 1
        %s566 = smul.addr %s565, 64
        %s567 = scalar_lea.vmem [#allocation4], %s566
        %p568 = pneg %p55
        %p569 = pneg %p52
        %s570 = sand.u32 %s76, 1
        %s571 = sand.u32 %s76, 1
        %s572 = smul.addr %s571, 64
        %s573 = scalar_lea.vmem [#allocation5], %s572
        %p574 = pneg %p89
        %p575 = pneg %p86
        %s576 = sand.u32 %s110, 1
        %s577 = sand.u32 %s110, 1
        %s578 = smul.addr %s577, 64
        %s579 = scalar_lea.vmem [#allocation6], %s578
        %p580 = pneg %p123
        %p581 = pneg %p120
        %p582 = pneg %p144
        %p583 = pneg %p141
        %p584 = pneg %p165
        %p585 = pneg %p162
        %p586 = pneg %p186
        %p587 = pneg %p183
        %p588 = pneg %p207
        %p589 = pneg %p204
        %p590 = pneg %p228
        %p591 = pneg %p225
        %p592 = pneg %p249
        %p593 = pneg %p246
        %p594 = pneg %p277
        %p595 = pneg %p274
        %p596 = scmp.lt.s32.totalorder %s24, 1
        %s597 = scalar_select %p596, %s24, 1
        %p598 = scmp.lt.s32.totalorder %s25, 1
        %s599 = scalar_select %p598, %s25, 1
        %s600 = smul.addr %s597, 2
        %s601 = sadd.s32 %s599, %s600
        %s602 = smul.addr %s601, 8
        %s603 = scalar_lea.vmem %s9, %s602
        %s604 = ssub.s32 %s25, 1
        %p605 = scmp.gt.s32.totalorder %s604, 0
        %s606 = scalar_select %p605, %s604, 0
        %s607 = sadd.s32 %s25, 1
        %p608 = scmp.lt.s32.totalorder %s607, 1
        %s609 = scalar_select %p608, %s607, 1
        %p610 = scmp.lt.s32.totalorder %s24, 1
        %s611 = scalar_select %p610, %s24, 1
        %p612 = scmp.lt.s32.totalorder %s25, 1
        %s613 = scalar_select %p612, %s25, 1
        %s614 = smul.addr %s611, 2
        %s615 = sadd.s32 %s613, %s614
        %s616 = smul.addr %s615, 8
        %s617 = scalar_lea.vmem %s9, %s616
        %vm618 = vcmask 7168
        %619 = vst.msk [vmem:[#allocation2] sm:$0xff] %vm618, 0.0
        %vm620 = vcmask 3072
        %621 = vst.msk [vmem:[#allocation2 + $0x8] sm:$0xf] %vm620, 0.0
        %622 = vst.msk [vmem:[#allocation2 + $0x10] sm:$0xff] %vm618, 0.0
        %623 = vst.msk [vmem:[#allocation2 + $0x18] sm:$0xf] %vm620, 0.0
        %624 = vst.msk [vmem:[#allocation2 + $0x20] sm:$0xff] %vm618, 0.0
        %625 = vst.msk [vmem:[#allocation2 + $0x28] sm:$0xf] %vm620, 0.0
        %626 = vst.msk [vmem:[#allocation2 + $0x30] sm:$0xff] %vm618, 0.0
        %627 = vst.msk [vmem:[#allocation2 + $0x38] sm:$0xf] %vm620, 0.0
        %628 = vst.msk [vmem:[#allocation2 + $0x40] sm:$0xff] %vm618, 0.0
        %629 = vst.msk [vmem:[#allocation2 + $0x48] sm:$0xf] %vm620, 0.0
        %630 = vst.msk [vmem:[#allocation2 + $0x50] sm:$0xff] %vm618, 0.0
        %631 = vst.msk [vmem:[#allocation2 + $0x58] sm:$0xf] %vm620, 0.0
        %632 = vst.msk [vmem:[#allocation2 + $0x60] sm:$0xff] %vm618, 0.0
        %633 = vst.msk [vmem:[#allocation2 + $0x68] sm:$0xf] %vm620, 0.0
        %634 = vst.msk [vmem:[#allocation2 + $0x70] sm:$0xff] %vm618, 0.0
        %635 = vst.msk [vmem:[#allocation2 + $0x78] sm:$0xf] %vm620, 0.0
        %vm636 = vcmask 146568
        %637 = vst.msk [vmem:[#allocation2] sm:$0xff] %vm636, 0.0
        %vm638 = vcmask 142472
        %639 = vst.msk [vmem:[#allocation2 + $0x8] sm:$0xf] %vm638, 0.0
        %640 = vst.msk [vmem:[#allocation2 + $0x10] sm:$0xff] %vm636, 0.0
        %641 = vst.msk [vmem:[#allocation2 + $0x18] sm:$0xf] %vm638, 0.0
        %642 = vst.msk [vmem:[#allocation2 + $0x20] sm:$0xff] %vm636, 0.0
        %643 = vst.msk [vmem:[#allocation2 + $0x28] sm:$0xf] %vm638, 0.0
        %644 = vst.msk [vmem:[#allocation2 + $0x30] sm:$0xff] %vm636, 0.0
        %645 = vst.msk [vmem:[#allocation2 + $0x38] sm:$0xf] %vm638, 0.0
        %646 = vst.msk [vmem:[#allocation2 + $0x40] sm:$0xff] %vm636, 0.0
        %647 = vst.msk [vmem:[#allocation2 + $0x48] sm:$0xf] %vm638, 0.0
        %648 = vst.msk [vmem:[#allocation2 + $0x50] sm:$0xff] %vm636, 0.0
        %649 = vst.msk [vmem:[#allocation2 + $0x58] sm:$0xf] %vm638, 0.0
        %650 = vst.msk [vmem:[#allocation2 + $0x60] sm:$0xff] %vm636, 0.0
        %651 = vst.msk [vmem:[#allocation2 + $0x68] sm:$0xf] %vm638, 0.0
        %652 = vst.msk [vmem:[#allocation2 + $0x70] sm:$0xff] %vm636, 0.0
        %653 = vst.msk [vmem:[#allocation2 + $0x78] sm:$0xf] %vm638, 0.0
        %v654 = vld [vmem:[%s546] sm:$0xff]
        %v655 = vld [vmem:[%s546 + $0x8] sm:$0xff]
        %v656 = vld [vmem:[%s546 + $0x10] sm:$0xff]
        %v657 = vld [vmem:[%s546 + $0x18] sm:$0xff]
        %v658 = vld [vmem:[%s546 + $0x20] sm:$0xff]
        %v659 = vld [vmem:[%s546 + $0x28] sm:$0xff]
        %v660 = vld [vmem:[%s546 + $0x30] sm:$0xff]
        %v661 = vld [vmem:[%s546 + $0x38] sm:$0xff]
        %670 = vrot.lane.b32.xlu0 %v654, 1
        %v671 = vpop.permute.xlu0 %670
        %672 = vrot.lane.b32.xlu0 %v655, 1
        %v673 = vpop.permute.xlu0 %672
        %674 = vrot.lane.b32.xlu0 %v656, 1
        %v675 = vpop.permute.xlu0 %674
        %676 = vrot.lane.b32.xlu0 %v657, 1
        %v677 = vpop.permute.xlu0 %676
        %678 = vrot.lane.b32.xlu0 %v658, 1
        %v679 = vpop.permute.xlu0 %678
        %680 = vrot.lane.b32.xlu0 %v659, 1
        %v681 = vpop.permute.xlu0 %680
        %682 = vrot.lane.b32.xlu0 %v660, 1
        %v683 = vpop.permute.xlu0 %682
        %684 = vrot.lane.b32.xlu0 %v661, 1
        %v685 = vpop.permute.xlu0 %684
        %vm694 = vcmask 138248
        %695 = vst.msk [vmem:[#allocation2 + $0x2] sm:$0xff] %vm694, %v671
        %696 = vst.msk [vmem:[#allocation2 + $0x12] sm:$0xff] %vm694, %v673
        %697 = vst.msk [vmem:[#allocation2 + $0x22] sm:$0xff] %vm694, %v675
        %698 = vst.msk [vmem:[#allocation2 + $0x32] sm:$0xff] %vm694, %v677
        %699 = vst.msk [vmem:[#allocation2 + $0x42] sm:$0xff] %vm694, %v679
        %700 = vst.msk [vmem:[#allocation2 + $0x52] sm:$0xff] %vm694, %v681
        %701 = vst.msk [vmem:[#allocation2 + $0x62] sm:$0xff] %vm694, %v683
        %702 = vst.msk [vmem:[#allocation2 + $0x72] sm:$0xff] %vm694, %v685
        %p703 = scmp.gt.s32.totalorder %s25, 0
        // Predicated region
        $region171: #{bottleneck_forward.1} parent=157 // pred_check
          %p704 = pneg %p703
        $region172: #{bottleneck_forward.1} parent=157 // pred_check_branch
          %706 = sbr.rel (%p704) target = $region174
        $region173: #{bottleneck_forward.1} parent=157 // pred_region
          %v707 = vld [vmem:[%s553 + $0x6] sm:$0x3]
          %v708 = vld [vmem:[%s553 + $0xe] sm:$0x3]
          %v709 = vld [vmem:[%s553 + $0x16] sm:$0x3]
          %v710 = vld [vmem:[%s553 + $0x1e] sm:$0x3]
          %v711 = vld [vmem:[%s553 + $0x26] sm:$0x3]
          %v712 = vld [vmem:[%s553 + $0x2e] sm:$0x3]
          %v713 = vld [vmem:[%s553 + $0x36] sm:$0x3]
          %v714 = vld [vmem:[%s553 + $0x3e] sm:$0x3]
          %723 = vrot.lane.b32.xlu0 %v707, 1
          %v724 = vpop.permute.xlu0 %723
          %725 = vrot.lane.b32.xlu0 %v708, 1
          %v726 = vpop.permute.xlu0 %725
          %727 = vrot.lane.b32.xlu0 %v709, 1
          %v728 = vpop.permute.xlu0 %727
          %729 = vrot.lane.b32.xlu0 %v710, 1
          %v730 = vpop.permute.xlu0 %729
          %731 = vrot.lane.b32.xlu0 %v711, 1
          %v732 = vpop.permute.xlu0 %731
          %733 = vrot.lane.b32.xlu0 %v712, 1
          %v734 = vpop.permute.xlu0 %733
          %735 = vrot.lane.b32.xlu0 %v713, 1
          %v736 = vpop.permute.xlu0 %735
          %737 = vrot.lane.b32.xlu0 %v714, 1
          %v738 = vpop.permute.xlu0 %737
          %vm747 = vcmask 132104
          %748 = vst.msk [vmem:[#allocation2] sm:$0x3] %vm747, %v724
          %749 = vst.msk [vmem:[#allocation2 + $0x10] sm:$0x3] %vm747, %v726
          %750 = vst.msk [vmem:[#allocation2 + $0x20] sm:$0x3] %vm747, %v728
          %751 = vst.msk [vmem:[#allocation2 + $0x30] sm:$0x3] %vm747, %v730
          %752 = vst.msk [vmem:[#allocation2 + $0x40] sm:$0x3] %vm747, %v732
          %753 = vst.msk [vmem:[#allocation2 + $0x50] sm:$0x3] %vm747, %v734
          %754 = vst.msk [vmem:[#allocation2 + $0x60] sm:$0x3] %vm747, %v736
          %755 = vst.msk [vmem:[#allocation2 + $0x70] sm:$0x3] %vm747, %v738
        $region174: #{bottleneck_forward.1} parent=157 // pred_fallthru
          _
        %p756 = scmp.eq.s32.totalorder %s25, 0
        // Predicated region
        $region175: #{bottleneck_forward.1} parent=157 // pred_check
          %p757 = pneg %p756
        $region176: #{bottleneck_forward.1} parent=157 // pred_check_branch
          %759 = sbr.rel (%p757) target = $region178
        $region177: #{bottleneck_forward.1} parent=157 // pred_region
          %vm760 = vcmask 132104
          %761 = vst.msk [vmem:[#allocation2] sm:$0x3] %vm760, 0.0
          %762 = vst.msk [vmem:[#allocation2 + $0x10] sm:$0x3] %vm760, 0.0
          %763 = vst.msk [vmem:[#allocation2 + $0x20] sm:$0x3] %vm760, 0.0
          %764 = vst.msk [vmem:[#allocation2 + $0x30] sm:$0x3] %vm760, 0.0
          %765 = vst.msk [vmem:[#allocation2 + $0x40] sm:$0x3] %vm760, 0.0
          %766 = vst.msk [vmem:[#allocation2 + $0x50] sm:$0x3] %vm760, 0.0
          %767 = vst.msk [vmem:[#allocation2 + $0x60] sm:$0x3] %vm760, 0.0
          %768 = vst.msk [vmem:[#allocation2 + $0x70] sm:$0x3] %vm760, 0.0
        $region178: #{bottleneck_forward.1} parent=157 // pred_fallthru
          _
        %p769 = scmp.lt.s32.totalorder %s25, 1
        // Predicated region
        $region179: #{bottleneck_forward.1} parent=157 // pred_check
          %p770 = pneg %p769
        $region180: #{bottleneck_forward.1} parent=157 // pred_check_branch
          %772 = sbr.rel (%p770) target = $region182
        $region181: #{bottleneck_forward.1} parent=157 // pred_region
          %v773 = vld [vmem:[%s560] sm:$0x3]
          %v774 = vld [vmem:[%s560 + $0x8] sm:$0x3]
          %v775 = vld [vmem:[%s560 + $0x10] sm:$0x3]
          %v776 = vld [vmem:[%s560 + $0x18] sm:$0x3]
          %v777 = vld [vmem:[%s560 + $0x20] sm:$0x3]
          %v778 = vld [vmem:[%s560 + $0x28] sm:$0x3]
          %v779 = vld [vmem:[%s560 + $0x30] sm:$0x3]
          %v780 = vld [vmem:[%s560 + $0x38] sm:$0x3]
          %789 = vrot.lane.b32.xlu0 %v773, 1
          %v790 = vpop.permute.xlu0 %789
          %791 = vrot.lane.b32.xlu0 %v774, 1
          %v792 = vpop.permute.xlu0 %791
          %793 = vrot.lane.b32.xlu0 %v775, 1
          %v794 = vpop.permute.xlu0 %793
          %795 = vrot.lane.b32.xlu0 %v776, 1
          %v796 = vpop.permute.xlu0 %795
          %797 = vrot.lane.b32.xlu0 %v777, 1
          %v798 = vpop.permute.xlu0 %797
          %799 = vrot.lane.b32.xlu0 %v778, 1
          %v800 = vpop.permute.xlu0 %799
          %801 = vrot.lane.b32.xlu0 %v779, 1
          %v802 = vpop.permute.xlu0 %801
          %803 = vrot.lane.b32.xlu0 %v780, 1
          %v804 = vpop.permute.xlu0 %803
          %vm813 = vcmask 132104
          %814 = vst.msk [vmem:[#allocation2 + $0xa] sm:$0x3] %vm813, %v790
          %815 = vst.msk [vmem:[#allocation2 + $0x1a] sm:$0x3] %vm813, %v792
          %816 = vst.msk [vmem:[#allocation2 + $0x2a] sm:$0x3] %vm813, %v794
          %817 = vst.msk [vmem:[#allocation2 + $0x3a] sm:$0x3] %vm813, %v796
          %818 = vst.msk [vmem:[#allocation2 + $0x4a] sm:$0x3] %vm813, %v798
          %819 = vst.msk [vmem:[#allocation2 + $0x5a] sm:$0x3] %vm813, %v800
          %820 = vst.msk [vmem:[#allocation2 + $0x6a] sm:$0x3] %vm813, %v802
          %821 = vst.msk [vmem:[#allocation2 + $0x7a] sm:$0x3] %vm813, %v804
        $region182: #{bottleneck_forward.1} parent=157 // pred_fallthru
          _
        %p822 = scmp.eq.s32.totalorder %s25, 1
        // Predicated region
        $region183: #{bottleneck_forward.1} parent=157 // pred_check
          %p823 = pneg %p822
        $region184: #{bottleneck_forward.1} parent=157 // pred_check_branch
          %825 = sbr.rel (%p823) target = $region186
        $region185: #{bottleneck_forward.1} parent=157 // pred_region
          %vm826 = vcmask 132104
          %827 = vst.msk [vmem:[#allocation2 + $0xa] sm:$0x3] %vm826, 0.0
          %828 = vst.msk [vmem:[#allocation2 + $0x1a] sm:$0x3] %vm826, 0.0
          %829 = vst.msk [vmem:[#allocation2 + $0x2a] sm:$0x3] %vm826, 0.0
          %830 = vst.msk [vmem:[#allocation2 + $0x3a] sm:$0x3] %vm826, 0.0
          %831 = vst.msk [vmem:[#allocation2 + $0x4a] sm:$0x3] %vm826, 0.0
          %832 = vst.msk [vmem:[#allocation2 + $0x5a] sm:$0x3] %vm826, 0.0
          %833 = vst.msk [vmem:[#allocation2 + $0x6a] sm:$0x3] %vm826, 0.0
          %834 = vst.msk [vmem:[#allocation2 + $0x7a] sm:$0x3] %vm826, 0.0
        $region186: #{bottleneck_forward.1} parent=157 // pred_fallthru
          _
        %v835 = vld [vmem:[#allocation2] sm:$0xff]
        %v836 = vld [vmem:[#allocation2 + $0x8] sm:$0x3]
        %v837 = vld [vmem:[#allocation2 + $0x10] sm:$0xff]
        %v838 = vld [vmem:[#allocation2 + $0x18] sm:$0x3]
        %v839 = vld [vmem:[#allocation2 + $0x20] sm:$0xff]
        %v840 = vld [vmem:[#allocation2 + $0x28] sm:$0x3]
        %v841 = vld [vmem:[#allocation2 + $0x30] sm:$0xff]
        %v842 = vld [vmem:[#allocation2 + $0x38] sm:$0x3]
        %v843 = vld [vmem:[#allocation2 + $0x40] sm:$0xff]
        %v844 = vld [vmem:[#allocation2 + $0x48] sm:$0x3]
        %v845 = vld [vmem:[#allocation2 + $0x50] sm:$0xff]
        %v846 = vld [vmem:[#allocation2 + $0x58] sm:$0x3]
        %v847 = vld [vmem:[#allocation2 + $0x60] sm:$0xff]
        %v848 = vld [vmem:[#allocation2 + $0x68] sm:$0x3]
        %v849 = vld [vmem:[#allocation2 + $0x70] sm:$0xff]
        %v850 = vld [vmem:[#allocation2 + $0x78] sm:$0x3]
        %v851 = vrot.slane %v839, 4
        %vm852 = vcmask 1047556
        %v853 = vsel %vm852, %v851, %v835
        %v854 = vrot.slane %v835, 4
        %v855 = vsel %vm852, %v839, %v854
        %v857 = vunpack.c.l.s4 1983009808
        %v858 = vunpack.c.0.s8 %v857
        %v859 = vperm.slane %v853, %v858
        %v861 = vunpack.c.l.s4 1983009808
        %v862 = vunpack.c.0.s8 %v861
        %v863 = vperm.slane %v855, %v862
        %v864 = vrot.slane %v841, 4
        %v865 = vsel %vm852, %v864, %v837
        %v866 = vrot.slane %v837, 4
        %v867 = vsel %vm852, %v841, %v866
        %v869 = vunpack.c.l.s4 1983009808
        %v870 = vunpack.c.0.s8 %v869
        %v871 = vperm.slane %v865, %v870
        %v873 = vunpack.c.l.s4 1983009808
        %v874 = vunpack.c.0.s8 %v873
        %v875 = vperm.slane %v867, %v874
        %v876 = vrot.slane %v847, 4
        %v877 = vsel %vm852, %v876, %v843
        %v878 = vrot.slane %v843, 4
        %v879 = vsel %vm852, %v847, %v878
        %v881 = vunpack.c.l.s4 1983009808
        %v882 = vunpack.c.0.s8 %v881
        %v883 = vperm.slane %v877, %v882
        %v885 = vunpack.c.l.s4 1983009808
        %v886 = vunpack.c.0.s8 %v885
        %v887 = vperm.slane %v879, %v886
        %v888 = vrot.slane %v849, 4
        %v889 = vsel %vm852, %v888, %v845
        %v890 = vrot.slane %v845, 4
        %v891 = vsel %vm852, %v849, %v890
        %v893 = vunpack.c.l.s4 1983009808
        %v894 = vunpack.c.0.s8 %v893
        %v895 = vperm.slane %v889, %v894
        %v897 = vunpack.c.l.s4 1983009808
        %v898 = vunpack.c.0.s8 %v897
        %v899 = vperm.slane %v891, %v898
        %v900 = vrot.slane %v871, 4
        %v901 = vsel %vm852, %v900, %v859
        %v902 = vrot.slane %v859, 4
        %v903 = vsel %vm852, %v871, %v902
        %v905 = vunpack.c.l.s4 1934713408
        %v906 = vunpack.c.0.s8 %v905
        %v907 = vperm.slane %v901, %v906
        %v909 = vunpack.c.l.s4 1934713408
        %v910 = vunpack.c.0.s8 %v909
        %v911 = vperm.slane %v903, %v910
        %v912 = vrot.slane %v875, 4
        %v913 = vsel %vm852, %v912, %v863
        %v914 = vrot.slane %v863, 4
        %v915 = vsel %vm852, %v875, %v914
        %v917 = vunpack.c.l.s4 1934713408
        %v918 = vunpack.c.0.s8 %v917
        %v919 = vperm.slane %v913, %v918
        %v921 = vunpack.c.l.s4 1934713408
        %v922 = vunpack.c.0.s8 %v921
        %v923 = vperm.slane %v915, %v922
        %v924 = vrot.slane %v895, 4
        %v925 = vsel %vm852, %v924, %v883
        %v926 = vrot.slane %v883, 4
        %v927 = vsel %vm852, %v895, %v926
        %v929 = vunpack.c.l.s4 1934713408
        %v930 = vunpack.c.0.s8 %v929
        %v931 = vperm.slane %v925, %v930
        %v933 = vunpack.c.l.s4 1934713408
        %v934 = vunpack.c.0.s8 %v933
        %v935 = vperm.slane %v927, %v934
        %v936 = vrot.slane %v899, 4
        %v937 = vsel %vm852, %v936, %v887
        %v938 = vrot.slane %v887, 4
        %v939 = vsel %vm852, %v899, %v938
        %v941 = vunpack.c.l.s4 1934713408
        %v942 = vunpack.c.0.s8 %v941
        %v943 = vperm.slane %v937, %v942
        %v945 = vunpack.c.l.s4 1934713408
        %v946 = vunpack.c.0.s8 %v945
        %v947 = vperm.slane %v939, %v946
        %v948 = vrot.slane %v931, 4
        %v949 = vsel %vm852, %v948, %v907
        %v950 = vrot.slane %v907, 4
        %v951 = vsel %vm852, %v931, %v950
        %v952 = vrot.slane %v935, 4
        %v953 = vsel %vm852, %v952, %v911
        %v954 = vrot.slane %v911, 4
        %v955 = vsel %vm852, %v935, %v954
        %v956 = vrot.slane %v943, 4
        %v957 = vsel %vm852, %v956, %v919
        %v958 = vrot.slane %v919, 4
        %v959 = vsel %vm852, %v943, %v958
        %v960 = vrot.slane %v947, 4
        %v961 = vsel %vm852, %v960, %v923
        %v962 = vrot.slane %v923, 4
        %v963 = vsel %vm852, %v947, %v962
        %v964 = vrot.slane %v840, 4
        %v965 = vsel %vm852, %v964, %v836
        %v967 = vunpack.c.l.s4 1983009808
        %v968 = vunpack.c.0.s8 %v967
        %v969 = vperm.slane %v965, %v968
        %v970 = vrot.slane %v842, 4
        %v971 = vsel %vm852, %v970, %v838
        %v973 = vunpack.c.l.s4 1983009808
        %v974 = vunpack.c.0.s8 %v973
        %v975 = vperm.slane %v971, %v974
        %v976 = vrot.slane %v848, 4
        %v977 = vsel %vm852, %v976, %v844
        %v979 = vunpack.c.l.s4 1983009808
        %v980 = vunpack.c.0.s8 %v979
        %v981 = vperm.slane %v977, %v980
        %v982 = vrot.slane %v850, 4
        %v983 = vsel %vm852, %v982, %v846
        %v985 = vunpack.c.l.s4 1983009808
        %v986 = vunpack.c.0.s8 %v985
        %v987 = vperm.slane %v983, %v986
        %v988 = vrot.slane %v975, 4
        %v989 = vsel %vm852, %v988, %v969
        %v991 = vunpack.c.l.s4 1934713408
        %v992 = vunpack.c.0.s8 %v991
        %v993 = vperm.slane %v989, %v992
        %v994 = vrot.slane %v987, 4
        %v995 = vsel %vm852, %v994, %v981
        %v997 = vunpack.c.l.s4 1934713408
        %v998 = vunpack.c.0.s8 %v997
        %v999 = vperm.slane %v995, %v998
        %v1000 = vrot.slane %v999, 4
        %v1001 = vsel %vm852, %v1000, %v993
        %v1002 = vrot.slane %v993, 4
        %v1003 = vsel %vm852, %v999, %v1002
        %1005 = vrot.lane.b32.xlu0 %v951, 16
        %v1006 = vpop.permute.xlu0 %1005
        %1009 = vrot.lane.b32.xlu0 %v953, 32
        %v1010 = vpop.permute.xlu0 %1009
        %1013 = vrot.lane.b32.xlu0 %v955, 48
        %v1014 = vpop.permute.xlu0 %1013
        %1017 = vrot.lane.b32.xlu0 %v957, 64
        %v1018 = vpop.permute.xlu0 %1017
        %1021 = vrot.lane.b32.xlu0 %v959, 80
        %v1022 = vpop.permute.xlu0 %1021
        %1025 = vrot.lane.b32.xlu0 %v961, 96
        %v1026 = vpop.permute.xlu0 %1025
        %1029 = vrot.lane.b32.xlu0 %v963, 112
        %v1030 = vpop.permute.xlu0 %1029
        %1033 = vrot.lane.b32.xlu0 %v1003, 16
        %v1034 = vpop.permute.xlu0 %1033
        %vm1036 = vcmask 130048
        %v1037 = vsel %vm1036, %v949, %v1006
        %vm1038 = vcmask 261120
        %v1039 = vsel %vm1038, %v1037, %v1010
        %vm1040 = vcmask 392192
        %v1041 = vsel %vm1040, %v1039, %v1014
        %vm1042 = vcmask 523264
        %v1043 = vsel %vm1042, %v1041, %v1018
        %vm1044 = vcmask 654336
        %v1045 = vsel %vm1044, %v1043, %v1022
        %vm1046 = vcmask 785408
        %v1047 = vsel %vm1046, %v1045, %v1026
        %vm1048 = vcmask 916480
        %v1049 = vsel %vm1048, %v1047, %v1030
        %v1050 = vsel %vm1036, %v1001, %v1034
        %1067 = vrot.lane.b32.xlu0 %v835, 127
        %v1068 = vpop.permute.xlu0 %1067
        %1069 = vrot.lane.b32.xlu0 %v836, 127
        %v1070 = vpop.permute.xlu0 %1069
        %1071 = vrot.lane.b32.xlu0 %v837, 127
        %v1072 = vpop.permute.xlu0 %1071
        %1073 = vrot.lane.b32.xlu0 %v838, 127
        %v1074 = vpop.permute.xlu0 %1073
        %1075 = vrot.lane.b32.xlu0 %v839, 127
        %v1076 = vpop.permute.xlu0 %1075
        %1077 = vrot.lane.b32.xlu0 %v840, 127
        %v1078 = vpop.permute.xlu0 %1077
        %1079 = vrot.lane.b32.xlu0 %v841, 127
        %v1080 = vpop.permute.xlu0 %1079
        %1081 = vrot.lane.b32.xlu0 %v842, 127
        %v1082 = vpop.permute.xlu0 %1081
        %1083 = vrot.lane.b32.xlu0 %v843, 127
        %v1084 = vpop.permute.xlu0 %1083
        %1085 = vrot.lane.b32.xlu0 %v844, 127
        %v1086 = vpop.permute.xlu0 %1085
        %1087 = vrot.lane.b32.xlu0 %v845, 127
        %v1088 = vpop.permute.xlu0 %1087
        %1089 = vrot.lane.b32.xlu0 %v846, 127
        %v1090 = vpop.permute.xlu0 %1089
        %1091 = vrot.lane.b32.xlu0 %v847, 127
        %v1092 = vpop.permute.xlu0 %1091
        %1093 = vrot.lane.b32.xlu0 %v848, 127
        %v1094 = vpop.permute.xlu0 %1093
        %1095 = vrot.lane.b32.xlu0 %v849, 127
        %v1096 = vpop.permute.xlu0 %1095
        %1097 = vrot.lane.b32.xlu0 %v850, 127
        %v1098 = vpop.permute.xlu0 %1097
        %v1115 = vrot.slane %v1076, 4
        %v1116 = vsel %vm852, %v1115, %v1068
        %v1117 = vrot.slane %v1068, 4
        %v1118 = vsel %vm852, %v1076, %v1117
        %v1120 = vunpack.c.l.s4 1983009808
        %v1121 = vunpack.c.0.s8 %v1120
        %v1122 = vperm.slane %v1116, %v1121
        %v1124 = vunpack.c.l.s4 1983009808
        %v1125 = vunpack.c.0.s8 %v1124
        %v1126 = vperm.slane %v1118, %v1125
        %v1127 = vrot.slane %v1080, 4
        %v1128 = vsel %vm852, %v1127, %v1072
        %v1129 = vrot.slane %v1072, 4
        %v1130 = vsel %vm852, %v1080, %v1129
        %v1132 = vunpack.c.l.s4 1983009808
        %v1133 = vunpack.c.0.s8 %v1132
        %v1134 = vperm.slane %v1128, %v1133
        %v1136 = vunpack.c.l.s4 1983009808
        %v1137 = vunpack.c.0.s8 %v1136
        %v1138 = vperm.slane %v1130, %v1137
        %v1139 = vrot.slane %v1092, 4
        %v1140 = vsel %vm852, %v1139, %v1084
        %v1141 = vrot.slane %v1084, 4
        %v1142 = vsel %vm852, %v1092, %v1141
        %v1144 = vunpack.c.l.s4 1983009808
        %v1145 = vunpack.c.0.s8 %v1144
        %v1146 = vperm.slane %v1140, %v1145
        %v1148 = vunpack.c.l.s4 1983009808
        %v1149 = vunpack.c.0.s8 %v1148
        %v1150 = vperm.slane %v1142, %v1149
        %v1151 = vrot.slane %v1096, 4
        %v1152 = vsel %vm852, %v1151, %v1088
        %v1153 = vrot.slane %v1088, 4
        %v1154 = vsel %vm852, %v1096, %v1153
        %v1156 = vunpack.c.l.s4 1983009808
        %v1157 = vunpack.c.0.s8 %v1156
        %v1158 = vperm.slane %v1152, %v1157
        %v1160 = vunpack.c.l.s4 1983009808
        %v1161 = vunpack.c.0.s8 %v1160
        %v1162 = vperm.slane %v1154, %v1161
        %v1163 = vrot.slane %v1134, 4
        %v1164 = vsel %vm852, %v1163, %v1122
        %v1165 = vrot.slane %v1122, 4
        %v1166 = vsel %vm852, %v1134, %v1165
        %v1168 = vunpack.c.l.s4 1934713408
        %v1169 = vunpack.c.0.s8 %v1168
        %v1170 = vperm.slane %v1164, %v1169
        %v1172 = vunpack.c.l.s4 1934713408
        %v1173 = vunpack.c.0.s8 %v1172
        %v1174 = vperm.slane %v1166, %v1173
        %v1175 = vrot.slane %v1138, 4
        %v1176 = vsel %vm852, %v1175, %v1126
        %v1177 = vrot.slane %v1126, 4
        %v1178 = vsel %vm852, %v1138, %v1177
        %v1180 = vunpack.c.l.s4 1934713408
        %v1181 = vunpack.c.0.s8 %v1180
        %v1182 = vperm.slane %v1176, %v1181
        %v1184 = vunpack.c.l.s4 1934713408
        %v1185 = vunpack.c.0.s8 %v1184
        %v1186 = vperm.slane %v1178, %v1185
        %v1187 = vrot.slane %v1158, 4
        %v1188 = vsel %vm852, %v1187, %v1146
        %v1189 = vrot.slane %v1146, 4
        %v1190 = vsel %vm852, %v1158, %v1189
        %v1192 = vunpack.c.l.s4 1934713408
        %v1193 = vunpack.c.0.s8 %v1192
        %v1194 = vperm.slane %v1188, %v1193
        %v1196 = vunpack.c.l.s4 1934713408
        %v1197 = vunpack.c.0.s8 %v1196
        %v1198 = vperm.slane %v1190, %v1197
        %v1199 = vrot.slane %v1162, 4
        %v1200 = vsel %vm852, %v1199, %v1150
        %v1201 = vrot.slane %v1150, 4
        %v1202 = vsel %vm852, %v1162, %v1201
        %v1204 = vunpack.c.l.s4 1934713408
        %v1205 = vunpack.c.0.s8 %v1204
        %v1206 = vperm.slane %v1200, %v1205
        %v1208 = vunpack.c.l.s4 1934713408
        %v1209 = vunpack.c.0.s8 %v1208
        %v1210 = vperm.slane %v1202, %v1209
        %v1211 = vrot.slane %v1194, 4
        %v1212 = vsel %vm852, %v1211, %v1170
        %v1213 = vrot.slane %v1170, 4
        %v1214 = vsel %vm852, %v1194, %v1213
        %v1215 = vrot.slane %v1198, 4
        %v1216 = vsel %vm852, %v1215, %v1174
        %v1217 = vrot.slane %v1174, 4
        %v1218 = vsel %vm852, %v1198, %v1217
        %v1219 = vrot.slane %v1206, 4
        %v1220 = vsel %vm852, %v1219, %v1182
        %v1221 = vrot.slane %v1182, 4
        %v1222 = vsel %vm852, %v1206, %v1221
        %v1223 = vrot.slane %v1210, 4
        %v1224 = vsel %vm852, %v1223, %v1186
        %v1225 = vrot.slane %v1186, 4
        %v1226 = vsel %vm852, %v1210, %v1225
        %v1227 = vrot.slane %v1078, 4
        %v1228 = vsel %vm852, %v1227, %v1070
        %v1230 = vunpack.c.l.s4 1983009808
        %v1231 = vunpack.c.0.s8 %v1230
        %v1232 = vperm.slane %v1228, %v1231
        %v1233 = vrot.slane %v1082, 4
        %v1234 = vsel %vm852, %v1233, %v1074
        %v1236 = vunpack.c.l.s4 1983009808
        %v1237 = vunpack.c.0.s8 %v1236
        %v1238 = vperm.slane %v1234, %v1237
        %v1239 = vrot.slane %v1094, 4
        %v1240 = vsel %vm852, %v1239, %v1086
        %v1242 = vunpack.c.l.s4 1983009808
        %v1243 = vunpack.c.0.s8 %v1242
        %v1244 = vperm.slane %v1240, %v1243
        %v1245 = vrot.slane %v1098, 4
        %v1246 = vsel %vm852, %v1245, %v1090
        %v1248 = vunpack.c.l.s4 1983009808
        %v1249 = vunpack.c.0.s8 %v1248
        %v1250 = vperm.slane %v1246, %v1249
        %v1251 = vrot.slane %v1238, 4
        %v1252 = vsel %vm852, %v1251, %v1232
        %v1254 = vunpack.c.l.s4 1934713408
        %v1255 = vunpack.c.0.s8 %v1254
        %v1256 = vperm.slane %v1252, %v1255
        %v1257 = vrot.slane %v1250, 4
        %v1258 = vsel %vm852, %v1257, %v1244
        %v1260 = vunpack.c.l.s4 1934713408
        %v1261 = vunpack.c.0.s8 %v1260
        %v1262 = vperm.slane %v1258, %v1261
        %v1263 = vrot.slane %v1262, 4
        %v1264 = vsel %vm852, %v1263, %v1256
        %v1265 = vrot.slane %v1256, 4
        %v1266 = vsel %vm852, %v1262, %v1265
        %1268 = vrot.lane.b32.xlu0 %v1214, 16
        %v1269 = vpop.permute.xlu0 %1268
        %1272 = vrot.lane.b32.xlu0 %v1216, 32
        %v1273 = vpop.permute.xlu0 %1272
        %1276 = vrot.lane.b32.xlu0 %v1218, 48
        %v1277 = vpop.permute.xlu0 %1276
        %1280 = vrot.lane.b32.xlu0 %v1220, 64
        %v1281 = vpop.permute.xlu0 %1280
        %1284 = vrot.lane.b32.xlu0 %v1222, 80
        %v1285 = vpop.permute.xlu0 %1284
        %1288 = vrot.lane.b32.xlu0 %v1224, 96
        %v1289 = vpop.permute.xlu0 %1288
        %1292 = vrot.lane.b32.xlu0 %v1226, 112
        %v1293 = vpop.permute.xlu0 %1292
        %1296 = vrot.lane.b32.xlu0 %v1266, 16
        %v1297 = vpop.permute.xlu0 %1296
        %v1299 = vsel %vm1036, %v1212, %v1269
        %v1300 = vsel %vm1038, %v1299, %v1273
        %v1301 = vsel %vm1040, %v1300, %v1277
        %v1302 = vsel %vm1042, %v1301, %v1281
        %v1303 = vsel %vm1044, %v1302, %v1285
        %v1304 = vsel %vm1046, %v1303, %v1289
        %v1305 = vsel %vm1048, %v1304, %v1293
        %v1306 = vsel %vm1036, %v1264, %v1297
        %1307 = vrot.lane.b32.xlu0 %v835, 126
        %v1308 = vpop.permute.xlu0 %1307
        %1309 = vrot.lane.b32.xlu0 %v836, 126
        %v1310 = vpop.permute.xlu0 %1309
        %1311 = vrot.lane.b32.xlu0 %v837, 126
        %v1312 = vpop.permute.xlu0 %1311
        %1313 = vrot.lane.b32.xlu0 %v838, 126
        %v1314 = vpop.permute.xlu0 %1313
        %1315 = vrot.lane.b32.xlu0 %v839, 126
        %v1316 = vpop.permute.xlu0 %1315
        %1317 = vrot.lane.b32.xlu0 %v840, 126
        %v1318 = vpop.permute.xlu0 %1317
        %1319 = vrot.lane.b32.xlu0 %v841, 126
        %v1320 = vpop.permute.xlu0 %1319
        %1321 = vrot.lane.b32.xlu0 %v842, 126
        %v1322 = vpop.permute.xlu0 %1321
        %1323 = vrot.lane.b32.xlu0 %v843, 126
        %v1324 = vpop.permute.xlu0 %1323
        %1325 = vrot.lane.b32.xlu0 %v844, 126
        %v1326 = vpop.permute.xlu0 %1325
        %1327 = vrot.lane.b32.xlu0 %v845, 126
        %v1328 = vpop.permute.xlu0 %1327
        %1329 = vrot.lane.b32.xlu0 %v846, 126
        %v1330 = vpop.permute.xlu0 %1329
        %1331 = vrot.lane.b32.xlu0 %v847, 126
        %v1332 = vpop.permute.xlu0 %1331
        %1333 = vrot.lane.b32.xlu0 %v848, 126
        %v1334 = vpop.permute.xlu0 %1333
        %1335 = vrot.lane.b32.xlu0 %v849, 126
        %v1336 = vpop.permute.xlu0 %1335
        %1337 = vrot.lane.b32.xlu0 %v850, 126
        %v1338 = vpop.permute.xlu0 %1337
        %v1355 = vrot.slane %v1316, 4
        %v1356 = vsel %vm852, %v1355, %v1308
        %v1357 = vrot.slane %v1308, 4
        %v1358 = vsel %vm852, %v1316, %v1357
        %v1360 = vunpack.c.l.s4 1983009808
        %v1361 = vunpack.c.0.s8 %v1360
        %v1362 = vperm.slane %v1356, %v1361
        %v1364 = vunpack.c.l.s4 1983009808
        %v1365 = vunpack.c.0.s8 %v1364
        %v1366 = vperm.slane %v1358, %v1365
        %v1367 = vrot.slane %v1320, 4
        %v1368 = vsel %vm852, %v1367, %v1312
        %v1369 = vrot.slane %v1312, 4
        %v1370 = vsel %vm852, %v1320, %v1369
        %v1372 = vunpack.c.l.s4 1983009808
        %v1373 = vunpack.c.0.s8 %v1372
        %v1374 = vperm.slane %v1368, %v1373
        %v1376 = vunpack.c.l.s4 1983009808
        %v1377 = vunpack.c.0.s8 %v1376
        %v1378 = vperm.slane %v1370, %v1377
        %v1379 = vrot.slane %v1332, 4
        %v1380 = vsel %vm852, %v1379, %v1324
        %v1381 = vrot.slane %v1324, 4
        %v1382 = vsel %vm852, %v1332, %v1381
        %v1384 = vunpack.c.l.s4 1983009808
        %v1385 = vunpack.c.0.s8 %v1384
        %v1386 = vperm.slane %v1380, %v1385
        %v1388 = vunpack.c.l.s4 1983009808
        %v1389 = vunpack.c.0.s8 %v1388
        %v1390 = vperm.slane %v1382, %v1389
        %v1391 = vrot.slane %v1336, 4
        %v1392 = vsel %vm852, %v1391, %v1328
        %v1393 = vrot.slane %v1328, 4
        %v1394 = vsel %vm852, %v1336, %v1393
        %v1396 = vunpack.c.l.s4 1983009808
        %v1397 = vunpack.c.0.s8 %v1396
        %v1398 = vperm.slane %v1392, %v1397
        %v1400 = vunpack.c.l.s4 1983009808
        %v1401 = vunpack.c.0.s8 %v1400
        %v1402 = vperm.slane %v1394, %v1401
        %v1403 = vrot.slane %v1374, 4
        %v1404 = vsel %vm852, %v1403, %v1362
        %v1405 = vrot.slane %v1362, 4
        %v1406 = vsel %vm852, %v1374, %v1405
        %v1408 = vunpack.c.l.s4 1934713408
        %v1409 = vunpack.c.0.s8 %v1408
        %v1410 = vperm.slane %v1404, %v1409
        %v1412 = vunpack.c.l.s4 1934713408
        %v1413 = vunpack.c.0.s8 %v1412
        %v1414 = vperm.slane %v1406, %v1413
        %v1415 = vrot.slane %v1378, 4
        %v1416 = vsel %vm852, %v1415, %v1366
        %v1417 = vrot.slane %v1366, 4
        %v1418 = vsel %vm852, %v1378, %v1417
        %v1420 = vunpack.c.l.s4 1934713408
        %v1421 = vunpack.c.0.s8 %v1420
        %v1422 = vperm.slane %v1416, %v1421
        %v1424 = vunpack.c.l.s4 1934713408
        %v1425 = vunpack.c.0.s8 %v1424
        %v1426 = vperm.slane %v1418, %v1425
        %v1427 = vrot.slane %v1398, 4
        %v1428 = vsel %vm852, %v1427, %v1386
        %v1429 = vrot.slane %v1386, 4
        %v1430 = vsel %vm852, %v1398, %v1429
        %v1432 = vunpack.c.l.s4 1934713408
        %v1433 = vunpack.c.0.s8 %v1432
        %v1434 = vperm.slane %v1428, %v1433
        %v1436 = vunpack.c.l.s4 1934713408
        %v1437 = vunpack.c.0.s8 %v1436
        %v1438 = vperm.slane %v1430, %v1437
        %v1439 = vrot.slane %v1402, 4
        %v1440 = vsel %vm852, %v1439, %v1390
        %v1441 = vrot.slane %v1390, 4
        %v1442 = vsel %vm852, %v1402, %v1441
        %v1444 = vunpack.c.l.s4 1934713408
        %v1445 = vunpack.c.0.s8 %v1444
        %v1446 = vperm.slane %v1440, %v1445
        %v1448 = vunpack.c.l.s4 1934713408
        %v1449 = vunpack.c.0.s8 %v1448
        %v1450 = vperm.slane %v1442, %v1449
        %v1451 = vrot.slane %v1434, 4
        %v1452 = vsel %vm852, %v1451, %v1410
        %v1453 = vrot.slane %v1410, 4
        %v1454 = vsel %vm852, %v1434, %v1453
        %v1455 = vrot.slane %v1438, 4
        %v1456 = vsel %vm852, %v1455, %v1414
        %v1457 = vrot.slane %v1414, 4
        %v1458 = vsel %vm852, %v1438, %v1457
        %v1459 = vrot.slane %v1446, 4
        %v1460 = vsel %vm852, %v1459, %v1422
        %v1461 = vrot.slane %v1422, 4
        %v1462 = vsel %vm852, %v1446, %v1461
        %v1463 = vrot.slane %v1450, 4
        %v1464 = vsel %vm852, %v1463, %v1426
        %v1465 = vrot.slane %v1426, 4
        %v1466 = vsel %vm852, %v1450, %v1465
        %v1467 = vrot.slane %v1318, 4
        %v1468 = vsel %vm852, %v1467, %v1310
        %v1470 = vunpack.c.l.s4 1983009808
        %v1471 = vunpack.c.0.s8 %v1470
        %v1472 = vperm.slane %v1468, %v1471
        %v1473 = vrot.slane %v1322, 4
        %v1474 = vsel %vm852, %v1473, %v1314
        %v1476 = vunpack.c.l.s4 1983009808
        %v1477 = vunpack.c.0.s8 %v1476
        %v1478 = vperm.slane %v1474, %v1477
        %v1479 = vrot.slane %v1334, 4
        %v1480 = vsel %vm852, %v1479, %v1326
        %v1482 = vunpack.c.l.s4 1983009808
        %v1483 = vunpack.c.0.s8 %v1482
        %v1484 = vperm.slane %v1480, %v1483
        %v1485 = vrot.slane %v1338, 4
        %v1486 = vsel %vm852, %v1485, %v1330
        %v1488 = vunpack.c.l.s4 1983009808
        %v1489 = vunpack.c.0.s8 %v1488
        %v1490 = vperm.slane %v1486, %v1489
        %v1491 = vrot.slane %v1478, 4
        %v1492 = vsel %vm852, %v1491, %v1472
        %v1494 = vunpack.c.l.s4 1934713408
        %v1495 = vunpack.c.0.s8 %v1494
        %v1496 = vperm.slane %v1492, %v1495
        %v1497 = vrot.slane %v1490, 4
        %v1498 = vsel %vm852, %v1497, %v1484
        %v1500 = vunpack.c.l.s4 1934713408
        %v1501 = vunpack.c.0.s8 %v1500
        %v1502 = vperm.slane %v1498, %v1501
        %v1503 = vrot.slane %v1502, 4
        %v1504 = vsel %vm852, %v1503, %v1496
        %v1505 = vrot.slane %v1496, 4
        %v1506 = vsel %vm852, %v1502, %v1505
        %1508 = vrot.lane.b32.xlu0 %v1454, 16
        %v1509 = vpop.permute.xlu0 %1508
        %1512 = vrot.lane.b32.xlu0 %v1456, 32
        %v1513 = vpop.permute.xlu0 %1512
        %1516 = vrot.lane.b32.xlu0 %v1458, 48
        %v1517 = vpop.permute.xlu0 %1516
        %1520 = vrot.lane.b32.xlu0 %v1460, 64
        %v1521 = vpop.permute.xlu0 %1520
        %1524 = vrot.lane.b32.xlu0 %v1462, 80
        %v1525 = vpop.permute.xlu0 %1524
        %1528 = vrot.lane.b32.xlu0 %v1464, 96
        %v1529 = vpop.permute.xlu0 %1528
        %1532 = vrot.lane.b32.xlu0 %v1466, 112
        %v1533 = vpop.permute.xlu0 %1532
        %1536 = vrot.lane.b32.xlu0 %v1506, 16
        %v1537 = vpop.permute.xlu0 %1536
        %v1539 = vsel %vm1036, %v1452, %v1509
        %v1540 = vsel %vm1038, %v1539, %v1513
        %v1541 = vsel %vm1040, %v1540, %v1517
        %v1542 = vsel %vm1042, %v1541, %v1521
        %v1543 = vsel %vm1044, %v1542, %v1525
        %v1544 = vsel %vm1046, %v1543, %v1529
        %v1545 = vsel %vm1048, %v1544, %v1533
        %v1546 = vsel %vm1036, %v1504, %v1537
        %v1547 = vld [vmem:[#allocation2 + $0x1] sm:$0xff]
        %v1548 = vld [vmem:[#allocation2 + $0x9] sm:$0x3]
        %v1549 = vld [vmem:[#allocation2 + $0x11] sm:$0xff]
        %v1550 = vld [vmem:[#allocation2 + $0x19] sm:$0x3]
        %v1551 = vld [vmem:[#allocation2 + $0x21] sm:$0xff]
        %v1552 = vld [vmem:[#allocation2 + $0x29] sm:$0x3]
        %v1553 = vld [vmem:[#allocation2 + $0x31] sm:$0xff]
        %v1554 = vld [vmem:[#allocation2 + $0x39] sm:$0x3]
        %v1555 = vld [vmem:[#allocation2 + $0x41] sm:$0xff]
        %v1556 = vld [vmem:[#allocation2 + $0x49] sm:$0x3]
        %v1557 = vld [vmem:[#allocation2 + $0x51] sm:$0xff]
        %v1558 = vld [vmem:[#allocation2 + $0x59] sm:$0x3]
        %v1559 = vld [vmem:[#allocation2 + $0x61] sm:$0xff]
        %v1560 = vld [vmem:[#allocation2 + $0x69] sm:$0x3]
        %v1561 = vld [vmem:[#allocation2 + $0x71] sm:$0xff]
        %v1562 = vld [vmem:[#allocation2 + $0x79] sm:$0x3]
        %v1563 = vrot.slane %v1551, 4
        %v1564 = vsel %vm852, %v1563, %v1547
        %v1565 = vrot.slane %v1547, 4
        %v1566 = vsel %vm852, %v1551, %v1565
        %v1568 = vunpack.c.l.s4 1983009808
        %v1569 = vunpack.c.0.s8 %v1568
        %v1570 = vperm.slane %v1564, %v1569
        %v1572 = vunpack.c.l.s4 1983009808
        %v1573 = vunpack.c.0.s8 %v1572
        %v1574 = vperm.slane %v1566, %v1573
        %v1575 = vrot.slane %v1553, 4
        %v1576 = vsel %vm852, %v1575, %v1549
        %v1577 = vrot.slane %v1549, 4
        %v1578 = vsel %vm852, %v1553, %v1577
        %v1580 = vunpack.c.l.s4 1983009808
        %v1581 = vunpack.c.0.s8 %v1580
        %v1582 = vperm.slane %v1576, %v1581
        %v1584 = vunpack.c.l.s4 1983009808
        %v1585 = vunpack.c.0.s8 %v1584
        %v1586 = vperm.slane %v1578, %v1585
        %v1587 = vrot.slane %v1559, 4
        %v1588 = vsel %vm852, %v1587, %v1555
        %v1589 = vrot.slane %v1555, 4
        %v1590 = vsel %vm852, %v1559, %v1589
        %v1592 = vunpack.c.l.s4 1983009808
        %v1593 = vunpack.c.0.s8 %v1592
        %v1594 = vperm.slane %v1588, %v1593
        %v1596 = vunpack.c.l.s4 1983009808
        %v1597 = vunpack.c.0.s8 %v1596
        %v1598 = vperm.slane %v1590, %v1597
        %v1599 = vrot.slane %v1561, 4
        %v1600 = vsel %vm852, %v1599, %v1557
        %v1601 = vrot.slane %v1557, 4
        %v1602 = vsel %vm852, %v1561, %v1601
        %v1604 = vunpack.c.l.s4 1983009808
        %v1605 = vunpack.c.0.s8 %v1604
        %v1606 = vperm.slane %v1600, %v1605
        %v1608 = vunpack.c.l.s4 1983009808
        %v1609 = vunpack.c.0.s8 %v1608
        %v1610 = vperm.slane %v1602, %v1609
        %v1611 = vrot.slane %v1582, 4
        %v1612 = vsel %vm852, %v1611, %v1570
        %v1613 = vrot.slane %v1570, 4
        %v1614 = vsel %vm852, %v1582, %v1613
        %v1616 = vunpack.c.l.s4 1934713408
        %v1617 = vunpack.c.0.s8 %v1616
        %v1618 = vperm.slane %v1612, %v1617
        %v1620 = vunpack.c.l.s4 1934713408
        %v1621 = vunpack.c.0.s8 %v1620
        %v1622 = vperm.slane %v1614, %v1621
        %v1623 = vrot.slane %v1586, 4
        %v1624 = vsel %vm852, %v1623, %v1574
        %v1625 = vrot.slane %v1574, 4
        %v1626 = vsel %vm852, %v1586, %v1625
        %v1628 = vunpack.c.l.s4 1934713408
        %v1629 = vunpack.c.0.s8 %v1628
        %v1630 = vperm.slane %v1624, %v1629
        %v1632 = vunpack.c.l.s4 1934713408
        %v1633 = vunpack.c.0.s8 %v1632
        %v1634 = vperm.slane %v1626, %v1633
        %v1635 = vrot.slane %v1606, 4
        %v1636 = vsel %vm852, %v1635, %v1594
        %v1637 = vrot.slane %v1594, 4
        %v1638 = vsel %vm852, %v1606, %v1637
        %v1640 = vunpack.c.l.s4 1934713408
        %v1641 = vunpack.c.0.s8 %v1640
        %v1642 = vperm.slane %v1636, %v1641
        %v1644 = vunpack.c.l.s4 1934713408
        %v1645 = vunpack.c.0.s8 %v1644
        %v1646 = vperm.slane %v1638, %v1645
        %v1647 = vrot.slane %v1610, 4
        %v1648 = vsel %vm852, %v1647, %v1598
        %v1649 = vrot.slane %v1598, 4
        %v1650 = vsel %vm852, %v1610, %v1649
        %v1652 = vunpack.c.l.s4 1934713408
        %v1653 = vunpack.c.0.s8 %v1652
        %v1654 = vperm.slane %v1648, %v1653
        %v1656 = vunpack.c.l.s4 1934713408
        %v1657 = vunpack.c.0.s8 %v1656
        %v1658 = vperm.slane %v1650, %v1657
        %v1659 = vrot.slane %v1642, 4
        %v1660 = vsel %vm852, %v1659, %v1618
        %v1661 = vrot.slane %v1618, 4
        %v1662 = vsel %vm852, %v1642, %v1661
        %v1663 = vrot.slane %v1646, 4
        %v1664 = vsel %vm852, %v1663, %v1622
        %v1665 = vrot.slane %v1622, 4
        %v1666 = vsel %vm852, %v1646, %v1665
        %v1667 = vrot.slane %v1654, 4
        %v1668 = vsel %vm852, %v1667, %v1630
        %v1669 = vrot.slane %v1630, 4
        %v1670 = vsel %vm852, %v1654, %v1669
        %v1671 = vrot.slane %v1658, 4
        %v1672 = vsel %vm852, %v1671, %v1634
        %v1673 = vrot.slane %v1634, 4
        %v1674 = vsel %vm852, %v1658, %v1673
        %v1675 = vrot.slane %v1552, 4
        %v1676 = vsel %vm852, %v1675, %v1548
        %v1678 = vunpack.c.l.s4 1983009808
        %v1679 = vunpack.c.0.s8 %v1678
        %v1680 = vperm.slane %v1676, %v1679
        %v1681 = vrot.slane %v1554, 4
        %v1682 = vsel %vm852, %v1681, %v1550
        %v1684 = vunpack.c.l.s4 1983009808
        %v1685 = vunpack.c.0.s8 %v1684
        %v1686 = vperm.slane %v1682, %v1685
        %v1687 = vrot.slane %v1560, 4
        %v1688 = vsel %vm852, %v1687, %v1556
        %v1690 = vunpack.c.l.s4 1983009808
        %v1691 = vunpack.c.0.s8 %v1690
        %v1692 = vperm.slane %v1688, %v1691
        %v1693 = vrot.slane %v1562, 4
        %v1694 = vsel %vm852, %v1693, %v1558
        %v1696 = vunpack.c.l.s4 1983009808
        %v1697 = vunpack.c.0.s8 %v1696
        %v1698 = vperm.slane %v1694, %v1697
        %v1699 = vrot.slane %v1686, 4
        %v1700 = vsel %vm852, %v1699, %v1680
        %v1702 = vunpack.c.l.s4 1934713408
        %v1703 = vunpack.c.0.s8 %v1702
        %v1704 = vperm.slane %v1700, %v1703
        %v1705 = vrot.slane %v1698, 4
        %v1706 = vsel %vm852, %v1705, %v1692
        %v1708 = vunpack.c.l.s4 1934713408
        %v1709 = vunpack.c.0.s8 %v1708
        %v1710 = vperm.slane %v1706, %v1709
        %v1711 = vrot.slane %v1710, 4
        %v1712 = vsel %vm852, %v1711, %v1704
        %v1713 = vrot.slane %v1704, 4
        %v1714 = vsel %vm852, %v1710, %v1713
        %1716 = vrot.lane.b32.xlu0 %v1662, 16
        %v1717 = vpop.permute.xlu0 %1716
        %1720 = vrot.lane.b32.xlu0 %v1664, 32
        %v1721 = vpop.permute.xlu0 %1720
        %1724 = vrot.lane.b32.xlu0 %v1666, 48
        %v1725 = vpop.permute.xlu0 %1724
        %1728 = vrot.lane.b32.xlu0 %v1668, 64
        %v1729 = vpop.permute.xlu0 %1728
        %1732 = vrot.lane.b32.xlu0 %v1670, 80
        %v1733 = vpop.permute.xlu0 %1732
        %1736 = vrot.lane.b32.xlu0 %v1672, 96
        %v1737 = vpop.permute.xlu0 %1736
        %1740 = vrot.lane.b32.xlu0 %v1674, 112
        %v1741 = vpop.permute.xlu0 %1740
        %1744 = vrot.lane.b32.xlu0 %v1714, 16
        %v1745 = vpop.permute.xlu0 %1744
        %v1747 = vsel %vm1036, %v1660, %v1717
        %v1748 = vsel %vm1038, %v1747, %v1721
        %v1749 = vsel %vm1040, %v1748, %v1725
        %v1750 = vsel %vm1042, %v1749, %v1729
        %v1751 = vsel %vm1044, %v1750, %v1733
        %v1752 = vsel %vm1046, %v1751, %v1737
        %v1753 = vsel %vm1048, %v1752, %v1741
        %v1754 = vsel %vm1036, %v1712, %v1745
        %1771 = vrot.lane.b32.xlu0 %v1547, 127
        %v1772 = vpop.permute.xlu0 %1771
        %1773 = vrot.lane.b32.xlu0 %v1548, 127
        %v1774 = vpop.permute.xlu0 %1773
        %1775 = vrot.lane.b32.xlu0 %v1549, 127
        %v1776 = vpop.permute.xlu0 %1775
        %1777 = vrot.lane.b32.xlu0 %v1550, 127
        %v1778 = vpop.permute.xlu0 %1777
        %1779 = vrot.lane.b32.xlu0 %v1551, 127
        %v1780 = vpop.permute.xlu0 %1779
        %1781 = vrot.lane.b32.xlu0 %v1552, 127
        %v1782 = vpop.permute.xlu0 %1781
        %1783 = vrot.lane.b32.xlu0 %v1553, 127
        %v1784 = vpop.permute.xlu0 %1783
        %1785 = vrot.lane.b32.xlu0 %v1554, 127
        %v1786 = vpop.permute.xlu0 %1785
        %1787 = vrot.lane.b32.xlu0 %v1555, 127
        %v1788 = vpop.permute.xlu0 %1787
        %1789 = vrot.lane.b32.xlu0 %v1556, 127
        %v1790 = vpop.permute.xlu0 %1789
        %1791 = vrot.lane.b32.xlu0 %v1557, 127
        %v1792 = vpop.permute.xlu0 %1791
        %1793 = vrot.lane.b32.xlu0 %v1558, 127
        %v1794 = vpop.permute.xlu0 %1793
        %1795 = vrot.lane.b32.xlu0 %v1559, 127
        %v1796 = vpop.permute.xlu0 %1795
        %1797 = vrot.lane.b32.xlu0 %v1560, 127
        %v1798 = vpop.permute.xlu0 %1797
        %1799 = vrot.lane.b32.xlu0 %v1561, 127
        %v1800 = vpop.permute.xlu0 %1799
        %1801 = vrot.lane.b32.xlu0 %v1562, 127
        %v1802 = vpop.permute.xlu0 %1801
        %v1819 = vrot.slane %v1780, 4
        %v1820 = vsel %vm852, %v1819, %v1772
        %v1821 = vrot.slane %v1772, 4
        %v1822 = vsel %vm852, %v1780, %v1821
        %v1824 = vunpack.c.l.s4 1983009808
        %v1825 = vunpack.c.0.s8 %v1824
        %v1826 = vperm.slane %v1820, %v1825
        %v1828 = vunpack.c.l.s4 1983009808
        %v1829 = vunpack.c.0.s8 %v1828
        %v1830 = vperm.slane %v1822, %v1829
        %v1831 = vrot.slane %v1784, 4
        %v1832 = vsel %vm852, %v1831, %v1776
        %v1833 = vrot.slane %v1776, 4
        %v1834 = vsel %vm852, %v1784, %v1833
        %v1836 = vunpack.c.l.s4 1983009808
        %v1837 = vunpack.c.0.s8 %v1836
        %v1838 = vperm.slane %v1832, %v1837
        %v1840 = vunpack.c.l.s4 1983009808
        %v1841 = vunpack.c.0.s8 %v1840
        %v1842 = vperm.slane %v1834, %v1841
        %v1843 = vrot.slane %v1796, 4
        %v1844 = vsel %vm852, %v1843, %v1788
        %v1845 = vrot.slane %v1788, 4
        %v1846 = vsel %vm852, %v1796, %v1845
        %v1848 = vunpack.c.l.s4 1983009808
        %v1849 = vunpack.c.0.s8 %v1848
        %v1850 = vperm.slane %v1844, %v1849
        %v1852 = vunpack.c.l.s4 1983009808
        %v1853 = vunpack.c.0.s8 %v1852
        %v1854 = vperm.slane %v1846, %v1853
        %v1855 = vrot.slane %v1800, 4
        %v1856 = vsel %vm852, %v1855, %v1792
        %v1857 = vrot.slane %v1792, 4
        %v1858 = vsel %vm852, %v1800, %v1857
        %v1860 = vunpack.c.l.s4 1983009808
        %v1861 = vunpack.c.0.s8 %v1860
        %v1862 = vperm.slane %v1856, %v1861
        %v1864 = vunpack.c.l.s4 1983009808
        %v1865 = vunpack.c.0.s8 %v1864
        %v1866 = vperm.slane %v1858, %v1865
        %v1867 = vrot.slane %v1838, 4
        %v1868 = vsel %vm852, %v1867, %v1826
        %v1869 = vrot.slane %v1826, 4
        %v1870 = vsel %vm852, %v1838, %v1869
        %v1872 = vunpack.c.l.s4 1934713408
        %v1873 = vunpack.c.0.s8 %v1872
        %v1874 = vperm.slane %v1868, %v1873
        %v1876 = vunpack.c.l.s4 1934713408
        %v1877 = vunpack.c.0.s8 %v1876
        %v1878 = vperm.slane %v1870, %v1877
        %v1879 = vrot.slane %v1842, 4
        %v1880 = vsel %vm852, %v1879, %v1830
        %v1881 = vrot.slane %v1830, 4
        %v1882 = vsel %vm852, %v1842, %v1881
        %v1884 = vunpack.c.l.s4 1934713408
        %v1885 = vunpack.c.0.s8 %v1884
        %v1886 = vperm.slane %v1880, %v1885
        %v1888 = vunpack.c.l.s4 1934713408
        %v1889 = vunpack.c.0.s8 %v1888
        %v1890 = vperm.slane %v1882, %v1889
        %v1891 = vrot.slane %v1862, 4
        %v1892 = vsel %vm852, %v1891, %v1850
        %v1893 = vrot.slane %v1850, 4
        %v1894 = vsel %vm852, %v1862, %v1893
        %v1896 = vunpack.c.l.s4 1934713408
        %v1897 = vunpack.c.0.s8 %v1896
        %v1898 = vperm.slane %v1892, %v1897
        %v1900 = vunpack.c.l.s4 1934713408
        %v1901 = vunpack.c.0.s8 %v1900
        %v1902 = vperm.slane %v1894, %v1901
        %v1903 = vrot.slane %v1866, 4
        %v1904 = vsel %vm852, %v1903, %v1854
        %v1905 = vrot.slane %v1854, 4
        %v1906 = vsel %vm852, %v1866, %v1905
        %v1908 = vunpack.c.l.s4 1934713408
        %v1909 = vunpack.c.0.s8 %v1908
        %v1910 = vperm.slane %v1904, %v1909
        %v1912 = vunpack.c.l.s4 1934713408
        %v1913 = vunpack.c.0.s8 %v1912
        %v1914 = vperm.slane %v1906, %v1913
        %v1915 = vrot.slane %v1898, 4
        %v1916 = vsel %vm852, %v1915, %v1874
        %v1917 = vrot.slane %v1874, 4
        %v1918 = vsel %vm852, %v1898, %v1917
        %v1919 = vrot.slane %v1902, 4
        %v1920 = vsel %vm852, %v1919, %v1878
        %v1921 = vrot.slane %v1878, 4
        %v1922 = vsel %vm852, %v1902, %v1921
        %v1923 = vrot.slane %v1910, 4
        %v1924 = vsel %vm852, %v1923, %v1886
        %v1925 = vrot.slane %v1886, 4
        %v1926 = vsel %vm852, %v1910, %v1925
        %v1927 = vrot.slane %v1914, 4
        %v1928 = vsel %vm852, %v1927, %v1890
        %v1929 = vrot.slane %v1890, 4
        %v1930 = vsel %vm852, %v1914, %v1929
        %v1931 = vrot.slane %v1782, 4
        %v1932 = vsel %vm852, %v1931, %v1774
        %v1934 = vunpack.c.l.s4 1983009808
        %v1935 = vunpack.c.0.s8 %v1934
        %v1936 = vperm.slane %v1932, %v1935
        %v1937 = vrot.slane %v1786, 4
        %v1938 = vsel %vm852, %v1937, %v1778
        %v1940 = vunpack.c.l.s4 1983009808
        %v1941 = vunpack.c.0.s8 %v1940
        %v1942 = vperm.slane %v1938, %v1941
        %v1943 = vrot.slane %v1798, 4
        %v1944 = vsel %vm852, %v1943, %v1790
        %v1946 = vunpack.c.l.s4 1983009808
        %v1947 = vunpack.c.0.s8 %v1946
        %v1948 = vperm.slane %v1944, %v1947
        %v1949 = vrot.slane %v1802, 4
        %v1950 = vsel %vm852, %v1949, %v1794
        %v1952 = vunpack.c.l.s4 1983009808
        %v1953 = vunpack.c.0.s8 %v1952
        %v1954 = vperm.slane %v1950, %v1953
        %v1955 = vrot.slane %v1942, 4
        %v1956 = vsel %vm852, %v1955, %v1936
        %v1958 = vunpack.c.l.s4 1934713408
        %v1959 = vunpack.c.0.s8 %v1958
        %v1960 = vperm.slane %v1956, %v1959
        %v1961 = vrot.slane %v1954, 4
        %v1962 = vsel %vm852, %v1961, %v1948
        %v1964 = vunpack.c.l.s4 1934713408
        %v1965 = vunpack.c.0.s8 %v1964
        %v1966 = vperm.slane %v1962, %v1965
        %v1967 = vrot.slane %v1966, 4
        %v1968 = vsel %vm852, %v1967, %v1960
        %v1969 = vrot.slane %v1960, 4
        %v1970 = vsel %vm852, %v1966, %v1969
        %1972 = vrot.lane.b32.xlu0 %v1918, 16
        %v1973 = vpop.permute.xlu0 %1972
        %1976 = vrot.lane.b32.xlu0 %v1920, 32
        %v1977 = vpop.permute.xlu0 %1976
        %1980 = vrot.lane.b32.xlu0 %v1922, 48
        %v1981 = vpop.permute.xlu0 %1980
        %1984 = vrot.lane.b32.xlu0 %v1924, 64
        %v1985 = vpop.permute.xlu0 %1984
        %1988 = vrot.lane.b32.xlu0 %v1926, 80
        %v1989 = vpop.permute.xlu0 %1988
        %1992 = vrot.lane.b32.xlu0 %v1928, 96
        %v1993 = vpop.permute.xlu0 %1992
        %1996 = vrot.lane.b32.xlu0 %v1930, 112
        %v1997 = vpop.permute.xlu0 %1996
        %2000 = vrot.lane.b32.xlu0 %v1970, 16
        %v2001 = vpop.permute.xlu0 %2000
        %v2003 = vsel %vm1036, %v1916, %v1973
        %v2004 = vsel %vm1038, %v2003, %v1977
        %v2005 = vsel %vm1040, %v2004, %v1981
        %v2006 = vsel %vm1042, %v2005, %v1985
        %v2007 = vsel %vm1044, %v2006, %v1989
        %v2008 = vsel %vm1046, %v2007, %v1993
        %v2009 = vsel %vm1048, %v2008, %v1997
        %v2010 = vsel %vm1036, %v1968, %v2001
        %2011 = vrot.lane.b32.xlu0 %v1547, 126
        %v2012 = vpop.permute.xlu0 %2011
        %2013 = vrot.lane.b32.xlu0 %v1548, 126
        %v2014 = vpop.permute.xlu0 %2013
        %2015 = vrot.lane.b32.xlu0 %v1549, 126
        %v2016 = vpop.permute.xlu0 %2015
        %2017 = vrot.lane.b32.xlu0 %v1550, 126
        %v2018 = vpop.permute.xlu0 %2017
        %2019 = vrot.lane.b32.xlu0 %v1551, 126
        %v2020 = vpop.permute.xlu0 %2019
        %2021 = vrot.lane.b32.xlu0 %v1552, 126
        %v2022 = vpop.permute.xlu0 %2021
        %2023 = vrot.lane.b32.xlu0 %v1553, 126
        %v2024 = vpop.permute.xlu0 %2023
        %2025 = vrot.lane.b32.xlu0 %v1554, 126
        %v2026 = vpop.permute.xlu0 %2025
        %2027 = vrot.lane.b32.xlu0 %v1555, 126
        %v2028 = vpop.permute.xlu0 %2027
        %2029 = vrot.lane.b32.xlu0 %v1556, 126
        %v2030 = vpop.permute.xlu0 %2029
        %2031 = vrot.lane.b32.xlu0 %v1557, 126
        %v2032 = vpop.permute.xlu0 %2031
        %2033 = vrot.lane.b32.xlu0 %v1558, 126
        %v2034 = vpop.permute.xlu0 %2033
        %2035 = vrot.lane.b32.xlu0 %v1559, 126
        %v2036 = vpop.permute.xlu0 %2035
        %2037 = vrot.lane.b32.xlu0 %v1560, 126
        %v2038 = vpop.permute.xlu0 %2037
        %2039 = vrot.lane.b32.xlu0 %v1561, 126
        %v2040 = vpop.permute.xlu0 %2039
        %2041 = vrot.lane.b32.xlu0 %v1562, 126
        %v2042 = vpop.permute.xlu0 %2041
        %v2059 = vrot.slane %v2020, 4
        %v2060 = vsel %vm852, %v2059, %v2012
        %v2061 = vrot.slane %v2012, 4
        %v2062 = vsel %vm852, %v2020, %v2061
        %v2064 = vunpack.c.l.s4 1983009808
        %v2065 = vunpack.c.0.s8 %v2064
        %v2066 = vperm.slane %v2060, %v2065
        %v2068 = vunpack.c.l.s4 1983009808
        %v2069 = vunpack.c.0.s8 %v2068
        %v2070 = vperm.slane %v2062, %v2069
        %v2071 = vrot.slane %v2024, 4
        %v2072 = vsel %vm852, %v2071, %v2016
        %v2073 = vrot.slane %v2016, 4
        %v2074 = vsel %vm852, %v2024, %v2073
        %v2076 = vunpack.c.l.s4 1983009808
        %v2077 = vunpack.c.0.s8 %v2076
        %v2078 = vperm.slane %v2072, %v2077
        %v2080 = vunpack.c.l.s4 1983009808
        %v2081 = vunpack.c.0.s8 %v2080
        %v2082 = vperm.slane %v2074, %v2081
        %v2083 = vrot.slane %v2036, 4
        %v2084 = vsel %vm852, %v2083, %v2028
        %v2085 = vrot.slane %v2028, 4
        %v2086 = vsel %vm852, %v2036, %v2085
        %v2088 = vunpack.c.l.s4 1983009808
        %v2089 = vunpack.c.0.s8 %v2088
        %v2090 = vperm.slane %v2084, %v2089
        %v2092 = vunpack.c.l.s4 1983009808
        %v2093 = vunpack.c.0.s8 %v2092
        %v2094 = vperm.slane %v2086, %v2093
        %v2095 = vrot.slane %v2040, 4
        %v2096 = vsel %vm852, %v2095, %v2032
        %v2097 = vrot.slane %v2032, 4
        %v2098 = vsel %vm852, %v2040, %v2097
        %v2100 = vunpack.c.l.s4 1983009808
        %v2101 = vunpack.c.0.s8 %v2100
        %v2102 = vperm.slane %v2096, %v2101
        %v2104 = vunpack.c.l.s4 1983009808
        %v2105 = vunpack.c.0.s8 %v2104
        %v2106 = vperm.slane %v2098, %v2105
        %v2107 = vrot.slane %v2078, 4
        %v2108 = vsel %vm852, %v2107, %v2066
        %v2109 = vrot.slane %v2066, 4
        %v2110 = vsel %vm852, %v2078, %v2109
        %v2112 = vunpack.c.l.s4 1934713408
        %v2113 = vunpack.c.0.s8 %v2112
        %v2114 = vperm.slane %v2108, %v2113
        %v2116 = vunpack.c.l.s4 1934713408
        %v2117 = vunpack.c.0.s8 %v2116
        %v2118 = vperm.slane %v2110, %v2117
        %v2119 = vrot.slane %v2082, 4
        %v2120 = vsel %vm852, %v2119, %v2070
        %v2121 = vrot.slane %v2070, 4
        %v2122 = vsel %vm852, %v2082, %v2121
        %v2124 = vunpack.c.l.s4 1934713408
        %v2125 = vunpack.c.0.s8 %v2124
        %v2126 = vperm.slane %v2120, %v2125
        %v2128 = vunpack.c.l.s4 1934713408
        %v2129 = vunpack.c.0.s8 %v2128
        %v2130 = vperm.slane %v2122, %v2129
        %v2131 = vrot.slane %v2102, 4
        %v2132 = vsel %vm852, %v2131, %v2090
        %v2133 = vrot.slane %v2090, 4
        %v2134 = vsel %vm852, %v2102, %v2133
        %v2136 = vunpack.c.l.s4 1934713408
        %v2137 = vunpack.c.0.s8 %v2136
        %v2138 = vperm.slane %v2132, %v2137
        %v2140 = vunpack.c.l.s4 1934713408
        %v2141 = vunpack.c.0.s8 %v2140
        %v2142 = vperm.slane %v2134, %v2141
        %v2143 = vrot.slane %v2106, 4
        %v2144 = vsel %vm852, %v2143, %v2094
        %v2145 = vrot.slane %v2094, 4
        %v2146 = vsel %vm852, %v2106, %v2145
        %v2148 = vunpack.c.l.s4 1934713408
        %v2149 = vunpack.c.0.s8 %v2148
        %v2150 = vperm.slane %v2144, %v2149
        %v2152 = vunpack.c.l.s4 1934713408
        %v2153 = vunpack.c.0.s8 %v2152
        %v2154 = vperm.slane %v2146, %v2153
        %v2155 = vrot.slane %v2138, 4
        %v2156 = vsel %vm852, %v2155, %v2114
        %v2157 = vrot.slane %v2114, 4
        %v2158 = vsel %vm852, %v2138, %v2157
        %v2159 = vrot.slane %v2142, 4
        %v2160 = vsel %vm852, %v2159, %v2118
        %v2161 = vrot.slane %v2118, 4
        %v2162 = vsel %vm852, %v2142, %v2161
        %v2163 = vrot.slane %v2150, 4
        %v2164 = vsel %vm852, %v2163, %v2126
        %v2165 = vrot.slane %v2126, 4
        %v2166 = vsel %vm852, %v2150, %v2165
        %v2167 = vrot.slane %v2154, 4
        %v2168 = vsel %vm852, %v2167, %v2130
        %v2169 = vrot.slane %v2130, 4
        %v2170 = vsel %vm852, %v2154, %v2169
        %v2171 = vrot.slane %v2022, 4
        %v2172 = vsel %vm852, %v2171, %v2014
        %v2174 = vunpack.c.l.s4 1983009808
        %v2175 = vunpack.c.0.s8 %v2174
        %v2176 = vperm.slane %v2172, %v2175
        %v2177 = vrot.slane %v2026, 4
        %v2178 = vsel %vm852, %v2177, %v2018
        %v2180 = vunpack.c.l.s4 1983009808
        %v2181 = vunpack.c.0.s8 %v2180
        %v2182 = vperm.slane %v2178, %v2181
        %v2183 = vrot.slane %v2038, 4
        %v2184 = vsel %vm852, %v2183, %v2030
        %v2186 = vunpack.c.l.s4 1983009808
        %v2187 = vunpack.c.0.s8 %v2186
        %v2188 = vperm.slane %v2184, %v2187
        %v2189 = vrot.slane %v2042, 4
        %v2190 = vsel %vm852, %v2189, %v2034
        %v2192 = vunpack.c.l.s4 1983009808
        %v2193 = vunpack.c.0.s8 %v2192
        %v2194 = vperm.slane %v2190, %v2193
        %v2195 = vrot.slane %v2182, 4
        %v2196 = vsel %vm852, %v2195, %v2176
        %v2198 = vunpack.c.l.s4 1934713408
        %v2199 = vunpack.c.0.s8 %v2198
        %v2200 = vperm.slane %v2196, %v2199
        %v2201 = vrot.slane %v2194, 4
        %v2202 = vsel %vm852, %v2201, %v2188
        %v2204 = vunpack.c.l.s4 1934713408
        %v2205 = vunpack.c.0.s8 %v2204
        %v2206 = vperm.slane %v2202, %v2205
        %v2207 = vrot.slane %v2206, 4
        %v2208 = vsel %vm852, %v2207, %v2200
        %v2209 = vrot.slane %v2200, 4
        %v2210 = vsel %vm852, %v2206, %v2209
        %2212 = vrot.lane.b32.xlu0 %v2158, 16
        %v2213 = vpop.permute.xlu0 %2212
        %2216 = vrot.lane.b32.xlu0 %v2160, 32
        %v2217 = vpop.permute.xlu0 %2216
        %2220 = vrot.lane.b32.xlu0 %v2162, 48
        %v2221 = vpop.permute.xlu0 %2220
        %2224 = vrot.lane.b32.xlu0 %v2164, 64
        %v2225 = vpop.permute.xlu0 %2224
        %2228 = vrot.lane.b32.xlu0 %v2166, 80
        %v2229 = vpop.permute.xlu0 %2228
        %2232 = vrot.lane.b32.xlu0 %v2168, 96
        %v2233 = vpop.permute.xlu0 %2232
        %2236 = vrot.lane.b32.xlu0 %v2170, 112
        %v2237 = vpop.permute.xlu0 %2236
        %2240 = vrot.lane.b32.xlu0 %v2210, 16
        %v2241 = vpop.permute.xlu0 %2240
        %v2243 = vsel %vm1036, %v2156, %v2213
        %v2244 = vsel %vm1038, %v2243, %v2217
        %v2245 = vsel %vm1040, %v2244, %v2221
        %v2246 = vsel %vm1042, %v2245, %v2225
        %v2247 = vsel %vm1044, %v2246, %v2229
        %v2248 = vsel %vm1046, %v2247, %v2233
        %v2249 = vsel %vm1048, %v2248, %v2237
        %v2250 = vsel %vm1036, %v2208, %v2241
        %v2251 = vld [vmem:[#allocation2 + $0x2] sm:$0xff]
        %v2252 = vld [vmem:[#allocation2 + $0xa] sm:$0x3]
        %v2253 = vld [vmem:[#allocation2 + $0x12] sm:$0xff]
        %v2254 = vld [vmem:[#allocation2 + $0x1a] sm:$0x3]
        %v2255 = vld [vmem:[#allocation2 + $0x22] sm:$0xff]
        %v2256 = vld [vmem:[#allocation2 + $0x2a] sm:$0x3]
        %v2257 = vld [vmem:[#allocation2 + $0x32] sm:$0xff]
        %v2258 = vld [vmem:[#allocation2 + $0x3a] sm:$0x3]
        %v2259 = vld [vmem:[#allocation2 + $0x42] sm:$0xff]
        %v2260 = vld [vmem:[#allocation2 + $0x4a] sm:$0x3]
        %v2261 = vld [vmem:[#allocation2 + $0x52] sm:$0xff]
        %v2262 = vld [vmem:[#allocation2 + $0x5a] sm:$0x3]
        %v2263 = vld [vmem:[#allocation2 + $0x62] sm:$0xff]
        %v2264 = vld [vmem:[#allocation2 + $0x6a] sm:$0x3]
        %v2265 = vld [vmem:[#allocation2 + $0x72] sm:$0xff]
        %v2266 = vld [vmem:[#allocation2 + $0x7a] sm:$0x3]
        %v2267 = vrot.slane %v2255, 4
        %v2268 = vsel %vm852, %v2267, %v2251
        %v2269 = vrot.slane %v2251, 4
        %v2270 = vsel %vm852, %v2255, %v2269
        %v2272 = vunpack.c.l.s4 1983009808
        %v2273 = vunpack.c.0.s8 %v2272
        %v2274 = vperm.slane %v2268, %v2273
        %v2276 = vunpack.c.l.s4 1983009808
        %v2277 = vunpack.c.0.s8 %v2276
        %v2278 = vperm.slane %v2270, %v2277
        %v2279 = vrot.slane %v2257, 4
        %v2280 = vsel %vm852, %v2279, %v2253
        %v2281 = vrot.slane %v2253, 4
        %v2282 = vsel %vm852, %v2257, %v2281
        %v2284 = vunpack.c.l.s4 1983009808
        %v2285 = vunpack.c.0.s8 %v2284
        %v2286 = vperm.slane %v2280, %v2285
        %v2288 = vunpack.c.l.s4 1983009808
        %v2289 = vunpack.c.0.s8 %v2288
        %v2290 = vperm.slane %v2282, %v2289
        %v2291 = vrot.slane %v2263, 4
        %v2292 = vsel %vm852, %v2291, %v2259
        %v2293 = vrot.slane %v2259, 4
        %v2294 = vsel %vm852, %v2263, %v2293
        %v2296 = vunpack.c.l.s4 1983009808
        %v2297 = vunpack.c.0.s8 %v2296
        %v2298 = vperm.slane %v2292, %v2297
        %v2300 = vunpack.c.l.s4 1983009808
        %v2301 = vunpack.c.0.s8 %v2300
        %v2302 = vperm.slane %v2294, %v2301
        %v2303 = vrot.slane %v2265, 4
        %v2304 = vsel %vm852, %v2303, %v2261
        %v2305 = vrot.slane %v2261, 4
        %v2306 = vsel %vm852, %v2265, %v2305
        %v2308 = vunpack.c.l.s4 1983009808
        %v2309 = vunpack.c.0.s8 %v2308
        %v2310 = vperm.slane %v2304, %v2309
        %v2312 = vunpack.c.l.s4 1983009808
        %v2313 = vunpack.c.0.s8 %v2312
        %v2314 = vperm.slane %v2306, %v2313
        %v2315 = vrot.slane %v2286, 4
        %v2316 = vsel %vm852, %v2315, %v2274
        %v2317 = vrot.slane %v2274, 4
        %v2318 = vsel %vm852, %v2286, %v2317
        %v2320 = vunpack.c.l.s4 1934713408
        %v2321 = vunpack.c.0.s8 %v2320
        %v2322 = vperm.slane %v2316, %v2321
        %v2324 = vunpack.c.l.s4 1934713408
        %v2325 = vunpack.c.0.s8 %v2324
        %v2326 = vperm.slane %v2318, %v2325
        %v2327 = vrot.slane %v2290, 4
        %v2328 = vsel %vm852, %v2327, %v2278
        %v2329 = vrot.slane %v2278, 4
        %v2330 = vsel %vm852, %v2290, %v2329
        %v2332 = vunpack.c.l.s4 1934713408
        %v2333 = vunpack.c.0.s8 %v2332
        %v2334 = vperm.slane %v2328, %v2333
        %v2336 = vunpack.c.l.s4 1934713408
        %v2337 = vunpack.c.0.s8 %v2336
        %v2338 = vperm.slane %v2330, %v2337
        %v2339 = vrot.slane %v2310, 4
        %v2340 = vsel %vm852, %v2339, %v2298
        %v2341 = vrot.slane %v2298, 4
        %v2342 = vsel %vm852, %v2310, %v2341
        %v2344 = vunpack.c.l.s4 1934713408
        %v2345 = vunpack.c.0.s8 %v2344
        %v2346 = vperm.slane %v2340, %v2345
        %v2348 = vunpack.c.l.s4 1934713408
        %v2349 = vunpack.c.0.s8 %v2348
        %v2350 = vperm.slane %v2342, %v2349
        %v2351 = vrot.slane %v2314, 4
        %v2352 = vsel %vm852, %v2351, %v2302
        %v2353 = vrot.slane %v2302, 4
        %v2354 = vsel %vm852, %v2314, %v2353
        %v2356 = vunpack.c.l.s4 1934713408
        %v2357 = vunpack.c.0.s8 %v2356
        %v2358 = vperm.slane %v2352, %v2357
        %v2360 = vunpack.c.l.s4 1934713408
        %v2361 = vunpack.c.0.s8 %v2360
        %v2362 = vperm.slane %v2354, %v2361
        %v2363 = vrot.slane %v2346, 4
        %v2364 = vsel %vm852, %v2363, %v2322
        %v2365 = vrot.slane %v2322, 4
        %v2366 = vsel %vm852, %v2346, %v2365
        %v2367 = vrot.slane %v2350, 4
        %v2368 = vsel %vm852, %v2367, %v2326
        %v2369 = vrot.slane %v2326, 4
        %v2370 = vsel %vm852, %v2350, %v2369
        %v2371 = vrot.slane %v2358, 4
        %v2372 = vsel %vm852, %v2371, %v2334
        %v2373 = vrot.slane %v2334, 4
        %v2374 = vsel %vm852, %v2358, %v2373
        %v2375 = vrot.slane %v2362, 4
        %v2376 = vsel %vm852, %v2375, %v2338
        %v2377 = vrot.slane %v2338, 4
        %v2378 = vsel %vm852, %v2362, %v2377
        %v2379 = vrot.slane %v2256, 4
        %v2380 = vsel %vm852, %v2379, %v2252
        %v2382 = vunpack.c.l.s4 1983009808
        %v2383 = vunpack.c.0.s8 %v2382
        %v2384 = vperm.slane %v2380, %v2383
        %v2385 = vrot.slane %v2258, 4
        %v2386 = vsel %vm852, %v2385, %v2254
        %v2388 = vunpack.c.l.s4 1983009808
        %v2389 = vunpack.c.0.s8 %v2388
        %v2390 = vperm.slane %v2386, %v2389
        %v2391 = vrot.slane %v2264, 4
        %v2392 = vsel %vm852, %v2391, %v2260
        %v2394 = vunpack.c.l.s4 1983009808
        %v2395 = vunpack.c.0.s8 %v2394
        %v2396 = vperm.slane %v2392, %v2395
        %v2397 = vrot.slane %v2266, 4
        %v2398 = vsel %vm852, %v2397, %v2262
        %v2400 = vunpack.c.l.s4 1983009808
        %v2401 = vunpack.c.0.s8 %v2400
        %v2402 = vperm.slane %v2398, %v2401
        %v2403 = vrot.slane %v2390, 4
        %v2404 = vsel %vm852, %v2403, %v2384
        %v2406 = vunpack.c.l.s4 1934713408
        %v2407 = vunpack.c.0.s8 %v2406
        %v2408 = vperm.slane %v2404, %v2407
        %v2409 = vrot.slane %v2402, 4
        %v2410 = vsel %vm852, %v2409, %v2396
        %v2412 = vunpack.c.l.s4 1934713408
        %v2413 = vunpack.c.0.s8 %v2412
        %v2414 = vperm.slane %v2410, %v2413
        %v2415 = vrot.slane %v2414, 4
        %v2416 = vsel %vm852, %v2415, %v2408
        %v2417 = vrot.slane %v2408, 4
        %v2418 = vsel %vm852, %v2414, %v2417
        %2420 = vrot.lane.b32.xlu0 %v2366, 16
        %v2421 = vpop.permute.xlu0 %2420
        %2424 = vrot.lane.b32.xlu0 %v2368, 32
        %v2425 = vpop.permute.xlu0 %2424
        %2428 = vrot.lane.b32.xlu0 %v2370, 48
        %v2429 = vpop.permute.xlu0 %2428
        %2432 = vrot.lane.b32.xlu0 %v2372, 64
        %v2433 = vpop.permute.xlu0 %2432
        %2436 = vrot.lane.b32.xlu0 %v2374, 80
        %v2437 = vpop.permute.xlu0 %2436
        %2440 = vrot.lane.b32.xlu0 %v2376, 96
        %v2441 = vpop.permute.xlu0 %2440
        %2444 = vrot.lane.b32.xlu0 %v2378, 112
        %v2445 = vpop.permute.xlu0 %2444
        %2448 = vrot.lane.b32.xlu0 %v2418, 16
        %v2449 = vpop.permute.xlu0 %2448
        %v2451 = vsel %vm1036, %v2364, %v2421
        %v2452 = vsel %vm1038, %v2451, %v2425
        %v2453 = vsel %vm1040, %v2452, %v2429
        %v2454 = vsel %vm1042, %v2453, %v2433
        %v2455 = vsel %vm1044, %v2454, %v2437
        %v2456 = vsel %vm1046, %v2455, %v2441
        %v2457 = vsel %vm1048, %v2456, %v2445
        %v2458 = vsel %vm1036, %v2416, %v2449
        %2475 = vrot.lane.b32.xlu0 %v2251, 127
        %v2476 = vpop.permute.xlu0 %2475
        %2477 = vrot.lane.b32.xlu0 %v2252, 127
        %v2478 = vpop.permute.xlu0 %2477
        %2479 = vrot.lane.b32.xlu0 %v2253, 127
        %v2480 = vpop.permute.xlu0 %2479
        %2481 = vrot.lane.b32.xlu0 %v2254, 127
        %v2482 = vpop.permute.xlu0 %2481
        %2483 = vrot.lane.b32.xlu0 %v2255, 127
        %v2484 = vpop.permute.xlu0 %2483
        %2485 = vrot.lane.b32.xlu0 %v2256, 127
        %v2486 = vpop.permute.xlu0 %2485
        %2487 = vrot.lane.b32.xlu0 %v2257, 127
        %v2488 = vpop.permute.xlu0 %2487
        %2489 = vrot.lane.b32.xlu0 %v2258, 127
        %v2490 = vpop.permute.xlu0 %2489
        %2491 = vrot.lane.b32.xlu0 %v2259, 127
        %v2492 = vpop.permute.xlu0 %2491
        %2493 = vrot.lane.b32.xlu0 %v2260, 127
        %v2494 = vpop.permute.xlu0 %2493
        %2495 = vrot.lane.b32.xlu0 %v2261, 127
        %v2496 = vpop.permute.xlu0 %2495
        %2497 = vrot.lane.b32.xlu0 %v2262, 127
        %v2498 = vpop.permute.xlu0 %2497
        %2499 = vrot.lane.b32.xlu0 %v2263, 127
        %v2500 = vpop.permute.xlu0 %2499
        %2501 = vrot.lane.b32.xlu0 %v2264, 127
        %v2502 = vpop.permute.xlu0 %2501
        %2503 = vrot.lane.b32.xlu0 %v2265, 127
        %v2504 = vpop.permute.xlu0 %2503
        %2505 = vrot.lane.b32.xlu0 %v2266, 127
        %v2506 = vpop.permute.xlu0 %2505
        %v2523 = vrot.slane %v2484, 4
        %v2524 = vsel %vm852, %v2523, %v2476
        %v2525 = vrot.slane %v2476, 4
        %v2526 = vsel %vm852, %v2484, %v2525
        %v2528 = vunpack.c.l.s4 1983009808
        %v2529 = vunpack.c.0.s8 %v2528
        %v2530 = vperm.slane %v2524, %v2529
        %v2532 = vunpack.c.l.s4 1983009808
        %v2533 = vunpack.c.0.s8 %v2532
        %v2534 = vperm.slane %v2526, %v2533
        %v2535 = vrot.slane %v2488, 4
        %v2536 = vsel %vm852, %v2535, %v2480
        %v2537 = vrot.slane %v2480, 4
        %v2538 = vsel %vm852, %v2488, %v2537
        %v2540 = vunpack.c.l.s4 1983009808
        %v2541 = vunpack.c.0.s8 %v2540
        %v2542 = vperm.slane %v2536, %v2541
        %v2544 = vunpack.c.l.s4 1983009808
        %v2545 = vunpack.c.0.s8 %v2544
        %v2546 = vperm.slane %v2538, %v2545
        %v2547 = vrot.slane %v2500, 4
        %v2548 = vsel %vm852, %v2547, %v2492
        %v2549 = vrot.slane %v2492, 4
        %v2550 = vsel %vm852, %v2500, %v2549
        %v2552 = vunpack.c.l.s4 1983009808
        %v2553 = vunpack.c.0.s8 %v2552
        %v2554 = vperm.slane %v2548, %v2553
        %v2556 = vunpack.c.l.s4 1983009808
        %v2557 = vunpack.c.0.s8 %v2556
        %v2558 = vperm.slane %v2550, %v2557
        %v2559 = vrot.slane %v2504, 4
        %v2560 = vsel %vm852, %v2559, %v2496
        %v2561 = vrot.slane %v2496, 4
        %v2562 = vsel %vm852, %v2504, %v2561
        %v2564 = vunpack.c.l.s4 1983009808
        %v2565 = vunpack.c.0.s8 %v2564
        %v2566 = vperm.slane %v2560, %v2565
        %v2568 = vunpack.c.l.s4 1983009808
        %v2569 = vunpack.c.0.s8 %v2568
        %v2570 = vperm.slane %v2562, %v2569
        %v2571 = vrot.slane %v2542, 4
        %v2572 = vsel %vm852, %v2571, %v2530
        %v2573 = vrot.slane %v2530, 4
        %v2574 = vsel %vm852, %v2542, %v2573
        %v2576 = vunpack.c.l.s4 1934713408
        %v2577 = vunpack.c.0.s8 %v2576
        %v2578 = vperm.slane %v2572, %v2577
        %v2580 = vunpack.c.l.s4 1934713408
        %v2581 = vunpack.c.0.s8 %v2580
        %v2582 = vperm.slane %v2574, %v2581
        %v2583 = vrot.slane %v2546, 4
        %v2584 = vsel %vm852, %v2583, %v2534
        %v2585 = vrot.slane %v2534, 4
        %v2586 = vsel %vm852, %v2546, %v2585
        %v2588 = vunpack.c.l.s4 1934713408
        %v2589 = vunpack.c.0.s8 %v2588
        %v2590 = vperm.slane %v2584, %v2589
        %v2592 = vunpack.c.l.s4 1934713408
        %v2593 = vunpack.c.0.s8 %v2592
        %v2594 = vperm.slane %v2586, %v2593
        %v2595 = vrot.slane %v2566, 4
        %v2596 = vsel %vm852, %v2595, %v2554
        %v2597 = vrot.slane %v2554, 4
        %v2598 = vsel %vm852, %v2566, %v2597
        %v2600 = vunpack.c.l.s4 1934713408
        %v2601 = vunpack.c.0.s8 %v2600
        %v2602 = vperm.slane %v2596, %v2601
        %v2604 = vunpack.c.l.s4 1934713408
        %v2605 = vunpack.c.0.s8 %v2604
        %v2606 = vperm.slane %v2598, %v2605
        %v2607 = vrot.slane %v2570, 4
        %v2608 = vsel %vm852, %v2607, %v2558
        %v2609 = vrot.slane %v2558, 4
        %v2610 = vsel %vm852, %v2570, %v2609
        %v2612 = vunpack.c.l.s4 1934713408
        %v2613 = vunpack.c.0.s8 %v2612
        %v2614 = vperm.slane %v2608, %v2613
        %v2616 = vunpack.c.l.s4 1934713408
        %v2617 = vunpack.c.0.s8 %v2616
        %v2618 = vperm.slane %v2610, %v2617
        %v2619 = vrot.slane %v2602, 4
        %v2620 = vsel %vm852, %v2619, %v2578
        %v2621 = vrot.slane %v2578, 4
        %v2622 = vsel %vm852, %v2602, %v2621
        %v2623 = vrot.slane %v2606, 4
        %v2624 = vsel %vm852, %v2623, %v2582
        %v2625 = vrot.slane %v2582, 4
        %v2626 = vsel %vm852, %v2606, %v2625
        %v2627 = vrot.slane %v2614, 4
        %v2628 = vsel %vm852, %v2627, %v2590
        %v2629 = vrot.slane %v2590, 4
        %v2630 = vsel %vm852, %v2614, %v2629
        %v2631 = vrot.slane %v2618, 4
        %v2632 = vsel %vm852, %v2631, %v2594
        %v2633 = vrot.slane %v2594, 4
        %v2634 = vsel %vm852, %v2618, %v2633
        %v2635 = vrot.slane %v2486, 4
        %v2636 = vsel %vm852, %v2635, %v2478
        %v2638 = vunpack.c.l.s4 1983009808
        %v2639 = vunpack.c.0.s8 %v2638
        %v2640 = vperm.slane %v2636, %v2639
        %v2641 = vrot.slane %v2490, 4
        %v2642 = vsel %vm852, %v2641, %v2482
        %v2644 = vunpack.c.l.s4 1983009808
        %v2645 = vunpack.c.0.s8 %v2644
        %v2646 = vperm.slane %v2642, %v2645
        %v2647 = vrot.slane %v2502, 4
        %v2648 = vsel %vm852, %v2647, %v2494
        %v2650 = vunpack.c.l.s4 1983009808
        %v2651 = vunpack.c.0.s8 %v2650
        %v2652 = vperm.slane %v2648, %v2651
        %v2653 = vrot.slane %v2506, 4
        %v2654 = vsel %vm852, %v2653, %v2498
        %v2656 = vunpack.c.l.s4 1983009808
        %v2657 = vunpack.c.0.s8 %v2656
        %v2658 = vperm.slane %v2654, %v2657
        %v2659 = vrot.slane %v2646, 4
        %v2660 = vsel %vm852, %v2659, %v2640
        %v2662 = vunpack.c.l.s4 1934713408
        %v2663 = vunpack.c.0.s8 %v2662
        %v2664 = vperm.slane %v2660, %v2663
        %v2665 = vrot.slane %v2658, 4
        %v2666 = vsel %vm852, %v2665, %v2652
        %v2668 = vunpack.c.l.s4 1934713408
        %v2669 = vunpack.c.0.s8 %v2668
        %v2670 = vperm.slane %v2666, %v2669
        %v2671 = vrot.slane %v2670, 4
        %v2672 = vsel %vm852, %v2671, %v2664
        %v2673 = vrot.slane %v2664, 4
        %v2674 = vsel %vm852, %v2670, %v2673
        %2676 = vrot.lane.b32.xlu0 %v2622, 16
        %v2677 = vpop.permute.xlu0 %2676
        %2680 = vrot.lane.b32.xlu0 %v2624, 32
        %v2681 = vpop.permute.xlu0 %2680
        %2684 = vrot.lane.b32.xlu0 %v2626, 48
        %v2685 = vpop.permute.xlu0 %2684
        %2688 = vrot.lane.b32.xlu0 %v2628, 64
        %v2689 = vpop.permute.xlu0 %2688
        %2692 = vrot.lane.b32.xlu0 %v2630, 80
        %v2693 = vpop.permute.xlu0 %2692
        %2696 = vrot.lane.b32.xlu0 %v2632, 96
        %v2697 = vpop.permute.xlu0 %2696
        %2700 = vrot.lane.b32.xlu0 %v2634, 112
        %v2701 = vpop.permute.xlu0 %2700
        %2704 = vrot.lane.b32.xlu0 %v2674, 16
        %v2705 = vpop.permute.xlu0 %2704
        %v2707 = vsel %vm1036, %v2620, %v2677
        %v2708 = vsel %vm1038, %v2707, %v2681
        %v2709 = vsel %vm1040, %v2708, %v2685
        %v2710 = vsel %vm1042, %v2709, %v2689
        %v2711 = vsel %vm1044, %v2710, %v2693
        %v2712 = vsel %vm1046, %v2711, %v2697
        %v2713 = vsel %vm1048, %v2712, %v2701
        %v2714 = vsel %vm1036, %v2672, %v2705
        %2715 = vrot.lane.b32.xlu0 %v2251, 126
        %v2716 = vpop.permute.xlu0 %2715
        %2717 = vrot.lane.b32.xlu0 %v2252, 126
        %v2718 = vpop.permute.xlu0 %2717
        %2719 = vrot.lane.b32.xlu0 %v2253, 126
        %v2720 = vpop.permute.xlu0 %2719
        %2721 = vrot.lane.b32.xlu0 %v2254, 126
        %v2722 = vpop.permute.xlu0 %2721
        %2723 = vrot.lane.b32.xlu0 %v2255, 126
        %v2724 = vpop.permute.xlu0 %2723
        %2725 = vrot.lane.b32.xlu0 %v2256, 126
        %v2726 = vpop.permute.xlu0 %2725
        %2727 = vrot.lane.b32.xlu0 %v2257, 126
        %v2728 = vpop.permute.xlu0 %2727
        %2729 = vrot.lane.b32.xlu0 %v2258, 126
        %v2730 = vpop.permute.xlu0 %2729
        %2731 = vrot.lane.b32.xlu0 %v2259, 126
        %v2732 = vpop.permute.xlu0 %2731
        %2733 = vrot.lane.b32.xlu0 %v2260, 126
        %v2734 = vpop.permute.xlu0 %2733
        %2735 = vrot.lane.b32.xlu0 %v2261, 126
        %v2736 = vpop.permute.xlu0 %2735
        %2737 = vrot.lane.b32.xlu0 %v2262, 126
        %v2738 = vpop.permute.xlu0 %2737
        %2739 = vrot.lane.b32.xlu0 %v2263, 126
        %v2740 = vpop.permute.xlu0 %2739
        %2741 = vrot.lane.b32.xlu0 %v2264, 126
        %v2742 = vpop.permute.xlu0 %2741
        %2743 = vrot.lane.b32.xlu0 %v2265, 126
        %v2744 = vpop.permute.xlu0 %2743
        %2745 = vrot.lane.b32.xlu0 %v2266, 126
        %v2746 = vpop.permute.xlu0 %2745
        %v2763 = vrot.slane %v2724, 4
        %v2764 = vsel %vm852, %v2763, %v2716
        %v2765 = vrot.slane %v2716, 4
        %v2766 = vsel %vm852, %v2724, %v2765
        %v2768 = vunpack.c.l.s4 1983009808
        %v2769 = vunpack.c.0.s8 %v2768
        %v2770 = vperm.slane %v2764, %v2769
        %v2772 = vunpack.c.l.s4 1983009808
        %v2773 = vunpack.c.0.s8 %v2772
        %v2774 = vperm.slane %v2766, %v2773
        %v2775 = vrot.slane %v2728, 4
        %v2776 = vsel %vm852, %v2775, %v2720
        %v2777 = vrot.slane %v2720, 4
        %v2778 = vsel %vm852, %v2728, %v2777
        %v2780 = vunpack.c.l.s4 1983009808
        %v2781 = vunpack.c.0.s8 %v2780
        %v2782 = vperm.slane %v2776, %v2781
        %v2784 = vunpack.c.l.s4 1983009808
        %v2785 = vunpack.c.0.s8 %v2784
        %v2786 = vperm.slane %v2778, %v2785
        %v2787 = vrot.slane %v2740, 4
        %v2788 = vsel %vm852, %v2787, %v2732
        %v2789 = vrot.slane %v2732, 4
        %v2790 = vsel %vm852, %v2740, %v2789
        %v2792 = vunpack.c.l.s4 1983009808
        %v2793 = vunpack.c.0.s8 %v2792
        %v2794 = vperm.slane %v2788, %v2793
        %v2796 = vunpack.c.l.s4 1983009808
        %v2797 = vunpack.c.0.s8 %v2796
        %v2798 = vperm.slane %v2790, %v2797
        %v2799 = vrot.slane %v2744, 4
        %v2800 = vsel %vm852, %v2799, %v2736
        %v2801 = vrot.slane %v2736, 4
        %v2802 = vsel %vm852, %v2744, %v2801
        %v2804 = vunpack.c.l.s4 1983009808
        %v2805 = vunpack.c.0.s8 %v2804
        %v2806 = vperm.slane %v2800, %v2805
        %v2808 = vunpack.c.l.s4 1983009808
        %v2809 = vunpack.c.0.s8 %v2808
        %v2810 = vperm.slane %v2802, %v2809
        %v2811 = vrot.slane %v2782, 4
        %v2812 = vsel %vm852, %v2811, %v2770
        %v2813 = vrot.slane %v2770, 4
        %v2814 = vsel %vm852, %v2782, %v2813
        %v2816 = vunpack.c.l.s4 1934713408
        %v2817 = vunpack.c.0.s8 %v2816
        %v2818 = vperm.slane %v2812, %v2817
        %v2820 = vunpack.c.l.s4 1934713408
        %v2821 = vunpack.c.0.s8 %v2820
        %v2822 = vperm.slane %v2814, %v2821
        %v2823 = vrot.slane %v2786, 4
        %v2824 = vsel %vm852, %v2823, %v2774
        %v2825 = vrot.slane %v2774, 4
        %v2826 = vsel %vm852, %v2786, %v2825
        %v2828 = vunpack.c.l.s4 1934713408
        %v2829 = vunpack.c.0.s8 %v2828
        %v2830 = vperm.slane %v2824, %v2829
        %v2832 = vunpack.c.l.s4 1934713408
        %v2833 = vunpack.c.0.s8 %v2832
        %v2834 = vperm.slane %v2826, %v2833
        %v2835 = vrot.slane %v2806, 4
        %v2836 = vsel %vm852, %v2835, %v2794
        %v2837 = vrot.slane %v2794, 4
        %v2838 = vsel %vm852, %v2806, %v2837
        %v2840 = vunpack.c.l.s4 1934713408
        %v2841 = vunpack.c.0.s8 %v2840
        %v2842 = vperm.slane %v2836, %v2841
        %v2844 = vunpack.c.l.s4 1934713408
        %v2845 = vunpack.c.0.s8 %v2844
        %v2846 = vperm.slane %v2838, %v2845
        %v2847 = vrot.slane %v2810, 4
        %v2848 = vsel %vm852, %v2847, %v2798
        %v2849 = vrot.slane %v2798, 4
        %v2850 = vsel %vm852, %v2810, %v2849
        %v2852 = vunpack.c.l.s4 1934713408
        %v2853 = vunpack.c.0.s8 %v2852
        %v2854 = vperm.slane %v2848, %v2853
        %v2856 = vunpack.c.l.s4 1934713408
        %v2857 = vunpack.c.0.s8 %v2856
        %v2858 = vperm.slane %v2850, %v2857
        %v2859 = vrot.slane %v2842, 4
        %v2860 = vsel %vm852, %v2859, %v2818
        %v2861 = vrot.slane %v2818, 4
        %v2862 = vsel %vm852, %v2842, %v2861
        %v2863 = vrot.slane %v2846, 4
        %v2864 = vsel %vm852, %v2863, %v2822
        %v2865 = vrot.slane %v2822, 4
        %v2866 = vsel %vm852, %v2846, %v2865
        %v2867 = vrot.slane %v2854, 4
        %v2868 = vsel %vm852, %v2867, %v2830
        %v2869 = vrot.slane %v2830, 4
        %v2870 = vsel %vm852, %v2854, %v2869
        %v2871 = vrot.slane %v2858, 4
        %v2872 = vsel %vm852, %v2871, %v2834
        %v2873 = vrot.slane %v2834, 4
        %v2874 = vsel %vm852, %v2858, %v2873
        %v2875 = vrot.slane %v2726, 4
        %v2876 = vsel %vm852, %v2875, %v2718
        %v2878 = vunpack.c.l.s4 1983009808
        %v2879 = vunpack.c.0.s8 %v2878
        %v2880 = vperm.slane %v2876, %v2879
        %v2881 = vrot.slane %v2730, 4
        %v2882 = vsel %vm852, %v2881, %v2722
        %v2884 = vunpack.c.l.s4 1983009808
        %v2885 = vunpack.c.0.s8 %v2884
        %v2886 = vperm.slane %v2882, %v2885
        %v2887 = vrot.slane %v2742, 4
        %v2888 = vsel %vm852, %v2887, %v2734
        %v2890 = vunpack.c.l.s4 1983009808
        %v2891 = vunpack.c.0.s8 %v2890
        %v2892 = vperm.slane %v2888, %v2891
        %v2893 = vrot.slane %v2746, 4
        %v2894 = vsel %vm852, %v2893, %v2738
        %v2896 = vunpack.c.l.s4 1983009808
        %v2897 = vunpack.c.0.s8 %v2896
        %v2898 = vperm.slane %v2894, %v2897
        %v2899 = vrot.slane %v2886, 4
        %v2900 = vsel %vm852, %v2899, %v2880
        %v2902 = vunpack.c.l.s4 1934713408
        %v2903 = vunpack.c.0.s8 %v2902
        %v2904 = vperm.slane %v2900, %v2903
        %v2905 = vrot.slane %v2898, 4
        %v2906 = vsel %vm852, %v2905, %v2892
        %v2908 = vunpack.c.l.s4 1934713408
        %v2909 = vunpack.c.0.s8 %v2908
        %v2910 = vperm.slane %v2906, %v2909
        %v2911 = vrot.slane %v2910, 4
        %v2912 = vsel %vm852, %v2911, %v2904
        %v2913 = vrot.slane %v2904, 4
        %v2914 = vsel %vm852, %v2910, %v2913
        %2916 = vrot.lane.b32.xlu0 %v2862, 16
        %v2917 = vpop.permute.xlu0 %2916
        %2920 = vrot.lane.b32.xlu0 %v2864, 32
        %v2921 = vpop.permute.xlu0 %2920
        %2924 = vrot.lane.b32.xlu0 %v2866, 48
        %v2925 = vpop.permute.xlu0 %2924
        %2928 = vrot.lane.b32.xlu0 %v2868, 64
        %v2929 = vpop.permute.xlu0 %2928
        %2932 = vrot.lane.b32.xlu0 %v2870, 80
        %v2933 = vpop.permute.xlu0 %2932
        %2936 = vrot.lane.b32.xlu0 %v2872, 96
        %v2937 = vpop.permute.xlu0 %2936
        %2940 = vrot.lane.b32.xlu0 %v2874, 112
        %v2941 = vpop.permute.xlu0 %2940
        %2944 = vrot.lane.b32.xlu0 %v2914, 16
        %v2945 = vpop.permute.xlu0 %2944
        %v2947 = vsel %vm1036, %v2860, %v2917
        %v2948 = vsel %vm1038, %v2947, %v2921
        %v2949 = vsel %vm1040, %v2948, %v2925
        %v2950 = vsel %vm1042, %v2949, %v2929
        %v2951 = vsel %vm1044, %v2950, %v2933
        %v2952 = vsel %vm1046, %v2951, %v2937
        %v2953 = vsel %vm1048, %v2952, %v2941
        %v2954 = vsel %vm1036, %v2912, %v2945
        %v2955 = vld [vmem:[%s3] sm:$0xff]
        %v2956 = vld [vmem:[%s4] sm:$0xff]
        %2958 = vset.pattern.permute.xlu0 0
        %2959 = vperm.xlu0 %2958, %v2956
        %v2960 = vpop.permute.xlu0 %2959
        %vm2962 = vcmask 588800
        %v2964 = vsel %vm2962, %v2955, 0
        %2966 = vmatpush.msra.mxu0 0.0
        %2967 = vmatpush.msra.mxu0 0.0
        %2968 = vmatpush.msra.mxu0 0.0
        %2969 = vmatpush.msra.mxu0 0.0
        %2970 = vmatpush.msra.mxu0 0.0
        %2971 = vmatpush.msra.mxu0 0.0
        %2972 = vmatpush.msra.mxu0 0.0
        %v2973 = vand.u32 %v2953, 4294901760
        %2974 = vmatpush.msra.mxu0 %v2973
        %v2975 = vand.u32 %v2713, 4294901760
        %2976 = vmatpush.msra.mxu0 %v2975
        %v2977 = vand.u32 %v2457, 4294901760
        %2978 = vmatpush.msra.mxu0 %v2977
        %v2979 = vand.u32 %v2249, 4294901760
        %2980 = vmatpush.msra.mxu0 %v2979
        %v2981 = vand.u32 %v2009, 4294901760
        %2982 = vmatpush.msra.mxu0 %v2981
        %v2983 = vand.u32 %v1753, 4294901760
        %2984 = vmatpush.msra.mxu0 %v2983
        %v2985 = vand.u32 %v1545, 4294901760
        %2986 = vmatpush.msra.mxu0 %v2985
        %v2987 = vand.u32 %v1305, 4294901760
        %2988 = vmatpush.msra.mxu0 %v2987
        %v2989 = vand.u32 %v1049, 4294901760
        %2990 = vmatpush.msra.mxu0 %v2989
        %v2991 = vand.u32 %v2964, 4294901760
        %v2992 = vsub.f32 %v2964, %v2991
        %v2993 = vand.u32 %v2992, 4294901760
        %v2994 = vsub.f32 %v2992, %v2993
        %v2995 = vand.u32 %v2994, 4294901760
        %2996 = vmatmul.f32.gmra.mxu0 %v2995
        %v2997 = vpop.f32.mrf.mxu0
        %v2998 = vadd.f32 %v2960, %v2997
        %2999 = vdwg.mxu0
        %3000 = vmatpush.msra.mxu0 0.0
        %3001 = vmatpush.msra.mxu0 0.0
        %3002 = vmatpush.msra.mxu0 0.0
        %3003 = vmatpush.msra.mxu0 0.0
        %3004 = vmatpush.msra.mxu0 0.0
        %3005 = vmatpush.msra.mxu0 0.0
        %3006 = vmatpush.msra.mxu0 0.0
        %v3007 = vand.u32 %v2953, 4294901760
        %v3008 = vsub.f32 %v2953, %v3007
        %v3009 = vand.u32 %v3008, 4294901760
        %v3010 = vsub.f32 %v3008, %v3009
        %v3011 = vand.u32 %v3010, 4294901760
        %3012 = vmatpush.msra.mxu0 %v3011
        %v3013 = vand.u32 %v2713, 4294901760
        %v3014 = vsub.f32 %v2713, %v3013
        %v3015 = vand.u32 %v3014, 4294901760
        %v3016 = vsub.f32 %v3014, %v3015
        %v3017 = vand.u32 %v3016, 4294901760
        %3018 = vmatpush.msra.mxu0 %v3017
        %v3019 = vand.u32 %v2457, 4294901760
        %v3020 = vsub.f32 %v2457, %v3019
        %v3021 = vand.u32 %v3020, 4294901760
        %v3022 = vsub.f32 %v3020, %v3021
        %v3023 = vand.u32 %v3022, 4294901760
        %3024 = vmatpush.msra.mxu0 %v3023
        %v3025 = vand.u32 %v2249, 4294901760
        %v3026 = vsub.f32 %v2249, %v3025
        %v3027 = vand.u32 %v3026, 4294901760
        %v3028 = vsub.f32 %v3026, %v3027
        %v3029 = vand.u32 %v3028, 4294901760
        %3030 = vmatpush.msra.mxu0 %v3029
        %v3031 = vand.u32 %v2009, 4294901760
        %v3032 = vsub.f32 %v2009, %v3031
        %v3033 = vand.u32 %v3032, 4294901760
        %v3034 = vsub.f32 %v3032, %v3033
        %v3035 = vand.u32 %v3034, 4294901760
        %3036 = vmatpush.msra.mxu0 %v3035
        %v3037 = vand.u32 %v1753, 4294901760
        %v3038 = vsub.f32 %v1753, %v3037
        %v3039 = vand.u32 %v3038, 4294901760
        %v3040 = vsub.f32 %v3038, %v3039
        %v3041 = vand.u32 %v3040, 4294901760
        %3042 = vmatpush.msra.mxu0 %v3041
        %v3043 = vand.u32 %v1545, 4294901760
        %v3044 = vsub.f32 %v1545, %v3043
        %v3045 = vand.u32 %v3044, 4294901760
        %v3046 = vsub.f32 %v3044, %v3045
        %v3047 = vand.u32 %v3046, 4294901760
        %3048 = vmatpush.msra.mxu0 %v3047
        %v3049 = vand.u32 %v1305, 4294901760
        %v3050 = vsub.f32 %v1305, %v3049
        %v3051 = vand.u32 %v3050, 4294901760
        %v3052 = vsub.f32 %v3050, %v3051
        %v3053 = vand.u32 %v3052, 4294901760
        %3054 = vmatpush.msra.mxu0 %v3053
        %v3055 = vand.u32 %v1049, 4294901760
        %v3056 = vsub.f32 %v1049, %v3055
        %v3057 = vand.u32 %v3056, 4294901760
        %v3058 = vsub.f32 %v3056, %v3057
        %v3059 = vand.u32 %v3058, 4294901760
        %3060 = vmatpush.msra.mxu0 %v3059
        %v3061 = vand.u32 %v2964, 4294901760
        %3062 = vmatmul.f32.gmra.mxu0 %v3061
        %v3063 = vpop.f32.mrf.mxu0
        %v3064 = vadd.f32 %v2998, %v3063
        %3065 = vdwg.mxu0
        %3066 = vmatpush.msra.mxu0 0.0
        %3067 = vmatpush.msra.mxu0 0.0
        %3068 = vmatpush.msra.mxu0 0.0
        %3069 = vmatpush.msra.mxu0 0.0
        %3070 = vmatpush.msra.mxu0 0.0
        %3071 = vmatpush.msra.mxu0 0.0
        %3072 = vmatpush.msra.mxu0 0.0
        %v3073 = vand.u32 %v2953, 4294901760
        %v3074 = vsub.f32 %v2953, %v3073
        %3075 = vmatpush.msra.mxu0 %v3074
        %v3076 = vand.u32 %v2713, 4294901760
        %v3077 = vsub.f32 %v2713, %v3076
        %3078 = vmatpush.msra.mxu0 %v3077
        %v3079 = vand.u32 %v2457, 4294901760
        %v3080 = vsub.f32 %v2457, %v3079
        %3081 = vmatpush.msra.mxu0 %v3080
        %v3082 = vand.u32 %v2249, 4294901760
        %v3083 = vsub.f32 %v2249, %v3082
        %3084 = vmatpush.msra.mxu0 %v3083
        %v3085 = vand.u32 %v2009, 4294901760
        %v3086 = vsub.f32 %v2009, %v3085
        %3087 = vmatpush.msra.mxu0 %v3086
        %v3088 = vand.u32 %v1753, 4294901760
        %v3089 = vsub.f32 %v1753, %v3088
        %3090 = vmatpush.msra.mxu0 %v3089
        %v3091 = vand.u32 %v1545, 4294901760
        %v3092 = vsub.f32 %v1545, %v3091
        %3093 = vmatpush.msra.mxu0 %v3092
        %v3094 = vand.u32 %v1305, 4294901760
        %v3095 = vsub.f32 %v1305, %v3094
        %3096 = vmatpush.msra.mxu0 %v3095
        %v3097 = vand.u32 %v1049, 4294901760
        %v3098 = vsub.f32 %v1049, %v3097
        %3099 = vmatpush.msra.mxu0 %v3098
        %v3100 = vand.u32 %v2964, 4294901760
        %v3101 = vsub.f32 %v2964, %v3100
        %3102 = vmatmul.f32.gmra.mxu0 %v3101
        %v3103 = vpop.f32.mrf.mxu0
        %v3104 = vadd.f32 %v3064, %v3103
        %3105 = vdwg.mxu0
        %3106 = vmatpush.msra.mxu0 0.0
        %3107 = vmatpush.msra.mxu0 0.0
        %3108 = vmatpush.msra.mxu0 0.0
        %3109 = vmatpush.msra.mxu0 0.0
        %3110 = vmatpush.msra.mxu0 0.0
        %3111 = vmatpush.msra.mxu0 0.0
        %3112 = vmatpush.msra.mxu0 0.0
        %v3113 = vand.u32 %v2953, 4294901760
        %3114 = vmatpush.msra.mxu0 %v3113
        %v3115 = vand.u32 %v2713, 4294901760
        %3116 = vmatpush.msra.mxu0 %v3115
        %v3117 = vand.u32 %v2457, 4294901760
        %3118 = vmatpush.msra.mxu0 %v3117
        %v3119 = vand.u32 %v2249, 4294901760
        %3120 = vmatpush.msra.mxu0 %v3119
        %v3121 = vand.u32 %v2009, 4294901760
        %3122 = vmatpush.msra.mxu0 %v3121
        %v3123 = vand.u32 %v1753, 4294901760
        %3124 = vmatpush.msra.mxu0 %v3123
        %v3125 = vand.u32 %v1545, 4294901760
        %3126 = vmatpush.msra.mxu0 %v3125
        %v3127 = vand.u32 %v1305, 4294901760
        %3128 = vmatpush.msra.mxu0 %v3127
        %v3129 = vand.u32 %v1049, 4294901760
        %3130 = vmatpush.msra.mxu0 %v3129
        %v3131 = vand.u32 %v2964, 4294901760
        %v3132 = vsub.f32 %v2964, %v3131
        %v3133 = vand.u32 %v3132, 4294901760
        %3134 = vmatmul.f32.gmra.mxu0 %v3133
        %v3135 = vpop.f32.mrf.mxu0
        %v3136 = vadd.f32 %v3104, %v3135
        %3137 = vdwg.mxu0
        %3138 = vmatpush.msra.mxu0 0.0
        %3139 = vmatpush.msra.mxu0 0.0
        %3140 = vmatpush.msra.mxu0 0.0
        %3141 = vmatpush.msra.mxu0 0.0
        %3142 = vmatpush.msra.mxu0 0.0
        %3143 = vmatpush.msra.mxu0 0.0
        %3144 = vmatpush.msra.mxu0 0.0
        %v3145 = vand.u32 %v2953, 4294901760
        %v3146 = vsub.f32 %v2953, %v3145
        %v3147 = vand.u32 %v3146, 4294901760
        %3148 = vmatpush.msra.mxu0 %v3147
        %v3149 = vand.u32 %v2713, 4294901760
        %v3150 = vsub.f32 %v2713, %v3149
        %v3151 = vand.u32 %v3150, 4294901760
        %3152 = vmatpush.msra.mxu0 %v3151
        %v3153 = vand.u32 %v2457, 4294901760
        %v3154 = vsub.f32 %v2457, %v3153
        %v3155 = vand.u32 %v3154, 4294901760
        %3156 = vmatpush.msra.mxu0 %v3155
        %v3157 = vand.u32 %v2249, 4294901760
        %v3158 = vsub.f32 %v2249, %v3157
        %v3159 = vand.u32 %v3158, 4294901760
        %3160 = vmatpush.msra.mxu0 %v3159
        %v3161 = vand.u32 %v2009, 4294901760
        %v3162 = vsub.f32 %v2009, %v3161
        %v3163 = vand.u32 %v3162, 4294901760
        %3164 = vmatpush.msra.mxu0 %v3163
        %v3165 = vand.u32 %v1753, 4294901760
        %v3166 = vsub.f32 %v1753, %v3165
        %v3167 = vand.u32 %v3166, 4294901760
        %3168 = vmatpush.msra.mxu0 %v3167
        %v3169 = vand.u32 %v1545, 4294901760
        %v3170 = vsub.f32 %v1545, %v3169
        %v3171 = vand.u32 %v3170, 4294901760
        %3172 = vmatpush.msra.mxu0 %v3171
        %v3173 = vand.u32 %v1305, 4294901760
        %v3174 = vsub.f32 %v1305, %v3173
        %v3175 = vand.u32 %v3174, 4294901760
        %3176 = vmatpush.msra.mxu0 %v3175
        %v3177 = vand.u32 %v1049, 4294901760
        %v3178 = vsub.f32 %v1049, %v3177
        %v3179 = vand.u32 %v3178, 4294901760
        %3180 = vmatpush.msra.mxu0 %v3179
        %v3181 = vand.u32 %v2964, 4294901760
        %3182 = vmatmul.f32.gmra.mxu0 %v3181
        %v3183 = vpop.f32.mrf.mxu0
        %v3184 = vadd.f32 %v3136, %v3183
        %3185 = vdwg.mxu0
        %3186 = vmatpush.msra.mxu0 0.0
        %3187 = vmatpush.msra.mxu0 0.0
        %3188 = vmatpush.msra.mxu0 0.0
        %3189 = vmatpush.msra.mxu0 0.0
        %3190 = vmatpush.msra.mxu0 0.0
        %3191 = vmatpush.msra.mxu0 0.0
        %3192 = vmatpush.msra.mxu0 0.0
        %v3193 = vand.u32 %v2953, 4294901760
        %3194 = vmatpush.msra.mxu0 %v3193
        %v3195 = vand.u32 %v2713, 4294901760
        %3196 = vmatpush.msra.mxu0 %v3195
        %v3197 = vand.u32 %v2457, 4294901760
        %3198 = vmatpush.msra.mxu0 %v3197
        %v3199 = vand.u32 %v2249, 4294901760
        %3200 = vmatpush.msra.mxu0 %v3199
        %v3201 = vand.u32 %v2009, 4294901760
        %3202 = vmatpush.msra.mxu0 %v3201
        %v3203 = vand.u32 %v1753, 4294901760
        %3204 = vmatpush.msra.mxu0 %v3203
        %v3205 = vand.u32 %v1545, 4294901760
        %3206 = vmatpush.msra.mxu0 %v3205
        %v3207 = vand.u32 %v1305, 4294901760
        %3208 = vmatpush.msra.mxu0 %v3207
        %v3209 = vand.u32 %v1049, 4294901760
        %3210 = vmatpush.msra.mxu0 %v3209
        %v3211 = vand.u32 %v2964, 4294901760
        %3212 = vmatmul.f32.gmra.mxu0 %v3211
        %v3213 = vpop.f32.mrf.mxu0
        %v3214 = vadd.f32 %v3184, %v3213
        %3215 = vdwg.mxu0
        %3216 = vmatpush.msra.mxu0 0.0
        %3217 = vmatpush.msra.mxu0 0.0
        %3218 = vmatpush.msra.mxu0 0.0
        %3219 = vmatpush.msra.mxu0 0.0
        %3220 = vmatpush.msra.mxu0 0.0
        %3221 = vmatpush.msra.mxu0 0.0
        %3222 = vmatpush.msra.mxu0 0.0
        %v3223 = vand.u32 %v2954, 4294901760
        %3224 = vmatpush.msra.mxu0 %v3223
        %v3225 = vand.u32 %v2714, 4294901760
        %3226 = vmatpush.msra.mxu0 %v3225
        %v3227 = vand.u32 %v2458, 4294901760
        %3228 = vmatpush.msra.mxu0 %v3227
        %v3229 = vand.u32 %v2250, 4294901760
        %3230 = vmatpush.msra.mxu0 %v3229
        %v3231 = vand.u32 %v2010, 4294901760
        %3232 = vmatpush.msra.mxu0 %v3231
        %v3233 = vand.u32 %v1754, 4294901760
        %3234 = vmatpush.msra.mxu0 %v3233
        %v3235 = vand.u32 %v1546, 4294901760
        %3236 = vmatpush.msra.mxu0 %v3235
        %v3237 = vand.u32 %v1306, 4294901760
        %3238 = vmatpush.msra.mxu0 %v3237
        %v3239 = vand.u32 %v1050, 4294901760
        %3240 = vmatpush.msra.mxu0 %v3239
        %v3241 = vand.u32 %v2964, 4294901760
        %v3242 = vsub.f32 %v2964, %v3241
        %v3243 = vand.u32 %v3242, 4294901760
        %v3244 = vsub.f32 %v3242, %v3243
        %v3245 = vand.u32 %v3244, 4294901760
        %3246 = vmatmul.f32.gmra.mxu0 %v3245
        %v3247 = vpop.f32.mrf.mxu0
        %v3248 = vadd.f32 %v2960, %v3247
        %3249 = vdwg.mxu0
        %3250 = vmatpush.msra.mxu0 0.0
        %3251 = vmatpush.msra.mxu0 0.0
        %3252 = vmatpush.msra.mxu0 0.0
        %3253 = vmatpush.msra.mxu0 0.0
        %3254 = vmatpush.msra.mxu0 0.0
        %3255 = vmatpush.msra.mxu0 0.0
        %3256 = vmatpush.msra.mxu0 0.0
        %v3257 = vand.u32 %v2954, 4294901760
        %v3258 = vsub.f32 %v2954, %v3257
        %v3259 = vand.u32 %v3258, 4294901760
        %v3260 = vsub.f32 %v3258, %v3259
        %v3261 = vand.u32 %v3260, 4294901760
        %3262 = vmatpush.msra.mxu0 %v3261
        %v3263 = vand.u32 %v2714, 4294901760
        %v3264 = vsub.f32 %v2714, %v3263
        %v3265 = vand.u32 %v3264, 4294901760
        %v3266 = vsub.f32 %v3264, %v3265
        %v3267 = vand.u32 %v3266, 4294901760
        %3268 = vmatpush.msra.mxu0 %v3267
        %v3269 = vand.u32 %v2458, 4294901760
        %v3270 = vsub.f32 %v2458, %v3269
        %v3271 = vand.u32 %v3270, 4294901760
        %v3272 = vsub.f32 %v3270, %v3271
        %v3273 = vand.u32 %v3272, 4294901760
        %3274 = vmatpush.msra.mxu0 %v3273
        %v3275 = vand.u32 %v2250, 4294901760
        %v3276 = vsub.f32 %v2250, %v3275
        %v3277 = vand.u32 %v3276, 4294901760
        %v3278 = vsub.f32 %v3276, %v3277
        %v3279 = vand.u32 %v3278, 4294901760
        %3280 = vmatpush.msra.mxu0 %v3279
        %v3281 = vand.u32 %v2010, 4294901760
        %v3282 = vsub.f32 %v2010, %v3281
        %v3283 = vand.u32 %v3282, 4294901760
        %v3284 = vsub.f32 %v3282, %v3283
        %v3285 = vand.u32 %v3284, 4294901760
        %3286 = vmatpush.msra.mxu0 %v3285
        %v3287 = vand.u32 %v1754, 4294901760
        %v3288 = vsub.f32 %v1754, %v3287
        %v3289 = vand.u32 %v3288, 4294901760
        %v3290 = vsub.f32 %v3288, %v3289
        %v3291 = vand.u32 %v3290, 4294901760
        %3292 = vmatpush.msra.mxu0 %v3291
        %v3293 = vand.u32 %v1546, 4294901760
        %v3294 = vsub.f32 %v1546, %v3293
        %v3295 = vand.u32 %v3294, 4294901760
        %v3296 = vsub.f32 %v3294, %v3295
        %v3297 = vand.u32 %v3296, 4294901760
        %3298 = vmatpush.msra.mxu0 %v3297
        %v3299 = vand.u32 %v1306, 4294901760
        %v3300 = vsub.f32 %v1306, %v3299
        %v3301 = vand.u32 %v3300, 4294901760
        %v3302 = vsub.f32 %v3300, %v3301
        %v3303 = vand.u32 %v3302, 4294901760
        %3304 = vmatpush.msra.mxu0 %v3303
        %v3305 = vand.u32 %v1050, 4294901760
        %v3306 = vsub.f32 %v1050, %v3305
        %v3307 = vand.u32 %v3306, 4294901760
        %v3308 = vsub.f32 %v3306, %v3307
        %v3309 = vand.u32 %v3308, 4294901760
        %3310 = vmatpush.msra.mxu0 %v3309
        %v3311 = vand.u32 %v2964, 4294901760
        %3312 = vmatmul.f32.gmra.mxu0 %v3311
        %v3313 = vpop.f32.mrf.mxu0
        %v3314 = vadd.f32 %v3248, %v3313
        %3315 = vdwg.mxu0
        %3316 = vmatpush.msra.mxu0 0.0
        %3317 = vmatpush.msra.mxu0 0.0
        %3318 = vmatpush.msra.mxu0 0.0
        %3319 = vmatpush.msra.mxu0 0.0
        %3320 = vmatpush.msra.mxu0 0.0
        %3321 = vmatpush.msra.mxu0 0.0
        %3322 = vmatpush.msra.mxu0 0.0
        %v3323 = vand.u32 %v2954, 4294901760
        %v3324 = vsub.f32 %v2954, %v3323
        %3325 = vmatpush.msra.mxu0 %v3324
        %v3326 = vand.u32 %v2714, 4294901760
        %v3327 = vsub.f32 %v2714, %v3326
        %3328 = vmatpush.msra.mxu0 %v3327
        %v3329 = vand.u32 %v2458, 4294901760
        %v3330 = vsub.f32 %v2458, %v3329
        %3331 = vmatpush.msra.mxu0 %v3330
        %v3332 = vand.u32 %v2250, 4294901760
        %v3333 = vsub.f32 %v2250, %v3332
        %3334 = vmatpush.msra.mxu0 %v3333
        %v3335 = vand.u32 %v2010, 4294901760
        %v3336 = vsub.f32 %v2010, %v3335
        %3337 = vmatpush.msra.mxu0 %v3336
        %v3338 = vand.u32 %v1754, 4294901760
        %v3339 = vsub.f32 %v1754, %v3338
        %3340 = vmatpush.msra.mxu0 %v3339
        %v3341 = vand.u32 %v1546, 4294901760
        %v3342 = vsub.f32 %v1546, %v3341
        %3343 = vmatpush.msra.mxu0 %v3342
        %v3344 = vand.u32 %v1306, 4294901760
        %v3345 = vsub.f32 %v1306, %v3344
        %3346 = vmatpush.msra.mxu0 %v3345
        %v3347 = vand.u32 %v1050, 4294901760
        %v3348 = vsub.f32 %v1050, %v3347
        %3349 = vmatpush.msra.mxu0 %v3348
        %v3350 = vand.u32 %v2964, 4294901760
        %v3351 = vsub.f32 %v2964, %v3350
        %3352 = vmatmul.f32.gmra.mxu0 %v3351
        %v3353 = vpop.f32.mrf.mxu0
        %v3354 = vadd.f32 %v3314, %v3353
        %3355 = vdwg.mxu0
        %3356 = vmatpush.msra.mxu0 0.0
        %3357 = vmatpush.msra.mxu0 0.0
        %3358 = vmatpush.msra.mxu0 0.0
        %3359 = vmatpush.msra.mxu0 0.0
        %3360 = vmatpush.msra.mxu0 0.0
        %3361 = vmatpush.msra.mxu0 0.0
        %3362 = vmatpush.msra.mxu0 0.0
        %v3363 = vand.u32 %v2954, 4294901760
        %3364 = vmatpush.msra.mxu0 %v3363
        %v3365 = vand.u32 %v2714, 4294901760
        %3366 = vmatpush.msra.mxu0 %v3365
        %v3367 = vand.u32 %v2458, 4294901760
        %3368 = vmatpush.msra.mxu0 %v3367
        %v3369 = vand.u32 %v2250, 4294901760
        %3370 = vmatpush.msra.mxu0 %v3369
        %v3371 = vand.u32 %v2010, 4294901760
        %3372 = vmatpush.msra.mxu0 %v3371
        %v3373 = vand.u32 %v1754, 4294901760
        %3374 = vmatpush.msra.mxu0 %v3373
        %v3375 = vand.u32 %v1546, 4294901760
        %3376 = vmatpush.msra.mxu0 %v3375
        %v3377 = vand.u32 %v1306, 4294901760
        %3378 = vmatpush.msra.mxu0 %v3377
        %v3379 = vand.u32 %v1050, 4294901760
        %3380 = vmatpush.msra.mxu0 %v3379
        %v3381 = vand.u32 %v2964, 4294901760
        %v3382 = vsub.f32 %v2964, %v3381
        %v3383 = vand.u32 %v3382, 4294901760
        %3384 = vmatmul.f32.gmra.mxu0 %v3383
        %v3385 = vpop.f32.mrf.mxu0
        %v3386 = vadd.f32 %v3354, %v3385
        %3387 = vdwg.mxu0
        %3388 = vmatpush.msra.mxu0 0.0
        %3389 = vmatpush.msra.mxu0 0.0
        %3390 = vmatpush.msra.mxu0 0.0
        %3391 = vmatpush.msra.mxu0 0.0
        %3392 = vmatpush.msra.mxu0 0.0
        %3393 = vmatpush.msra.mxu0 0.0
        %3394 = vmatpush.msra.mxu0 0.0
        %v3395 = vand.u32 %v2954, 4294901760
        %v3396 = vsub.f32 %v2954, %v3395
        %v3397 = vand.u32 %v3396, 4294901760
        %3398 = vmatpush.msra.mxu0 %v3397
        %v3399 = vand.u32 %v2714, 4294901760
        %v3400 = vsub.f32 %v2714, %v3399
        %v3401 = vand.u32 %v3400, 4294901760
        %3402 = vmatpush.msra.mxu0 %v3401
        %v3403 = vand.u32 %v2458, 4294901760
        %v3404 = vsub.f32 %v2458, %v3403
        %v3405 = vand.u32 %v3404, 4294901760
        %3406 = vmatpush.msra.mxu0 %v3405
        %v3407 = vand.u32 %v2250, 4294901760
        %v3408 = vsub.f32 %v2250, %v3407
        %v3409 = vand.u32 %v3408, 4294901760
        %3410 = vmatpush.msra.mxu0 %v3409
        %v3411 = vand.u32 %v2010, 4294901760
        %v3412 = vsub.f32 %v2010, %v3411
        %v3413 = vand.u32 %v3412, 4294901760
        %3414 = vmatpush.msra.mxu0 %v3413
        %v3415 = vand.u32 %v1754, 4294901760
        %v3416 = vsub.f32 %v1754, %v3415
        %v3417 = vand.u32 %v3416, 4294901760
        %3418 = vmatpush.msra.mxu0 %v3417
        %v3419 = vand.u32 %v1546, 4294901760
        %v3420 = vsub.f32 %v1546, %v3419
        %v3421 = vand.u32 %v3420, 4294901760
        %3422 = vmatpush.msra.mxu0 %v3421
        %v3423 = vand.u32 %v1306, 4294901760
        %v3424 = vsub.f32 %v1306, %v3423
        %v3425 = vand.u32 %v3424, 4294901760
        %3426 = vmatpush.msra.mxu0 %v3425
        %v3427 = vand.u32 %v1050, 4294901760
        %v3428 = vsub.f32 %v1050, %v3427
        %v3429 = vand.u32 %v3428, 4294901760
        %3430 = vmatpush.msra.mxu0 %v3429
        %v3431 = vand.u32 %v2964, 4294901760
        %3432 = vmatmul.f32.gmra.mxu0 %v3431
        %v3433 = vpop.f32.mrf.mxu0
        %v3434 = vadd.f32 %v3386, %v3433
        %3435 = vdwg.mxu0
        %3436 = vmatpush.msra.mxu0 0.0
        %3437 = vmatpush.msra.mxu0 0.0
        %3438 = vmatpush.msra.mxu0 0.0
        %3439 = vmatpush.msra.mxu0 0.0
        %3440 = vmatpush.msra.mxu0 0.0
        %3441 = vmatpush.msra.mxu0 0.0
        %3442 = vmatpush.msra.mxu0 0.0
        %v3443 = vand.u32 %v2954, 4294901760
        %3444 = vmatpush.msra.mxu0 %v3443
        %v3445 = vand.u32 %v2714, 4294901760
        %3446 = vmatpush.msra.mxu0 %v3445
        %v3447 = vand.u32 %v2458, 4294901760
        %3448 = vmatpush.msra.mxu0 %v3447
        %v3449 = vand.u32 %v2250, 4294901760
        %3450 = vmatpush.msra.mxu0 %v3449
        %v3451 = vand.u32 %v2010, 4294901760
        %3452 = vmatpush.msra.mxu0 %v3451
        %v3453 = vand.u32 %v1754, 4294901760
        %3454 = vmatpush.msra.mxu0 %v3453
        %v3455 = vand.u32 %v1546, 4294901760
        %3456 = vmatpush.msra.mxu0 %v3455
        %v3457 = vand.u32 %v1306, 4294901760
        %3458 = vmatpush.msra.mxu0 %v3457
        %v3459 = vand.u32 %v1050, 4294901760
        %3460 = vmatpush.msra.mxu0 %v3459
        %v3461 = vand.u32 %v2964, 4294901760
        %3462 = vmatmul.f32.gmra.mxu0 %v3461
        %v3463 = vpop.f32.mrf.mxu0
        %v3464 = vadd.f32 %v3434, %v3463
        %3465 = vdwg.mxu0
        %vm3466 = vcmp.ge.f32.partialorder %v3214, 0.0
        %vm3467 = vcmp.ge.f32.partialorder %v3464, 0.0
        %v3468 = vmul.f32 %v3214, 0.2
        %v3469 = vmul.f32 %v3464, 0.2
        %v3470 = vsel %vm3466, %v3214, %v3468
        %v3471 = vsel %vm3467, %v3464, %v3469
        %v3472 = vld [vmem:[%s5] sm:$0xff]
        %v3473 = vld [vmem:[%s6] sm:$0xff]
        %3475 = vset.pattern.permute.xlu0 0
        %3476 = vperm.xlu0 %3475, %v3473
        %v3477 = vpop.permute.xlu0 %3476
        %vm3479 = vcmask 64512
        %v3481 = vsel %vm3479, %v3472, 0
        %3483 = vmatpush.msra.mxu0 0.0
        %3484 = vmatpush.msra.mxu0 0.0
        %3485 = vmatpush.msra.mxu0 0.0
        %3486 = vmatpush.msra.mxu0 0.0
        %3487 = vmatpush.msra.mxu0 0.0
        %3488 = vmatpush.msra.mxu0 0.0
        %3489 = vmatpush.msra.mxu0 0.0
        %3490 = vmatpush.msra.mxu0 0.0
        %3491 = vmatpush.msra.mxu0 0.0
        %3492 = vmatpush.msra.mxu0 0.0
        %3493 = vmatpush.msra.mxu0 0.0
        %3494 = vmatpush.msra.mxu0 0.0
        %3495 = vmatpush.msra.mxu0 0.0
        %3496 = vmatpush.msra.mxu0 0.0
        %3497 = vmatpush.msra.mxu0 0.0
        %v3498 = vand.u32 %v3470, 4294901760
        %3499 = vmatpush.msra.mxu0 %v3498
        %v3500 = vand.u32 %v3481, 4294901760
        %v3501 = vsub.f32 %v3481, %v3500
        %v3502 = vand.u32 %v3501, 4294901760
        %v3503 = vsub.f32 %v3501, %v3502
        %v3504 = vand.u32 %v3503, 4294901760
        %3505 = vmatmul.f32.gmra.mxu0 %v3504
        %v3506 = vpop.f32.mrf.mxu0
        %v3507 = vadd.f32 %v3477, %v3506
        %3508 = vdwg.mxu0
        %3509 = vmatpush.msra.mxu0 0.0
        %3510 = vmatpush.msra.mxu0 0.0
        %3511 = vmatpush.msra.mxu0 0.0
        %3512 = vmatpush.msra.mxu0 0.0
        %3513 = vmatpush.msra.mxu0 0.0
        %3514 = vmatpush.msra.mxu0 0.0
        %3515 = vmatpush.msra.mxu0 0.0
        %3516 = vmatpush.msra.mxu0 0.0
        %3517 = vmatpush.msra.mxu0 0.0
        %3518 = vmatpush.msra.mxu0 0.0
        %3519 = vmatpush.msra.mxu0 0.0
        %3520 = vmatpush.msra.mxu0 0.0
        %3521 = vmatpush.msra.mxu0 0.0
        %3522 = vmatpush.msra.mxu0 0.0
        %3523 = vmatpush.msra.mxu0 0.0
        %v3524 = vand.u32 %v3470, 4294901760
        %v3525 = vsub.f32 %v3470, %v3524
        %v3526 = vand.u32 %v3525, 4294901760
        %v3527 = vsub.f32 %v3525, %v3526
        %v3528 = vand.u32 %v3527, 4294901760
        %3529 = vmatpush.msra.mxu0 %v3528
        %v3530 = vand.u32 %v3481, 4294901760
        %3531 = vmatmul.f32.gmra.mxu0 %v3530
        %v3532 = vpop.f32.mrf.mxu0
        %v3533 = vadd.f32 %v3507, %v3532
        %3534 = vdwg.mxu0
        %3535 = vmatpush.msra.mxu0 0.0
        %3536 = vmatpush.msra.mxu0 0.0
        %3537 = vmatpush.msra.mxu0 0.0
        %3538 = vmatpush.msra.mxu0 0.0
        %3539 = vmatpush.msra.mxu0 0.0
        %3540 = vmatpush.msra.mxu0 0.0
        %3541 = vmatpush.msra.mxu0 0.0
        %3542 = vmatpush.msra.mxu0 0.0
        %3543 = vmatpush.msra.mxu0 0.0
        %3544 = vmatpush.msra.mxu0 0.0
        %3545 = vmatpush.msra.mxu0 0.0
        %3546 = vmatpush.msra.mxu0 0.0
        %3547 = vmatpush.msra.mxu0 0.0
        %3548 = vmatpush.msra.mxu0 0.0
        %3549 = vmatpush.msra.mxu0 0.0
        %v3550 = vand.u32 %v3470, 4294901760
        %v3551 = vsub.f32 %v3470, %v3550
        %3552 = vmatpush.msra.mxu0 %v3551
        %v3553 = vand.u32 %v3481, 4294901760
        %v3554 = vsub.f32 %v3481, %v3553
        %3555 = vmatmul.f32.gmra.mxu0 %v3554
        %v3556 = vpop.f32.mrf.mxu0
        %v3557 = vadd.f32 %v3533, %v3556
        %3558 = vdwg.mxu0
        %3559 = vmatpush.msra.mxu0 0.0
        %3560 = vmatpush.msra.mxu0 0.0
        %3561 = vmatpush.msra.mxu0 0.0
        %3562 = vmatpush.msra.mxu0 0.0
        %3563 = vmatpush.msra.mxu0 0.0
        %3564 = vmatpush.msra.mxu0 0.0
        %3565 = vmatpush.msra.mxu0 0.0
        %3566 = vmatpush.msra.mxu0 0.0
        %3567 = vmatpush.msra.mxu0 0.0
        %3568 = vmatpush.msra.mxu0 0.0
        %3569 = vmatpush.msra.mxu0 0.0
        %3570 = vmatpush.msra.mxu0 0.0
        %3571 = vmatpush.msra.mxu0 0.0
        %3572 = vmatpush.msra.mxu0 0.0
        %3573 = vmatpush.msra.mxu0 0.0
        %v3574 = vand.u32 %v3470, 4294901760
        %3575 = vmatpush.msra.mxu0 %v3574
        %v3576 = vand.u32 %v3481, 4294901760
        %v3577 = vsub.f32 %v3481, %v3576
        %v3578 = vand.u32 %v3577, 4294901760
        %3579 = vmatmul.f32.gmra.mxu0 %v3578
        %v3580 = vpop.f32.mrf.mxu0
        %v3581 = vadd.f32 %v3557, %v3580
        %3582 = vdwg.mxu0
        %3583 = vmatpush.msra.mxu0 0.0
        %3584 = vmatpush.msra.mxu0 0.0
        %3585 = vmatpush.msra.mxu0 0.0
        %3586 = vmatpush.msra.mxu0 0.0
        %3587 = vmatpush.msra.mxu0 0.0
        %3588 = vmatpush.msra.mxu0 0.0
        %3589 = vmatpush.msra.mxu0 0.0
        %3590 = vmatpush.msra.mxu0 0.0
        %3591 = vmatpush.msra.mxu0 0.0
        %3592 = vmatpush.msra.mxu0 0.0
        %3593 = vmatpush.msra.mxu0 0.0
        %3594 = vmatpush.msra.mxu0 0.0
        %3595 = vmatpush.msra.mxu0 0.0
        %3596 = vmatpush.msra.mxu0 0.0
        %3597 = vmatpush.msra.mxu0 0.0
        %v3598 = vand.u32 %v3470, 4294901760
        %v3599 = vsub.f32 %v3470, %v3598
        %v3600 = vand.u32 %v3599, 4294901760
        %3601 = vmatpush.msra.mxu0 %v3600
        %v3602 = vand.u32 %v3481, 4294901760
        %3603 = vmatmul.f32.gmra.mxu0 %v3602
        %v3604 = vpop.f32.mrf.mxu0
        %v3605 = vadd.f32 %v3581, %v3604
        %3606 = vdwg.mxu0
        %3607 = vmatpush.msra.mxu0 0.0
        %3608 = vmatpush.msra.mxu0 0.0
        %3609 = vmatpush.msra.mxu0 0.0
        %3610 = vmatpush.msra.mxu0 0.0
        %3611 = vmatpush.msra.mxu0 0.0
        %3612 = vmatpush.msra.mxu0 0.0
        %3613 = vmatpush.msra.mxu0 0.0
        %3614 = vmatpush.msra.mxu0 0.0
        %3615 = vmatpush.msra.mxu0 0.0
        %3616 = vmatpush.msra.mxu0 0.0
        %3617 = vmatpush.msra.mxu0 0.0
        %3618 = vmatpush.msra.mxu0 0.0
        %3619 = vmatpush.msra.mxu0 0.0
        %3620 = vmatpush.msra.mxu0 0.0
        %3621 = vmatpush.msra.mxu0 0.0
        %v3622 = vand.u32 %v3470, 4294901760
        %3623 = vmatpush.msra.mxu0 %v3622
        %v3624 = vand.u32 %v3481, 4294901760
        %3625 = vmatmul.f32.gmra.mxu0 %v3624
        %v3626 = vpop.f32.mrf.mxu0
        %v3627 = vadd.f32 %v3605, %v3626
        %3628 = vdwg.mxu0
        %3629 = vmatpush.msra.mxu0 0.0
        %3630 = vmatpush.msra.mxu0 0.0
        %3631 = vmatpush.msra.mxu0 0.0
        %3632 = vmatpush.msra.mxu0 0.0
        %3633 = vmatpush.msra.mxu0 0.0
        %3634 = vmatpush.msra.mxu0 0.0
        %3635 = vmatpush.msra.mxu0 0.0
        %3636 = vmatpush.msra.mxu0 0.0
        %3637 = vmatpush.msra.mxu0 0.0
        %3638 = vmatpush.msra.mxu0 0.0
        %3639 = vmatpush.msra.mxu0 0.0
        %3640 = vmatpush.msra.mxu0 0.0
        %3641 = vmatpush.msra.mxu0 0.0
        %3642 = vmatpush.msra.mxu0 0.0
        %3643 = vmatpush.msra.mxu0 0.0
        %v3644 = vand.u32 %v3471, 4294901760
        %3645 = vmatpush.msra.mxu0 %v3644
        %v3646 = vand.u32 %v3481, 4294901760
        %v3647 = vsub.f32 %v3481, %v3646
        %v3648 = vand.u32 %v3647, 4294901760
        %v3649 = vsub.f32 %v3647, %v3648
        %v3650 = vand.u32 %v3649, 4294901760
        %3651 = vmatmul.f32.gmra.mxu0 %v3650
        %v3652 = vpop.f32.mrf.mxu0
        %v3653 = vadd.f32 %v3477, %v3652
        %3654 = vdwg.mxu0
        %3655 = vmatpush.msra.mxu0 0.0
        %3656 = vmatpush.msra.mxu0 0.0
        %3657 = vmatpush.msra.mxu0 0.0
        %3658 = vmatpush.msra.mxu0 0.0
        %3659 = vmatpush.msra.mxu0 0.0
        %3660 = vmatpush.msra.mxu0 0.0
        %3661 = vmatpush.msra.mxu0 0.0
        %3662 = vmatpush.msra.mxu0 0.0
        %3663 = vmatpush.msra.mxu0 0.0
        %3664 = vmatpush.msra.mxu0 0.0
        %3665 = vmatpush.msra.mxu0 0.0
        %3666 = vmatpush.msra.mxu0 0.0
        %3667 = vmatpush.msra.mxu0 0.0
        %3668 = vmatpush.msra.mxu0 0.0
        %3669 = vmatpush.msra.mxu0 0.0
        %v3670 = vand.u32 %v3471, 4294901760
        %v3671 = vsub.f32 %v3471, %v3670
        %v3672 = vand.u32 %v3671, 4294901760
        %v3673 = vsub.f32 %v3671, %v3672
        %v3674 = vand.u32 %v3673, 4294901760
        %3675 = vmatpush.msra.mxu0 %v3674
        %v3676 = vand.u32 %v3481, 4294901760
        %3677 = vmatmul.f32.gmra.mxu0 %v3676
        %v3678 = vpop.f32.mrf.mxu0
        %v3679 = vadd.f32 %v3653, %v3678
        %3680 = vdwg.mxu0
        %3681 = vmatpush.msra.mxu0 0.0
        %3682 = vmatpush.msra.mxu0 0.0
        %3683 = vmatpush.msra.mxu0 0.0
        %3684 = vmatpush.msra.mxu0 0.0
        %3685 = vmatpush.msra.mxu0 0.0
        %3686 = vmatpush.msra.mxu0 0.0
        %3687 = vmatpush.msra.mxu0 0.0
        %3688 = vmatpush.msra.mxu0 0.0
        %3689 = vmatpush.msra.mxu0 0.0
        %3690 = vmatpush.msra.mxu0 0.0
        %3691 = vmatpush.msra.mxu0 0.0
        %3692 = vmatpush.msra.mxu0 0.0
        %3693 = vmatpush.msra.mxu0 0.0
        %3694 = vmatpush.msra.mxu0 0.0
        %3695 = vmatpush.msra.mxu0 0.0
        %v3696 = vand.u32 %v3471, 4294901760
        %v3697 = vsub.f32 %v3471, %v3696
        %3698 = vmatpush.msra.mxu0 %v3697
        %v3699 = vand.u32 %v3481, 4294901760
        %v3700 = vsub.f32 %v3481, %v3699
        %3701 = vmatmul.f32.gmra.mxu0 %v3700
        %v3702 = vpop.f32.mrf.mxu0
        %v3703 = vadd.f32 %v3679, %v3702
        %3704 = vdwg.mxu0
        %3705 = vmatpush.msra.mxu0 0.0
        %3706 = vmatpush.msra.mxu0 0.0
        %3707 = vmatpush.msra.mxu0 0.0
        %3708 = vmatpush.msra.mxu0 0.0
        %3709 = vmatpush.msra.mxu0 0.0
        %3710 = vmatpush.msra.mxu0 0.0
        %3711 = vmatpush.msra.mxu0 0.0
        %3712 = vmatpush.msra.mxu0 0.0
        %3713 = vmatpush.msra.mxu0 0.0
        %3714 = vmatpush.msra.mxu0 0.0
        %3715 = vmatpush.msra.mxu0 0.0
        %3716 = vmatpush.msra.mxu0 0.0
        %3717 = vmatpush.msra.mxu0 0.0
        %3718 = vmatpush.msra.mxu0 0.0
        %3719 = vmatpush.msra.mxu0 0.0
        %v3720 = vand.u32 %v3471, 4294901760
        %3721 = vmatpush.msra.mxu0 %v3720
        %v3722 = vand.u32 %v3481, 4294901760
        %v3723 = vsub.f32 %v3481, %v3722
        %v3724 = vand.u32 %v3723, 4294901760
        %3725 = vmatmul.f32.gmra.mxu0 %v3724
        %v3726 = vpop.f32.mrf.mxu0
        %v3727 = vadd.f32 %v3703, %v3726
        %3728 = vdwg.mxu0
        %3729 = vmatpush.msra.mxu0 0.0
        %3730 = vmatpush.msra.mxu0 0.0
        %3731 = vmatpush.msra.mxu0 0.0
        %3732 = vmatpush.msra.mxu0 0.0
        %3733 = vmatpush.msra.mxu0 0.0
        %3734 = vmatpush.msra.mxu0 0.0
        %3735 = vmatpush.msra.mxu0 0.0
        %3736 = vmatpush.msra.mxu0 0.0
        %3737 = vmatpush.msra.mxu0 0.0
        %3738 = vmatpush.msra.mxu0 0.0
        %3739 = vmatpush.msra.mxu0 0.0
        %3740 = vmatpush.msra.mxu0 0.0
        %3741 = vmatpush.msra.mxu0 0.0
        %3742 = vmatpush.msra.mxu0 0.0
        %3743 = vmatpush.msra.mxu0 0.0
        %v3744 = vand.u32 %v3471, 4294901760
        %v3745 = vsub.f32 %v3471, %v3744
        %v3746 = vand.u32 %v3745, 4294901760
        %3747 = vmatpush.msra.mxu0 %v3746
        %v3748 = vand.u32 %v3481, 4294901760
        %3749 = vmatmul.f32.gmra.mxu0 %v3748
        %v3750 = vpop.f32.mrf.mxu0
        %v3751 = vadd.f32 %v3727, %v3750
        %3752 = vdwg.mxu0
        %3753 = vmatpush.msra.mxu0 0.0
        %3754 = vmatpush.msra.mxu0 0.0
        %3755 = vmatpush.msra.mxu0 0.0
        %3756 = vmatpush.msra.mxu0 0.0
        %3757 = vmatpush.msra.mxu0 0.0
        %3758 = vmatpush.msra.mxu0 0.0
        %3759 = vmatpush.msra.mxu0 0.0
        %3760 = vmatpush.msra.mxu0 0.0
        %3761 = vmatpush.msra.mxu0 0.0
        %3762 = vmatpush.msra.mxu0 0.0
        %3763 = vmatpush.msra.mxu0 0.0
        %3764 = vmatpush.msra.mxu0 0.0
        %3765 = vmatpush.msra.mxu0 0.0
        %3766 = vmatpush.msra.mxu0 0.0
        %3767 = vmatpush.msra.mxu0 0.0
        %v3768 = vand.u32 %v3471, 4294901760
        %3769 = vmatpush.msra.mxu0 %v3768
        %v3770 = vand.u32 %v3481, 4294901760
        %3771 = vmatmul.f32.gmra.mxu0 %v3770
        %v3772 = vpop.f32.mrf.mxu0
        %v3773 = vadd.f32 %v3751, %v3772
        %3774 = vdwg.mxu0
        %vm3775 = vcmp.ge.f32.partialorder %v3627, 0.0
        %vm3776 = vcmp.ge.f32.partialorder %v3773, 0.0
        %v3777 = vmul.f32 %v3627, 0.2
        %v3778 = vmul.f32 %v3773, 0.2
        %v3779 = vsel %vm3775, %v3627, %v3777
        %v3780 = vsel %vm3776, %v3773, %v3778
        %3781 = vst.msk [vmem:[#allocation3] sm:$0xff] %vm618, 0.0
        %vm3782 = vcmask 1024
        %3783 = vst.msk [vmem:[#allocation3 + $0x8] sm:$0x3] %vm3782, 0.0
        %3784 = vst.msk [vmem:[#allocation3 + $0x10] sm:$0xff] %vm618, 0.0
        %3785 = vst.msk [vmem:[#allocation3 + $0x18] sm:$0x3] %vm3782, 0.0
        %3786 = vst.msk [vmem:[#allocation3 + $0x20] sm:$0xff] %vm618, 0.0
        %3787 = vst.msk [vmem:[#allocation3 + $0x28] sm:$0x3] %vm3782, 0.0
        %3788 = vst.msk [vmem:[#allocation3 + $0x30] sm:$0xff] %vm618, 0.0
        %3789 = vst.msk [vmem:[#allocation3 + $0x38] sm:$0x3] %vm3782, 0.0
        %3790 = vst.msk [vmem:[#allocation3 + $0x40] sm:$0xff] %vm618, 0.0
        %3791 = vst.msk [vmem:[#allocation3 + $0x48] sm:$0x3] %vm3782, 0.0
        %3792 = vst.msk [vmem:[#allocation3 + $0x50] sm:$0xff] %vm618, 0.0
        %3793 = vst.msk [vmem:[#allocation3 + $0x58] sm:$0x3] %vm3782, 0.0
        %3794 = vst.msk [vmem:[#allocation3 + $0x60] sm:$0xff] %vm618, 0.0
        %3795 = vst.msk [vmem:[#allocation3 + $0x68] sm:$0x3] %vm3782, 0.0
        %3796 = vst.msk [vmem:[#allocation3 + $0x70] sm:$0xff] %vm618, 0.0
        %3797 = vst.msk [vmem:[#allocation3 + $0x78] sm:$0x3] %vm3782, 0.0
        %3798 = vst.msk [vmem:[#allocation3] sm:$0xff] %vm636, 0.0
        %vm3799 = vcmask 140424
        %3800 = vst.msk [vmem:[#allocation3 + $0x8] sm:$0x3] %vm3799, 0.0
        %3801 = vst.msk [vmem:[#allocation3 + $0x10] sm:$0xff] %vm636, 0.0
        %3802 = vst.msk [vmem:[#allocation3 + $0x18] sm:$0x3] %vm3799, 0.0
        %3803 = vst.msk [vmem:[#allocation3 + $0x20] sm:$0xff] %vm636, 0.0
        %3804 = vst.msk [vmem:[#allocation3 + $0x28] sm:$0x3] %vm3799, 0.0
        %3805 = vst.msk [vmem:[#allocation3 + $0x30] sm:$0xff] %vm636, 0.0
        %3806 = vst.msk [vmem:[#allocation3 + $0x38] sm:$0x3] %vm3799, 0.0
        %3807 = vst.msk [vmem:[#allocation3 + $0x40] sm:$0xff] %vm636, 0.0
        %3808 = vst.msk [vmem:[#allocation3 + $0x48] sm:$0x3] %vm3799, 0.0
        %3809 = vst.msk [vmem:[#allocation3 + $0x50] sm:$0xff] %vm636, 0.0
        %3810 = vst.msk [vmem:[#allocation3 + $0x58] sm:$0x3] %vm3799, 0.0
        %3811 = vst.msk [vmem:[#allocation3 + $0x60] sm:$0xff] %vm636, 0.0
        %3812 = vst.msk [vmem:[#allocation3 + $0x68] sm:$0x3] %vm3799, 0.0
        %3813 = vst.msk [vmem:[#allocation3 + $0x70] sm:$0xff] %vm636, 0.0
        %3814 = vst.msk [vmem:[#allocation3 + $0x78] sm:$0x3] %vm3799, 0.0
        %3816 = vrot.lane.b32.xlu0 %v3779, 112
        %v3817 = vpop.permute.xlu0 %3816
        %3819 = vrot.lane.b32.xlu0 %v3779, 96
        %v3820 = vpop.permute.xlu0 %3819
        %3822 = vrot.lane.b32.xlu0 %v3779, 80
        %v3823 = vpop.permute.xlu0 %3822
        %3825 = vrot.lane.b32.xlu0 %v3779, 64
        %v3826 = vpop.permute.xlu0 %3825
        %3828 = vrot.lane.b32.xlu0 %v3779, 48
        %v3829 = vpop.permute.xlu0 %3828
        %3831 = vrot.lane.b32.xlu0 %v3779, 32
        %v3832 = vpop.permute.xlu0 %3831
        %3834 = vrot.lane.b32.xlu0 %v3779, 16
        %v3835 = vpop.permute.xlu0 %3834
        %3838 = vrot.lane.b32.xlu0 %v3780, 112
        %v3839 = vpop.permute.xlu0 %3838
        %v3841 = vrot.slane %v3820, 4
        %v3842 = vsel %vm852, %v3841, %v3779
        %v3843 = vrot.slane %v3779, 4
        %v3844 = vsel %vm852, %v3820, %v3843
        %v3846 = vunpack.c.l.s4 1983009808
        %v3847 = vunpack.c.0.s8 %v3846
        %v3848 = vperm.slane %v3842, %v3847
        %v3850 = vunpack.c.l.s4 1983009808
        %v3851 = vunpack.c.0.s8 %v3850
        %v3852 = vperm.slane %v3844, %v3851
        %v3853 = vrot.slane %v3823, 4
        %v3854 = vsel %vm852, %v3853, %v3817
        %v3855 = vrot.slane %v3817, 4
        %v3856 = vsel %vm852, %v3823, %v3855
        %v3858 = vunpack.c.l.s4 1983009808
        %v3859 = vunpack.c.0.s8 %v3858
        %v3860 = vperm.slane %v3854, %v3859
        %v3862 = vunpack.c.l.s4 1983009808
        %v3863 = vunpack.c.0.s8 %v3862
        %v3864 = vperm.slane %v3856, %v3863
        %v3865 = vrot.slane %v3832, 4
        %v3866 = vsel %vm852, %v3865, %v3826
        %v3867 = vrot.slane %v3826, 4
        %v3868 = vsel %vm852, %v3832, %v3867
        %v3870 = vunpack.c.l.s4 1983009808
        %v3871 = vunpack.c.0.s8 %v3870
        %v3872 = vperm.slane %v3866, %v3871
        %v3874 = vunpack.c.l.s4 1983009808
        %v3875 = vunpack.c.0.s8 %v3874
        %v3876 = vperm.slane %v3868, %v3875
        %v3877 = vrot.slane %v3835, 4
        %v3878 = vsel %vm852, %v3877, %v3829
        %v3879 = vrot.slane %v3829, 4
        %v3880 = vsel %vm852, %v3835, %v3879
        %v3882 = vunpack.c.l.s4 1983009808
        %v3883 = vunpack.c.0.s8 %v3882
        %v3884 = vperm.slane %v3878, %v3883
        %v3886 = vunpack.c.l.s4 1983009808
        %v3887 = vunpack.c.0.s8 %v3886
        %v3888 = vperm.slane %v3880, %v3887
        %v3889 = vrot.slane %v3860, 4
        %v3890 = vsel %vm852, %v3889, %v3848
        %v3891 = vrot.slane %v3848, 4
        %v3892 = vsel %vm852, %v3860, %v3891
        %v3894 = vunpack.c.l.s4 1934713408
        %v3895 = vunpack.c.0.s8 %v3894
        %v3896 = vperm.slane %v3890, %v3895
        %v3898 = vunpack.c.l.s4 1934713408
        %v3899 = vunpack.c.0.s8 %v3898
        %v3900 = vperm.slane %v3892, %v3899
        %v3901 = vrot.slane %v3864, 4
        %v3902 = vsel %vm852, %v3901, %v3852
        %v3903 = vrot.slane %v3852, 4
        %v3904 = vsel %vm852, %v3864, %v3903
        %v3906 = vunpack.c.l.s4 1934713408
        %v3907 = vunpack.c.0.s8 %v3906
        %v3908 = vperm.slane %v3902, %v3907
        %v3910 = vunpack.c.l.s4 1934713408
        %v3911 = vunpack.c.0.s8 %v3910
        %v3912 = vperm.slane %v3904, %v3911
        %v3913 = vrot.slane %v3884, 4
        %v3914 = vsel %vm852, %v3913, %v3872
        %v3915 = vrot.slane %v3872, 4
        %v3916 = vsel %vm852, %v3884, %v3915
        %v3918 = vunpack.c.l.s4 1934713408
        %v3919 = vunpack.c.0.s8 %v3918
        %v3920 = vperm.slane %v3914, %v3919
        %v3922 = vunpack.c.l.s4 1934713408
        %v3923 = vunpack.c.0.s8 %v3922
        %v3924 = vperm.slane %v3916, %v3923
        %v3925 = vrot.slane %v3888, 4
        %v3926 = vsel %vm852, %v3925, %v3876
        %v3927 = vrot.slane %v3876, 4
        %v3928 = vsel %vm852, %v3888, %v3927
        %v3930 = vunpack.c.l.s4 1934713408
        %v3931 = vunpack.c.0.s8 %v3930
        %v3932 = vperm.slane %v3926, %v3931
        %v3934 = vunpack.c.l.s4 1934713408
        %v3935 = vunpack.c.0.s8 %v3934
        %v3936 = vperm.slane %v3928, %v3935
        %v3937 = vrot.slane %v3920, 4
        %v3938 = vsel %vm852, %v3937, %v3896
        %v3939 = vrot.slane %v3896, 4
        %v3940 = vsel %vm852, %v3920, %v3939
        %v3941 = vrot.slane %v3924, 4
        %v3942 = vsel %vm852, %v3941, %v3900
        %v3943 = vrot.slane %v3900, 4
        %v3944 = vsel %vm852, %v3924, %v3943
        %v3945 = vrot.slane %v3932, 4
        %v3946 = vsel %vm852, %v3945, %v3908
        %v3947 = vrot.slane %v3908, 4
        %v3948 = vsel %vm852, %v3932, %v3947
        %v3949 = vrot.slane %v3936, 4
        %v3950 = vsel %vm852, %v3949, %v3912
        %v3951 = vrot.slane %v3912, 4
        %v3952 = vsel %vm852, %v3936, %v3951
        %v3953 = vrot.slane %v3780, 4
        %v3954 = vsel %vm852, 0.0, %v3953
        %v3956 = vunpack.c.l.s4 1983009808
        %v3957 = vunpack.c.0.s8 %v3956
        %v3958 = vperm.slane %v3780, %v3957
        %v3960 = vunpack.c.l.s4 1983009808
        %v3961 = vunpack.c.0.s8 %v3960
        %v3962 = vperm.slane %v3954, %v3961
        %v3963 = vrot.slane %v3839, 4
        %v3964 = vsel %vm852, 0.0, %v3963
        %v3966 = vunpack.c.l.s4 1983009808
        %v3967 = vunpack.c.0.s8 %v3966
        %v3968 = vperm.slane %v3839, %v3967
        %v3970 = vunpack.c.l.s4 1983009808
        %v3971 = vunpack.c.0.s8 %v3970
        %v3972 = vperm.slane %v3964, %v3971
        %v3973 = vrot.slane %v3968, 4
        %v3974 = vsel %vm852, %v3973, %v3958
        %v3975 = vrot.slane %v3958, 4
        %v3976 = vsel %vm852, %v3968, %v3975
        %v3978 = vunpack.c.l.s4 1934713408
        %v3979 = vunpack.c.0.s8 %v3978
        %v3980 = vperm.slane %v3974, %v3979
        %v3982 = vunpack.c.l.s4 1934713408
        %v3983 = vunpack.c.0.s8 %v3982
        %v3984 = vperm.slane %v3976, %v3983
        %v3985 = vrot.slane %v3972, 4
        %v3986 = vsel %vm852, %v3985, %v3962
        %v3987 = vrot.slane %v3962, 4
        %v3988 = vsel %vm852, %v3972, %v3987
        %v3990 = vunpack.c.l.s4 1934713408
        %v3991 = vunpack.c.0.s8 %v3990
        %v3992 = vperm.slane %v3986, %v3991
        %v3994 = vunpack.c.l.s4 1934713408
        %v3995 = vunpack.c.0.s8 %v3994
        %v3996 = vperm.slane %v3988, %v3995
        %v3997 = vrot.slane %v3980, 4
        %v3998 = vsel %vm852, 0.0, %v3997
        %v3999 = vrot.slane %v3984, 4
        %v4000 = vsel %vm852, 0.0, %v3999
        %v4001 = vrot.slane %v3992, 4
        %v4002 = vsel %vm852, 0.0, %v4001
        %v4003 = vrot.slane %v3996, 4
        %v4004 = vsel %vm852, 0.0, %v4003
        %4021 = vrot.lane.b32.xlu0 %v3938, 1
        %v4022 = vpop.permute.xlu0 %4021
        %4023 = vrot.lane.b32.xlu0 %v3980, 1
        %v4024 = vpop.permute.xlu0 %4023
        %4025 = vrot.lane.b32.xlu0 %v3940, 1
        %v4026 = vpop.permute.xlu0 %4025
        %4027 = vrot.lane.b32.xlu0 %v3998, 1
        %v4028 = vpop.permute.xlu0 %4027
        %4029 = vrot.lane.b32.xlu0 %v3942, 1
        %v4030 = vpop.permute.xlu0 %4029
        %4031 = vrot.lane.b32.xlu0 %v3984, 1
        %v4032 = vpop.permute.xlu0 %4031
        %4033 = vrot.lane.b32.xlu0 %v3944, 1
        %v4034 = vpop.permute.xlu0 %4033
        %4035 = vrot.lane.b32.xlu0 %v4000, 1
        %v4036 = vpop.permute.xlu0 %4035
        %4037 = vrot.lane.b32.xlu0 %v3946, 1
        %v4038 = vpop.permute.xlu0 %4037
        %4039 = vrot.lane.b32.xlu0 %v3992, 1
        %v4040 = vpop.permute.xlu0 %4039
        %4041 = vrot.lane.b32.xlu0 %v3948, 1
        %v4042 = vpop.permute.xlu0 %4041
        %4043 = vrot.lane.b32.xlu0 %v4002, 1
        %v4044 = vpop.permute.xlu0 %4043
        %4045 = vrot.lane.b32.xlu0 %v3950, 1
        %v4046 = vpop.permute.xlu0 %4045
        %4047 = vrot.lane.b32.xlu0 %v3996, 1
        %v4048 = vpop.permute.xlu0 %4047
        %4049 = vrot.lane.b32.xlu0 %v3952, 1
        %v4050 = vpop.permute.xlu0 %4049
        %4051 = vrot.lane.b32.xlu0 %v4004, 1
        %v4052 = vpop.permute.xlu0 %4051
        %4069 = vst.msk [vmem:[#allocation3] sm:$0xff] %vm694, %v4022
        %vm4070 = vcmask 132104
        %4071 = vst.msk [vmem:[#allocation3 + $0x8] sm:$0x3] %vm4070, %v4024
        %4072 = vst.msk [vmem:[#allocation3 + $0x10] sm:$0xff] %vm694, %v4026
        %4073 = vst.msk [vmem:[#allocation3 + $0x18] sm:$0x3] %vm4070, %v4028
        %4074 = vst.msk [vmem:[#allocation3 + $0x20] sm:$0xff] %vm694, %v4030
        %4075 = vst.msk [vmem:[#allocation3 + $0x28] sm:$0x3] %vm4070, %v4032
        %4076 = vst.msk [vmem:[#allocation3 + $0x30] sm:$0xff] %vm694, %v4034
        %4077 = vst.msk [vmem:[#allocation3 + $0x38] sm:$0x3] %vm4070, %v4036
        %4078 = vst.msk [vmem:[#allocation3 + $0x40] sm:$0xff] %vm694, %v4038
        %4079 = vst.msk [vmem:[#allocation3 + $0x48] sm:$0x3] %vm4070, %v4040
        %4080 = vst.msk [vmem:[#allocation3 + $0x50] sm:$0xff] %vm694, %v4042
        %4081 = vst.msk [vmem:[#allocation3 + $0x58] sm:$0x3] %vm4070, %v4044
        %4082 = vst.msk [vmem:[#allocation3 + $0x60] sm:$0xff] %vm694, %v4046
        %4083 = vst.msk [vmem:[#allocation3 + $0x68] sm:$0x3] %vm4070, %v4048
        %4084 = vst.msk [vmem:[#allocation3 + $0x70] sm:$0xff] %vm694, %v4050
        %4085 = vst.msk [vmem:[#allocation3 + $0x78] sm:$0x3] %vm4070, %v4052
        // Predicated region
        $region187: #{bottleneck_forward.1} parent=157 // pred_check
          %p4086 = pneg %p756
        $region188: #{bottleneck_forward.1} parent=157 // pred_check_branch
          %4088 = sbr.rel (%p4086) target = $region190
        $region189: #{bottleneck_forward.1} parent=157 // pred_region
          %vm4089 = vcmask 139264
          %4090 = vst.msk [vmem:[#allocation3] sm:$0x1] %vm4089, 0.0
          %4091 = vst.msk [vmem:[#allocation3 + $0x10] sm:$0x1] %vm4089, 0.0
          %4092 = vst.msk [vmem:[#allocation3 + $0x20] sm:$0x1] %vm4089, 0.0
          %4093 = vst.msk [vmem:[#allocation3 + $0x30] sm:$0x1] %vm4089, 0.0
          %4094 = vst.msk [vmem:[#allocation3 + $0x40] sm:$0x1] %vm4089, 0.0
          %4095 = vst.msk [vmem:[#allocation3 + $0x50] sm:$0x1] %vm4089, 0.0
          %4096 = vst.msk [vmem:[#allocation3 + $0x60] sm:$0x1] %vm4089, 0.0
          %4097 = vst.msk [vmem:[#allocation3 + $0x70] sm:$0x1] %vm4089, 0.0
        $region190: #{bottleneck_forward.1} parent=157 // pred_fallthru
          _
        // Predicated region
        $region191: #{bottleneck_forward.1} parent=157 // pred_check
          %p4098 = pneg %p822
        $region192: #{bottleneck_forward.1} parent=157 // pred_check_branch
          %4100 = sbr.rel (%p4098) target = $region194
        $region193: #{bottleneck_forward.1} parent=157 // pred_region
          %vm4101 = vcmask 139264
          %4102 = vst.msk [vmem:[#allocation3 + $0x9] sm:$0x1] %vm4101, 0.0
          %4103 = vst.msk [vmem:[#allocation3 + $0x19] sm:$0x1] %vm4101, 0.0
          %4104 = vst.msk [vmem:[#allocation3 + $0x29] sm:$0x1] %vm4101, 0.0
          %4105 = vst.msk [vmem:[#allocation3 + $0x39] sm:$0x1] %vm4101, 0.0
          %4106 = vst.msk [vmem:[#allocation3 + $0x49] sm:$0x1] %vm4101, 0.0
          %4107 = vst.msk [vmem:[#allocation3 + $0x59] sm:$0x1] %vm4101, 0.0
          %4108 = vst.msk [vmem:[#allocation3 + $0x69] sm:$0x1] %vm4101, 0.0
          %4109 = vst.msk [vmem:[#allocation3 + $0x79] sm:$0x1] %vm4101, 0.0
        $region194: #{bottleneck_forward.1} parent=157 // pred_fallthru
          _
        %v4110 = vld [vmem:[#allocation3] sm:$0xff]
        %v4111 = vld [vmem:[#allocation3 + $0x10] sm:$0xff]
        %v4112 = vld [vmem:[#allocation3 + $0x20] sm:$0xff]
        %v4113 = vld [vmem:[#allocation3 + $0x30] sm:$0xff]
        %v4114 = vld [vmem:[#allocation3 + $0x40] sm:$0xff]
        %v4115 = vld [vmem:[#allocation3 + $0x50] sm:$0xff]
        %v4116 = vld [vmem:[#allocation3 + $0x60] sm:$0xff]
        %v4117 = vld [vmem:[#allocation3 + $0x70] sm:$0xff]
        %v4118 = vrot.slane %v4112, 4
        %v4119 = vsel %vm852, %v4118, %v4110
        %v4120 = vrot.slane %v4110, 4
        %v4121 = vsel %vm852, %v4112, %v4120
        %v4123 = vunpack.c.l.s4 1983009808
        %v4124 = vunpack.c.0.s8 %v4123
        %v4125 = vperm.slane %v4119, %v4124
        %v4127 = vunpack.c.l.s4 1983009808
        %v4128 = vunpack.c.0.s8 %v4127
        %v4129 = vperm.slane %v4121, %v4128
        %v4130 = vrot.slane %v4113, 4
        %v4131 = vsel %vm852, %v4130, %v4111
        %v4132 = vrot.slane %v4111, 4
        %v4133 = vsel %vm852, %v4113, %v4132
        %v4135 = vunpack.c.l.s4 1983009808
        %v4136 = vunpack.c.0.s8 %v4135
        %v4137 = vperm.slane %v4131, %v4136
        %v4139 = vunpack.c.l.s4 1983009808
        %v4140 = vunpack.c.0.s8 %v4139
        %v4141 = vperm.slane %v4133, %v4140
        %v4142 = vrot.slane %v4116, 4
        %v4143 = vsel %vm852, %v4142, %v4114
        %v4144 = vrot.slane %v4114, 4
        %v4145 = vsel %vm852, %v4116, %v4144
        %v4147 = vunpack.c.l.s4 1983009808
        %v4148 = vunpack.c.0.s8 %v4147
        %v4149 = vperm.slane %v4143, %v4148
        %v4151 = vunpack.c.l.s4 1983009808
        %v4152 = vunpack.c.0.s8 %v4151
        %v4153 = vperm.slane %v4145, %v4152
        %v4154 = vrot.slane %v4117, 4
        %v4155 = vsel %vm852, %v4154, %v4115
        %v4156 = vrot.slane %v4115, 4
        %v4157 = vsel %vm852, %v4117, %v4156
        %v4159 = vunpack.c.l.s4 1983009808
        %v4160 = vunpack.c.0.s8 %v4159
        %v4161 = vperm.slane %v4155, %v4160
        %v4163 = vunpack.c.l.s4 1983009808
        %v4164 = vunpack.c.0.s8 %v4163
        %v4165 = vperm.slane %v4157, %v4164
        %v4166 = vrot.slane %v4137, 4
        %v4167 = vsel %vm852, %v4166, %v4125
        %v4168 = vrot.slane %v4125, 4
        %v4169 = vsel %vm852, %v4137, %v4168
        %v4171 = vunpack.c.l.s4 1934713408
        %v4172 = vunpack.c.0.s8 %v4171
        %v4173 = vperm.slane %v4167, %v4172
        %v4175 = vunpack.c.l.s4 1934713408
        %v4176 = vunpack.c.0.s8 %v4175
        %v4177 = vperm.slane %v4169, %v4176
        %v4178 = vrot.slane %v4141, 4
        %v4179 = vsel %vm852, %v4178, %v4129
        %v4180 = vrot.slane %v4129, 4
        %v4181 = vsel %vm852, %v4141, %v4180
        %v4183 = vunpack.c.l.s4 1934713408
        %v4184 = vunpack.c.0.s8 %v4183
        %v4185 = vperm.slane %v4179, %v4184
        %v4187 = vunpack.c.l.s4 1934713408
        %v4188 = vunpack.c.0.s8 %v4187
        %v4189 = vperm.slane %v4181, %v4188
        %v4190 = vrot.slane %v4161, 4
        %v4191 = vsel %vm852, %v4190, %v4149
        %v4192 = vrot.slane %v4149, 4
        %v4193 = vsel %vm852, %v4161, %v4192
        %v4195 = vunpack.c.l.s4 1934713408
        %v4196 = vunpack.c.0.s8 %v4195
        %v4197 = vperm.slane %v4191, %v4196
        %v4199 = vunpack.c.l.s4 1934713408
        %v4200 = vunpack.c.0.s8 %v4199
        %v4201 = vperm.slane %v4193, %v4200
        %v4202 = vrot.slane %v4165, 4
        %v4203 = vsel %vm852, %v4202, %v4153
        %v4204 = vrot.slane %v4153, 4
        %v4205 = vsel %vm852, %v4165, %v4204
        %v4207 = vunpack.c.l.s4 1934713408
        %v4208 = vunpack.c.0.s8 %v4207
        %v4209 = vperm.slane %v4203, %v4208
        %v4211 = vunpack.c.l.s4 1934713408
        %v4212 = vunpack.c.0.s8 %v4211
        %v4213 = vperm.slane %v4205, %v4212
        %v4214 = vrot.slane %v4197, 4
        %v4215 = vsel %vm852, %v4214, %v4173
        %v4216 = vrot.slane %v4173, 4
        %v4217 = vsel %vm852, %v4197, %v4216
        %v4218 = vrot.slane %v4201, 4
        %v4219 = vsel %vm852, %v4218, %v4177
        %v4220 = vrot.slane %v4177, 4
        %v4221 = vsel %vm852, %v4201, %v4220
        %v4222 = vrot.slane %v4209, 4
        %v4223 = vsel %vm852, %v4222, %v4185
        %v4224 = vrot.slane %v4185, 4
        %v4225 = vsel %vm852, %v4209, %v4224
        %v4226 = vrot.slane %v4213, 4
        %v4227 = vsel %vm852, %v4226, %v4189
        %v4228 = vrot.slane %v4189, 4
        %v4229 = vsel %vm852, %v4213, %v4228
        %4231 = vrot.lane.b32.xlu0 %v4217, 16
        %v4232 = vpop.permute.xlu0 %4231
        %4235 = vrot.lane.b32.xlu0 %v4219, 32
        %v4236 = vpop.permute.xlu0 %4235
        %4239 = vrot.lane.b32.xlu0 %v4221, 48
        %v4240 = vpop.permute.xlu0 %4239
        %4243 = vrot.lane.b32.xlu0 %v4223, 64
        %v4244 = vpop.permute.xlu0 %4243
        %4247 = vrot.lane.b32.xlu0 %v4225, 80
        %v4248 = vpop.permute.xlu0 %4247
        %4251 = vrot.lane.b32.xlu0 %v4227, 96
        %v4252 = vpop.permute.xlu0 %4251
        %4255 = vrot.lane.b32.xlu0 %v4229, 112
        %v4256 = vpop.permute.xlu0 %4255
        %v4258 = vsel %vm1036, %v4215, %v4232
        %v4259 = vsel %vm1038, %v4258, %v4236
        %v4260 = vsel %vm1040, %v4259, %v4240
        %v4261 = vsel %vm1042, %v4260, %v4244
        %v4262 = vsel %vm1044, %v4261, %v4248
        %v4263 = vsel %vm1046, %v4262, %v4252
        %v4264 = vsel %vm1048, %v4263, %v4256
        %4273 = vrot.lane.b32.xlu0 %v4110, 127
        %v4274 = vpop.permute.xlu0 %4273
        %4275 = vrot.lane.b32.xlu0 %v4111, 127
        %v4276 = vpop.permute.xlu0 %4275
        %4277 = vrot.lane.b32.xlu0 %v4112, 127
        %v4278 = vpop.permute.xlu0 %4277
        %4279 = vrot.lane.b32.xlu0 %v4113, 127
        %v4280 = vpop.permute.xlu0 %4279
        %4281 = vrot.lane.b32.xlu0 %v4114, 127
        %v4282 = vpop.permute.xlu0 %4281
        %4283 = vrot.lane.b32.xlu0 %v4115, 127
        %v4284 = vpop.permute.xlu0 %4283
        %4285 = vrot.lane.b32.xlu0 %v4116, 127
        %v4286 = vpop.permute.xlu0 %4285
        %4287 = vrot.lane.b32.xlu0 %v4117, 127
        %v4288 = vpop.permute.xlu0 %4287
        %v4297 = vrot.slane %v4278, 4
        %v4298 = vsel %vm852, %v4297, %v4274
        %v4299 = vrot.slane %v4274, 4
        %v4300 = vsel %vm852, %v4278, %v4299
        %v4302 = vunpack.c.l.s4 1983009808
        %v4303 = vunpack.c.0.s8 %v4302
        %v4304 = vperm.slane %v4298, %v4303
        %v4306 = vunpack.c.l.s4 1983009808
        %v4307 = vunpack.c.0.s8 %v4306
        %v4308 = vperm.slane %v4300, %v4307
        %v4309 = vrot.slane %v4280, 4
        %v4310 = vsel %vm852, %v4309, %v4276
        %v4311 = vrot.slane %v4276, 4
        %v4312 = vsel %vm852, %v4280, %v4311
        %v4314 = vunpack.c.l.s4 1983009808
        %v4315 = vunpack.c.0.s8 %v4314
        %v4316 = vperm.slane %v4310, %v4315
        %v4318 = vunpack.c.l.s4 1983009808
        %v4319 = vunpack.c.0.s8 %v4318
        %v4320 = vperm.slane %v4312, %v4319
        %v4321 = vrot.slane %v4286, 4
        %v4322 = vsel %vm852, %v4321, %v4282
        %v4323 = vrot.slane %v4282, 4
        %v4324 = vsel %vm852, %v4286, %v4323
        %v4326 = vunpack.c.l.s4 1983009808
        %v4327 = vunpack.c.0.s8 %v4326
        %v4328 = vperm.slane %v4322, %v4327
        %v4330 = vunpack.c.l.s4 1983009808
        %v4331 = vunpack.c.0.s8 %v4330
        %v4332 = vperm.slane %v4324, %v4331
        %v4333 = vrot.slane %v4288, 4
        %v4334 = vsel %vm852, %v4333, %v4284
        %v4335 = vrot.slane %v4284, 4
        %v4336 = vsel %vm852, %v4288, %v4335
        %v4338 = vunpack.c.l.s4 1983009808
        %v4339 = vunpack.c.0.s8 %v4338
        %v4340 = vperm.slane %v4334, %v4339
        %v4342 = vunpack.c.l.s4 1983009808
        %v4343 = vunpack.c.0.s8 %v4342
        %v4344 = vperm.slane %v4336, %v4343
        %v4345 = vrot.slane %v4316, 4
        %v4346 = vsel %vm852, %v4345, %v4304
        %v4347 = vrot.slane %v4304, 4
        %v4348 = vsel %vm852, %v4316, %v4347
        %v4350 = vunpack.c.l.s4 1934713408
        %v4351 = vunpack.c.0.s8 %v4350
        %v4352 = vperm.slane %v4346, %v4351
        %v4354 = vunpack.c.l.s4 1934713408
        %v4355 = vunpack.c.0.s8 %v4354
        %v4356 = vperm.slane %v4348, %v4355
        %v4357 = vrot.slane %v4320, 4
        %v4358 = vsel %vm852, %v4357, %v4308
        %v4359 = vrot.slane %v4308, 4
        %v4360 = vsel %vm852, %v4320, %v4359
        %v4362 = vunpack.c.l.s4 1934713408
        %v4363 = vunpack.c.0.s8 %v4362
        %v4364 = vperm.slane %v4358, %v4363
        %v4366 = vunpack.c.l.s4 1934713408
        %v4367 = vunpack.c.0.s8 %v4366
        %v4368 = vperm.slane %v4360, %v4367
        %v4369 = vrot.slane %v4340, 4
        %v4370 = vsel %vm852, %v4369, %v4328
        %v4371 = vrot.slane %v4328, 4
        %v4372 = vsel %vm852, %v4340, %v4371
        %v4374 = vunpack.c.l.s4 1934713408
        %v4375 = vunpack.c.0.s8 %v4374
        %v4376 = vperm.slane %v4370, %v4375
        %v4378 = vunpack.c.l.s4 1934713408
        %v4379 = vunpack.c.0.s8 %v4378
        %v4380 = vperm.slane %v4372, %v4379
        %v4381 = vrot.slane %v4344, 4
        %v4382 = vsel %vm852, %v4381, %v4332
        %v4383 = vrot.slane %v4332, 4
        %v4384 = vsel %vm852, %v4344, %v4383
        %v4386 = vunpack.c.l.s4 1934713408
        %v4387 = vunpack.c.0.s8 %v4386
        %v4388 = vperm.slane %v4382, %v4387
        %v4390 = vunpack.c.l.s4 1934713408
        %v4391 = vunpack.c.0.s8 %v4390
        %v4392 = vperm.slane %v4384, %v4391
        %v4393 = vrot.slane %v4376, 4
        %v4394 = vsel %vm852, %v4393, %v4352
        %v4395 = vrot.slane %v4352, 4
        %v4396 = vsel %vm852, %v4376, %v4395
        %v4397 = vrot.slane %v4380, 4
        %v4398 = vsel %vm852, %v4397, %v4356
        %v4399 = vrot.slane %v4356, 4
        %v4400 = vsel %vm852, %v4380, %v4399
        %v4401 = vrot.slane %v4388, 4
        %v4402 = vsel %vm852, %v4401, %v4364
        %v4403 = vrot.slane %v4364, 4
        %v4404 = vsel %vm852, %v4388, %v4403
        %v4405 = vrot.slane %v4392, 4
        %v4406 = vsel %vm852, %v4405, %v4368
        %v4407 = vrot.slane %v4368, 4
        %v4408 = vsel %vm852, %v4392, %v4407
        %4410 = vrot.lane.b32.xlu0 %v4396, 16
        %v4411 = vpop.permute.xlu0 %4410
        %4414 = vrot.lane.b32.xlu0 %v4398, 32
        %v4415 = vpop.permute.xlu0 %4414
        %4418 = vrot.lane.b32.xlu0 %v4400, 48
        %v4419 = vpop.permute.xlu0 %4418
        %4422 = vrot.lane.b32.xlu0 %v4402, 64
        %v4423 = vpop.permute.xlu0 %4422
        %4426 = vrot.lane.b32.xlu0 %v4404, 80
        %v4427 = vpop.permute.xlu0 %4426
        %4430 = vrot.lane.b32.xlu0 %v4406, 96
        %v4431 = vpop.permute.xlu0 %4430
        %4434 = vrot.lane.b32.xlu0 %v4408, 112
        %v4435 = vpop.permute.xlu0 %4434
        %v4437 = vsel %vm1036, %v4394, %v4411
        %v4438 = vsel %vm1038, %v4437, %v4415
        %v4439 = vsel %vm1040, %v4438, %v4419
        %v4440 = vsel %vm1042, %v4439, %v4423
        %v4441 = vsel %vm1044, %v4440, %v4427
        %v4442 = vsel %vm1046, %v4441, %v4431
        %v4443 = vsel %vm1048, %v4442, %v4435
        %4444 = vrot.lane.b32.xlu0 %v4110, 126
        %v4445 = vpop.permute.xlu0 %4444
        %4446 = vrot.lane.b32.xlu0 %v4111, 126
        %v4447 = vpop.permute.xlu0 %4446
        %4448 = vrot.lane.b32.xlu0 %v4112, 126
        %v4449 = vpop.permute.xlu0 %4448
        %4450 = vrot.lane.b32.xlu0 %v4113, 126
        %v4451 = vpop.permute.xlu0 %4450
        %4452 = vrot.lane.b32.xlu0 %v4114, 126
        %v4453 = vpop.permute.xlu0 %4452
        %4454 = vrot.lane.b32.xlu0 %v4115, 126
        %v4455 = vpop.permute.xlu0 %4454
        %4456 = vrot.lane.b32.xlu0 %v4116, 126
        %v4457 = vpop.permute.xlu0 %4456
        %4458 = vrot.lane.b32.xlu0 %v4117, 126
        %v4459 = vpop.permute.xlu0 %4458
        %v4468 = vrot.slane %v4449, 4
        %v4469 = vsel %vm852, %v4468, %v4445
        %v4470 = vrot.slane %v4445, 4
        %v4471 = vsel %vm852, %v4449, %v4470
        %v4473 = vunpack.c.l.s4 1983009808
        %v4474 = vunpack.c.0.s8 %v4473
        %v4475 = vperm.slane %v4469, %v4474
        %v4477 = vunpack.c.l.s4 1983009808
        %v4478 = vunpack.c.0.s8 %v4477
        %v4479 = vperm.slane %v4471, %v4478
        %v4480 = vrot.slane %v4451, 4
        %v4481 = vsel %vm852, %v4480, %v4447
        %v4482 = vrot.slane %v4447, 4
        %v4483 = vsel %vm852, %v4451, %v4482
        %v4485 = vunpack.c.l.s4 1983009808
        %v4486 = vunpack.c.0.s8 %v4485
        %v4487 = vperm.slane %v4481, %v4486
        %v4489 = vunpack.c.l.s4 1983009808
        %v4490 = vunpack.c.0.s8 %v4489
        %v4491 = vperm.slane %v4483, %v4490
        %v4492 = vrot.slane %v4457, 4
        %v4493 = vsel %vm852, %v4492, %v4453
        %v4494 = vrot.slane %v4453, 4
        %v4495 = vsel %vm852, %v4457, %v4494
        %v4497 = vunpack.c.l.s4 1983009808
        %v4498 = vunpack.c.0.s8 %v4497
        %v4499 = vperm.slane %v4493, %v4498
        %v4501 = vunpack.c.l.s4 1983009808
        %v4502 = vunpack.c.0.s8 %v4501
        %v4503 = vperm.slane %v4495, %v4502
        %v4504 = vrot.slane %v4459, 4
        %v4505 = vsel %vm852, %v4504, %v4455
        %v4506 = vrot.slane %v4455, 4
        %v4507 = vsel %vm852, %v4459, %v4506
        %v4509 = vunpack.c.l.s4 1983009808
        %v4510 = vunpack.c.0.s8 %v4509
        %v4511 = vperm.slane %v4505, %v4510
        %v4513 = vunpack.c.l.s4 1983009808
        %v4514 = vunpack.c.0.s8 %v4513
        %v4515 = vperm.slane %v4507, %v4514
        %v4516 = vrot.slane %v4487, 4
        %v4517 = vsel %vm852, %v4516, %v4475
        %v4518 = vrot.slane %v4475, 4
        %v4519 = vsel %vm852, %v4487, %v4518
        %v4521 = vunpack.c.l.s4 1934713408
        %v4522 = vunpack.c.0.s8 %v4521
        %v4523 = vperm.slane %v4517, %v4522
        %v4525 = vunpack.c.l.s4 1934713408
        %v4526 = vunpack.c.0.s8 %v4525
        %v4527 = vperm.slane %v4519, %v4526
        %v4528 = vrot.slane %v4491, 4
        %v4529 = vsel %vm852, %v4528, %v4479
        %v4530 = vrot.slane %v4479, 4
        %v4531 = vsel %vm852, %v4491, %v4530
        %v4533 = vunpack.c.l.s4 1934713408
        %v4534 = vunpack.c.0.s8 %v4533
        %v4535 = vperm.slane %v4529, %v4534
        %v4537 = vunpack.c.l.s4 1934713408
        %v4538 = vunpack.c.0.s8 %v4537
        %v4539 = vperm.slane %v4531, %v4538
        %v4540 = vrot.slane %v4511, 4
        %v4541 = vsel %vm852, %v4540, %v4499
        %v4542 = vrot.slane %v4499, 4
        %v4543 = vsel %vm852, %v4511, %v4542
        %v4545 = vunpack.c.l.s4 1934713408
        %v4546 = vunpack.c.0.s8 %v4545
        %v4547 = vperm.slane %v4541, %v4546
        %v4549 = vunpack.c.l.s4 1934713408
        %v4550 = vunpack.c.0.s8 %v4549
        %v4551 = vperm.slane %v4543, %v4550
        %v4552 = vrot.slane %v4515, 4
        %v4553 = vsel %vm852, %v4552, %v4503
        %v4554 = vrot.slane %v4503, 4
        %v4555 = vsel %vm852, %v4515, %v4554
        %v4557 = vunpack.c.l.s4 1934713408
        %v4558 = vunpack.c.0.s8 %v4557
        %v4559 = vperm.slane %v4553, %v4558
        %v4561 = vunpack.c.l.s4 1934713408
        %v4562 = vunpack.c.0.s8 %v4561
        %v4563 = vperm.slane %v4555, %v4562
        %v4564 = vrot.slane %v4547, 4
        %v4565 = vsel %vm852, %v4564, %v4523
        %v4566 = vrot.slane %v4523, 4
        %v4567 = vsel %vm852, %v4547, %v4566
        %v4568 = vrot.slane %v4551, 4
        %v4569 = vsel %vm852, %v4568, %v4527
        %v4570 = vrot.slane %v4527, 4
        %v4571 = vsel %vm852, %v4551, %v4570
        %v4572 = vrot.slane %v4559, 4
        %v4573 = vsel %vm852, %v4572, %v4535
        %v4574 = vrot.slane %v4535, 4
        %v4575 = vsel %vm852, %v4559, %v4574
        %v4576 = vrot.slane %v4563, 4
        %v4577 = vsel %vm852, %v4576, %v4539
        %v4578 = vrot.slane %v4539, 4
        %v4579 = vsel %vm852, %v4563, %v4578
        %4581 = vrot.lane.b32.xlu0 %v4567, 16
        %v4582 = vpop.permute.xlu0 %4581
        %4585 = vrot.lane.b32.xlu0 %v4569, 32
        %v4586 = vpop.permute.xlu0 %4585
        %4589 = vrot.lane.b32.xlu0 %v4571, 48
        %v4590 = vpop.permute.xlu0 %4589
        %4593 = vrot.lane.b32.xlu0 %v4573, 64
        %v4594 = vpop.permute.xlu0 %4593
        %4597 = vrot.lane.b32.xlu0 %v4575, 80
        %v4598 = vpop.permute.xlu0 %4597
        %4601 = vrot.lane.b32.xlu0 %v4577, 96
        %v4602 = vpop.permute.xlu0 %4601
        %4605 = vrot.lane.b32.xlu0 %v4579, 112
        %v4606 = vpop.permute.xlu0 %4605
        %v4608 = vsel %vm1036, %v4565, %v4582
        %v4609 = vsel %vm1038, %v4608, %v4586
        %v4610 = vsel %vm1040, %v4609, %v4590
        %v4611 = vsel %vm1042, %v4610, %v4594
        %v4612 = vsel %vm1044, %v4611, %v4598
        %v4613 = vsel %vm1046, %v4612, %v4602
        %v4614 = vsel %vm1048, %v4613, %v4606
        %v4615 = vld [vmem:[#allocation3 + $0x1] sm:$0xff]
        %v4616 = vld [vmem:[#allocation3 + $0x11] sm:$0xff]
        %v4617 = vld [vmem:[#allocation3 + $0x21] sm:$0xff]
        %v4618 = vld [vmem:[#allocation3 + $0x31] sm:$0xff]
        %v4619 = vld [vmem:[#allocation3 + $0x41] sm:$0xff]
        %v4620 = vld [vmem:[#allocation3 + $0x51] sm:$0xff]
        %v4621 = vld [vmem:[#allocation3 + $0x61] sm:$0xff]
        %v4622 = vld [vmem:[#allocation3 + $0x71] sm:$0xff]
        %v4623 = vrot.slane %v4617, 4
        %v4624 = vsel %vm852, %v4623, %v4615
        %v4625 = vrot.slane %v4615, 4
        %v4626 = vsel %vm852, %v4617, %v4625
        %v4628 = vunpack.c.l.s4 1983009808
        %v4629 = vunpack.c.0.s8 %v4628
        %v4630 = vperm.slane %v4624, %v4629
        %v4632 = vunpack.c.l.s4 1983009808
        %v4633 = vunpack.c.0.s8 %v4632
        %v4634 = vperm.slane %v4626, %v4633
        %v4635 = vrot.slane %v4618, 4
        %v4636 = vsel %vm852, %v4635, %v4616
        %v4637 = vrot.slane %v4616, 4
        %v4638 = vsel %vm852, %v4618, %v4637
        %v4640 = vunpack.c.l.s4 1983009808
        %v4641 = vunpack.c.0.s8 %v4640
        %v4642 = vperm.slane %v4636, %v4641
        %v4644 = vunpack.c.l.s4 1983009808
        %v4645 = vunpack.c.0.s8 %v4644
        %v4646 = vperm.slane %v4638, %v4645
        %v4647 = vrot.slane %v4621, 4
        %v4648 = vsel %vm852, %v4647, %v4619
        %v4649 = vrot.slane %v4619, 4
        %v4650 = vsel %vm852, %v4621, %v4649
        %v4652 = vunpack.c.l.s4 1983009808
        %v4653 = vunpack.c.0.s8 %v4652
        %v4654 = vperm.slane %v4648, %v4653
        %v4656 = vunpack.c.l.s4 1983009808
        %v4657 = vunpack.c.0.s8 %v4656
        %v4658 = vperm.slane %v4650, %v4657
        %v4659 = vrot.slane %v4622, 4
        %v4660 = vsel %vm852, %v4659, %v4620
        %v4661 = vrot.slane %v4620, 4
        %v4662 = vsel %vm852, %v4622, %v4661
        %v4664 = vunpack.c.l.s4 1983009808
        %v4665 = vunpack.c.0.s8 %v4664
        %v4666 = vperm.slane %v4660, %v4665
        %v4668 = vunpack.c.l.s4 1983009808
        %v4669 = vunpack.c.0.s8 %v4668
        %v4670 = vperm.slane %v4662, %v4669
        %v4671 = vrot.slane %v4642, 4
        %v4672 = vsel %vm852, %v4671, %v4630
        %v4673 = vrot.slane %v4630, 4
        %v4674 = vsel %vm852, %v4642, %v4673
        %v4676 = vunpack.c.l.s4 1934713408
        %v4677 = vunpack.c.0.s8 %v4676
        %v4678 = vperm.slane %v4672, %v4677
        %v4680 = vunpack.c.l.s4 1934713408
        %v4681 = vunpack.c.0.s8 %v4680
        %v4682 = vperm.slane %v4674, %v4681
        %v4683 = vrot.slane %v4646, 4
        %v4684 = vsel %vm852, %v4683, %v4634
        %v4685 = vrot.slane %v4634, 4
        %v4686 = vsel %vm852, %v4646, %v4685
        %v4688 = vunpack.c.l.s4 1934713408
        %v4689 = vunpack.c.0.s8 %v4688
        %v4690 = vperm.slane %v4684, %v4689
        %v4692 = vunpack.c.l.s4 1934713408
        %v4693 = vunpack.c.0.s8 %v4692
        %v4694 = vperm.slane %v4686, %v4693
        %v4695 = vrot.slane %v4666, 4
        %v4696 = vsel %vm852, %v4695, %v4654
        %v4697 = vrot.slane %v4654, 4
        %v4698 = vsel %vm852, %v4666, %v4697
        %v4700 = vunpack.c.l.s4 1934713408
        %v4701 = vunpack.c.0.s8 %v4700
        %v4702 = vperm.slane %v4696, %v4701
        %v4704 = vunpack.c.l.s4 1934713408
        %v4705 = vunpack.c.0.s8 %v4704
        %v4706 = vperm.slane %v4698, %v4705
        %v4707 = vrot.slane %v4670, 4
        %v4708 = vsel %vm852, %v4707, %v4658
        %v4709 = vrot.slane %v4658, 4
        %v4710 = vsel %vm852, %v4670, %v4709
        %v4712 = vunpack.c.l.s4 1934713408
        %v4713 = vunpack.c.0.s8 %v4712
        %v4714 = vperm.slane %v4708, %v4713
        %v4716 = vunpack.c.l.s4 1934713408
        %v4717 = vunpack.c.0.s8 %v4716
        %v4718 = vperm.slane %v4710, %v4717
        %v4719 = vrot.slane %v4702, 4
        %v4720 = vsel %vm852, %v4719, %v4678
        %v4721 = vrot.slane %v4678, 4
        %v4722 = vsel %vm852, %v4702, %v4721
        %v4723 = vrot.slane %v4706, 4
        %v4724 = vsel %vm852, %v4723, %v4682
        %v4725 = vrot.slane %v4682, 4
        %v4726 = vsel %vm852, %v4706, %v4725
        %v4727 = vrot.slane %v4714, 4
        %v4728 = vsel %vm852, %v4727, %v4690
        %v4729 = vrot.slane %v4690, 4
        %v4730 = vsel %vm852, %v4714, %v4729
        %v4731 = vrot.slane %v4718, 4
        %v4732 = vsel %vm852, %v4731, %v4694
        %v4733 = vrot.slane %v4694, 4
        %v4734 = vsel %vm852, %v4718, %v4733
        %4736 = vrot.lane.b32.xlu0 %v4722, 16
        %v4737 = vpop.permute.xlu0 %4736
        %4740 = vrot.lane.b32.xlu0 %v4724, 32
        %v4741 = vpop.permute.xlu0 %4740
        %4744 = vrot.lane.b32.xlu0 %v4726, 48
        %v4745 = vpop.permute.xlu0 %4744
        %4748 = vrot.lane.b32.xlu0 %v4728, 64
        %v4749 = vpop.permute.xlu0 %4748
        %4752 = vrot.lane.b32.xlu0 %v4730, 80
        %v4753 = vpop.permute.xlu0 %4752
        %4756 = vrot.lane.b32.xlu0 %v4732, 96
        %v4757 = vpop.permute.xlu0 %4756
        %4760 = vrot.lane.b32.xlu0 %v4734, 112
        %v4761 = vpop.permute.xlu0 %4760
        %v4763 = vsel %vm1036, %v4720, %v4737
        %v4764 = vsel %vm1038, %v4763, %v4741
        %v4765 = vsel %vm1040, %v4764, %v4745
        %v4766 = vsel %vm1042, %v4765, %v4749
        %v4767 = vsel %vm1044, %v4766, %v4753
        %v4768 = vsel %vm1046, %v4767, %v4757
        %v4769 = vsel %vm1048, %v4768, %v4761
        %4778 = vrot.lane.b32.xlu0 %v4615, 127
        %v4779 = vpop.permute.xlu0 %4778
        %4780 = vrot.lane.b32.xlu0 %v4616, 127
        %v4781 = vpop.permute.xlu0 %4780
        %4782 = vrot.lane.b32.xlu0 %v4617, 127
        %v4783 = vpop.permute.xlu0 %4782
        %4784 = vrot.lane.b32.xlu0 %v4618, 127
        %v4785 = vpop.permute.xlu0 %4784
        %4786 = vrot.lane.b32.xlu0 %v4619, 127
        %v4787 = vpop.permute.xlu0 %4786
        %4788 = vrot.lane.b32.xlu0 %v4620, 127
        %v4789 = vpop.permute.xlu0 %4788
        %4790 = vrot.lane.b32.xlu0 %v4621, 127
        %v4791 = vpop.permute.xlu0 %4790
        %4792 = vrot.lane.b32.xlu0 %v4622, 127
        %v4793 = vpop.permute.xlu0 %4792
        %v4802 = vrot.slane %v4783, 4
        %v4803 = vsel %vm852, %v4802, %v4779
        %v4804 = vrot.slane %v4779, 4
        %v4805 = vsel %vm852, %v4783, %v4804
        %v4807 = vunpack.c.l.s4 1983009808
        %v4808 = vunpack.c.0.s8 %v4807
        %v4809 = vperm.slane %v4803, %v4808
        %v4811 = vunpack.c.l.s4 1983009808
        %v4812 = vunpack.c.0.s8 %v4811
        %v4813 = vperm.slane %v4805, %v4812
        %v4814 = vrot.slane %v4785, 4
        %v4815 = vsel %vm852, %v4814, %v4781
        %v4816 = vrot.slane %v4781, 4
        %v4817 = vsel %vm852, %v4785, %v4816
        %v4819 = vunpack.c.l.s4 1983009808
        %v4820 = vunpack.c.0.s8 %v4819
        %v4821 = vperm.slane %v4815, %v4820
        %v4823 = vunpack.c.l.s4 1983009808
        %v4824 = vunpack.c.0.s8 %v4823
        %v4825 = vperm.slane %v4817, %v4824
        %v4826 = vrot.slane %v4791, 4
        %v4827 = vsel %vm852, %v4826, %v4787
        %v4828 = vrot.slane %v4787, 4
        %v4829 = vsel %vm852, %v4791, %v4828
        %v4831 = vunpack.c.l.s4 1983009808
        %v4832 = vunpack.c.0.s8 %v4831
        %v4833 = vperm.slane %v4827, %v4832
        %v4835 = vunpack.c.l.s4 1983009808
        %v4836 = vunpack.c.0.s8 %v4835
        %v4837 = vperm.slane %v4829, %v4836
        %v4838 = vrot.slane %v4793, 4
        %v4839 = vsel %vm852, %v4838, %v4789
        %v4840 = vrot.slane %v4789, 4
        %v4841 = vsel %vm852, %v4793, %v4840
        %v4843 = vunpack.c.l.s4 1983009808
        %v4844 = vunpack.c.0.s8 %v4843
        %v4845 = vperm.slane %v4839, %v4844
        %v4847 = vunpack.c.l.s4 1983009808
        %v4848 = vunpack.c.0.s8 %v4847
        %v4849 = vperm.slane %v4841, %v4848
        %v4850 = vrot.slane %v4821, 4
        %v4851 = vsel %vm852, %v4850, %v4809
        %v4852 = vrot.slane %v4809, 4
        %v4853 = vsel %vm852, %v4821, %v4852
        %v4855 = vunpack.c.l.s4 1934713408
        %v4856 = vunpack.c.0.s8 %v4855
        %v4857 = vperm.slane %v4851, %v4856
        %v4859 = vunpack.c.l.s4 1934713408
        %v4860 = vunpack.c.0.s8 %v4859
        %v4861 = vperm.slane %v4853, %v4860
        %v4862 = vrot.slane %v4825, 4
        %v4863 = vsel %vm852, %v4862, %v4813
        %v4864 = vrot.slane %v4813, 4
        %v4865 = vsel %vm852, %v4825, %v4864
        %v4867 = vunpack.c.l.s4 1934713408
        %v4868 = vunpack.c.0.s8 %v4867
        %v4869 = vperm.slane %v4863, %v4868
        %v4871 = vunpack.c.l.s4 1934713408
        %v4872 = vunpack.c.0.s8 %v4871
        %v4873 = vperm.slane %v4865, %v4872
        %v4874 = vrot.slane %v4845, 4
        %v4875 = vsel %vm852, %v4874, %v4833
        %v4876 = vrot.slane %v4833, 4
        %v4877 = vsel %vm852, %v4845, %v4876
        %v4879 = vunpack.c.l.s4 1934713408
        %v4880 = vunpack.c.0.s8 %v4879
        %v4881 = vperm.slane %v4875, %v4880
        %v4883 = vunpack.c.l.s4 1934713408
        %v4884 = vunpack.c.0.s8 %v4883
        %v4885 = vperm.slane %v4877, %v4884
        %v4886 = vrot.slane %v4849, 4
        %v4887 = vsel %vm852, %v4886, %v4837
        %v4888 = vrot.slane %v4837, 4
        %v4889 = vsel %vm852, %v4849, %v4888
        %v4891 = vunpack.c.l.s4 1934713408
        %v4892 = vunpack.c.0.s8 %v4891
        %v4893 = vperm.slane %v4887, %v4892
        %v4895 = vunpack.c.l.s4 1934713408
        %v4896 = vunpack.c.0.s8 %v4895
        %v4897 = vperm.slane %v4889, %v4896
        %v4898 = vrot.slane %v4881, 4
        %v4899 = vsel %vm852, %v4898, %v4857
        %v4900 = vrot.slane %v4857, 4
        %v4901 = vsel %vm852, %v4881, %v4900
        %v4902 = vrot.slane %v4885, 4
        %v4903 = vsel %vm852, %v4902, %v4861
        %v4904 = vrot.slane %v4861, 4
        %v4905 = vsel %vm852, %v4885, %v4904
        %v4906 = vrot.slane %v4893, 4
        %v4907 = vsel %vm852, %v4906, %v4869
        %v4908 = vrot.slane %v4869, 4
        %v4909 = vsel %vm852, %v4893, %v4908
        %v4910 = vrot.slane %v4897, 4
        %v4911 = vsel %vm852, %v4910, %v4873
        %v4912 = vrot.slane %v4873, 4
        %v4913 = vsel %vm852, %v4897, %v4912
        %4915 = vrot.lane.b32.xlu0 %v4901, 16
        %v4916 = vpop.permute.xlu0 %4915
        %4919 = vrot.lane.b32.xlu0 %v4903, 32
        %v4920 = vpop.permute.xlu0 %4919
        %4923 = vrot.lane.b32.xlu0 %v4905, 48
        %v4924 = vpop.permute.xlu0 %4923
        %4927 = vrot.lane.b32.xlu0 %v4907, 64
        %v4928 = vpop.permute.xlu0 %4927
        %4931 = vrot.lane.b32.xlu0 %v4909, 80
        %v4932 = vpop.permute.xlu0 %4931
        %4935 = vrot.lane.b32.xlu0 %v4911, 96
        %v4936 = vpop.permute.xlu0 %4935
        %4939 = vrot.lane.b32.xlu0 %v4913, 112
        %v4940 = vpop.permute.xlu0 %4939
        %v4942 = vsel %vm1036, %v4899, %v4916
        %v4943 = vsel %vm1038, %v4942, %v4920
        %v4944 = vsel %vm1040, %v4943, %v4924
        %v4945 = vsel %vm1042, %v4944, %v4928
        %v4946 = vsel %vm1044, %v4945, %v4932
        %v4947 = vsel %vm1046, %v4946, %v4936
        %v4948 = vsel %vm1048, %v4947, %v4940
        %4949 = vrot.lane.b32.xlu0 %v4615, 126
        %v4950 = vpop.permute.xlu0 %4949
        %4951 = vrot.lane.b32.xlu0 %v4616, 126
        %v4952 = vpop.permute.xlu0 %4951
        %4953 = vrot.lane.b32.xlu0 %v4617, 126
        %v4954 = vpop.permute.xlu0 %4953
        %4955 = vrot.lane.b32.xlu0 %v4618, 126
        %v4956 = vpop.permute.xlu0 %4955
        %4957 = vrot.lane.b32.xlu0 %v4619, 126
        %v4958 = vpop.permute.xlu0 %4957
        %4959 = vrot.lane.b32.xlu0 %v4620, 126
        %v4960 = vpop.permute.xlu0 %4959
        %4961 = vrot.lane.b32.xlu0 %v4621, 126
        %v4962 = vpop.permute.xlu0 %4961
        %4963 = vrot.lane.b32.xlu0 %v4622, 126
        %v4964 = vpop.permute.xlu0 %4963
        %v4973 = vrot.slane %v4954, 4
        %v4974 = vsel %vm852, %v4973, %v4950
        %v4975 = vrot.slane %v4950, 4
        %v4976 = vsel %vm852, %v4954, %v4975
        %v4978 = vunpack.c.l.s4 1983009808
        %v4979 = vunpack.c.0.s8 %v4978
        %v4980 = vperm.slane %v4974, %v4979
        %v4982 = vunpack.c.l.s4 1983009808
        %v4983 = vunpack.c.0.s8 %v4982
        %v4984 = vperm.slane %v4976, %v4983
        %v4985 = vrot.slane %v4956, 4
        %v4986 = vsel %vm852, %v4985, %v4952
        %v4987 = vrot.slane %v4952, 4
        %v4988 = vsel %vm852, %v4956, %v4987
        %v4990 = vunpack.c.l.s4 1983009808
        %v4991 = vunpack.c.0.s8 %v4990
        %v4992 = vperm.slane %v4986, %v4991
        %v4994 = vunpack.c.l.s4 1983009808
        %v4995 = vunpack.c.0.s8 %v4994
        %v4996 = vperm.slane %v4988, %v4995
        %v4997 = vrot.slane %v4962, 4
        %v4998 = vsel %vm852, %v4997, %v4958
        %v4999 = vrot.slane %v4958, 4
        %v5000 = vsel %vm852, %v4962, %v4999
        %v5002 = vunpack.c.l.s4 1983009808
        %v5003 = vunpack.c.0.s8 %v5002
        %v5004 = vperm.slane %v4998, %v5003
        %v5006 = vunpack.c.l.s4 1983009808
        %v5007 = vunpack.c.0.s8 %v5006
        %v5008 = vperm.slane %v5000, %v5007
        %v5009 = vrot.slane %v4964, 4
        %v5010 = vsel %vm852, %v5009, %v4960
        %v5011 = vrot.slane %v4960, 4
        %v5012 = vsel %vm852, %v4964, %v5011
        %v5014 = vunpack.c.l.s4 1983009808
        %v5015 = vunpack.c.0.s8 %v5014
        %v5016 = vperm.slane %v5010, %v5015
        %v5018 = vunpack.c.l.s4 1983009808
        %v5019 = vunpack.c.0.s8 %v5018
        %v5020 = vperm.slane %v5012, %v5019
        %v5021 = vrot.slane %v4992, 4
        %v5022 = vsel %vm852, %v5021, %v4980
        %v5023 = vrot.slane %v4980, 4
        %v5024 = vsel %vm852, %v4992, %v5023
        %v5026 = vunpack.c.l.s4 1934713408
        %v5027 = vunpack.c.0.s8 %v5026
        %v5028 = vperm.slane %v5022, %v5027
        %v5030 = vunpack.c.l.s4 1934713408
        %v5031 = vunpack.c.0.s8 %v5030
        %v5032 = vperm.slane %v5024, %v5031
        %v5033 = vrot.slane %v4996, 4
        %v5034 = vsel %vm852, %v5033, %v4984
        %v5035 = vrot.slane %v4984, 4
        %v5036 = vsel %vm852, %v4996, %v5035
        %v5038 = vunpack.c.l.s4 1934713408
        %v5039 = vunpack.c.0.s8 %v5038
        %v5040 = vperm.slane %v5034, %v5039
        %v5042 = vunpack.c.l.s4 1934713408
        %v5043 = vunpack.c.0.s8 %v5042
        %v5044 = vperm.slane %v5036, %v5043
        %v5045 = vrot.slane %v5016, 4
        %v5046 = vsel %vm852, %v5045, %v5004
        %v5047 = vrot.slane %v5004, 4
        %v5048 = vsel %vm852, %v5016, %v5047
        %v5050 = vunpack.c.l.s4 1934713408
        %v5051 = vunpack.c.0.s8 %v5050
        %v5052 = vperm.slane %v5046, %v5051
        %v5054 = vunpack.c.l.s4 1934713408
        %v5055 = vunpack.c.0.s8 %v5054
        %v5056 = vperm.slane %v5048, %v5055
        %v5057 = vrot.slane %v5020, 4
        %v5058 = vsel %vm852, %v5057, %v5008
        %v5059 = vrot.slane %v5008, 4
        %v5060 = vsel %vm852, %v5020, %v5059
        %v5062 = vunpack.c.l.s4 1934713408
        %v5063 = vunpack.c.0.s8 %v5062
        %v5064 = vperm.slane %v5058, %v5063
        %v5066 = vunpack.c.l.s4 1934713408
        %v5067 = vunpack.c.0.s8 %v5066
        %v5068 = vperm.slane %v5060, %v5067
        %v5069 = vrot.slane %v5052, 4
        %v5070 = vsel %vm852, %v5069, %v5028
        %v5071 = vrot.slane %v5028, 4
        %v5072 = vsel %vm852, %v5052, %v5071
        %v5073 = vrot.slane %v5056, 4
        %v5074 = vsel %vm852, %v5073, %v5032
        %v5075 = vrot.slane %v5032, 4
        %v5076 = vsel %vm852, %v5056, %v5075
        %v5077 = vrot.slane %v5064, 4
        %v5078 = vsel %vm852, %v5077, %v5040
        %v5079 = vrot.slane %v5040, 4
        %v5080 = vsel %vm852, %v5064, %v5079
        %v5081 = vrot.slane %v5068, 4
        %v5082 = vsel %vm852, %v5081, %v5044
        %v5083 = vrot.slane %v5044, 4
        %v5084 = vsel %vm852, %v5068, %v5083
        %5086 = vrot.lane.b32.xlu0 %v5072, 16
        %v5087 = vpop.permute.xlu0 %5086
        %5090 = vrot.lane.b32.xlu0 %v5074, 32
        %v5091 = vpop.permute.xlu0 %5090
        %5094 = vrot.lane.b32.xlu0 %v5076, 48
        %v5095 = vpop.permute.xlu0 %5094
        %5098 = vrot.lane.b32.xlu0 %v5078, 64
        %v5099 = vpop.permute.xlu0 %5098
        %5102 = vrot.lane.b32.xlu0 %v5080, 80
        %v5103 = vpop.permute.xlu0 %5102
        %5106 = vrot.lane.b32.xlu0 %v5082, 96
        %v5107 = vpop.permute.xlu0 %5106
        %5110 = vrot.lane.b32.xlu0 %v5084, 112
        %v5111 = vpop.permute.xlu0 %5110
        %v5113 = vsel %vm1036, %v5070, %v5087
        %v5114 = vsel %vm1038, %v5113, %v5091
        %v5115 = vsel %vm1040, %v5114, %v5095
        %v5116 = vsel %vm1042, %v5115, %v5099
        %v5117 = vsel %vm1044, %v5116, %v5103
        %v5118 = vsel %vm1046, %v5117, %v5107
        %v5119 = vsel %vm1048, %v5118, %v5111
        %v5120 = vld [vmem:[#allocation3 + $0x2] sm:$0xff]
        %v5121 = vld [vmem:[#allocation3 + $0x12] sm:$0xff]
        %v5122 = vld [vmem:[#allocation3 + $0x22] sm:$0xff]
        %v5123 = vld [vmem:[#allocation3 + $0x32] sm:$0xff]
        %v5124 = vld [vmem:[#allocation3 + $0x42] sm:$0xff]
        %v5125 = vld [vmem:[#allocation3 + $0x52] sm:$0xff]
        %v5126 = vld [vmem:[#allocation3 + $0x62] sm:$0xff]
        %v5127 = vld [vmem:[#allocation3 + $0x72] sm:$0xff]
        %v5128 = vrot.slane %v5122, 4
        %v5129 = vsel %vm852, %v5128, %v5120
        %v5130 = vrot.slane %v5120, 4
        %v5131 = vsel %vm852, %v5122, %v5130
        %v5133 = vunpack.c.l.s4 1983009808
        %v5134 = vunpack.c.0.s8 %v5133
        %v5135 = vperm.slane %v5129, %v5134
        %v5137 = vunpack.c.l.s4 1983009808
        %v5138 = vunpack.c.0.s8 %v5137
        %v5139 = vperm.slane %v5131, %v5138
        %v5140 = vrot.slane %v5123, 4
        %v5141 = vsel %vm852, %v5140, %v5121
        %v5142 = vrot.slane %v5121, 4
        %v5143 = vsel %vm852, %v5123, %v5142
        %v5145 = vunpack.c.l.s4 1983009808
        %v5146 = vunpack.c.0.s8 %v5145
        %v5147 = vperm.slane %v5141, %v5146
        %v5149 = vunpack.c.l.s4 1983009808
        %v5150 = vunpack.c.0.s8 %v5149
        %v5151 = vperm.slane %v5143, %v5150
        %v5152 = vrot.slane %v5126, 4
        %v5153 = vsel %vm852, %v5152, %v5124
        %v5154 = vrot.slane %v5124, 4
        %v5155 = vsel %vm852, %v5126, %v5154
        %v5157 = vunpack.c.l.s4 1983009808
        %v5158 = vunpack.c.0.s8 %v5157
        %v5159 = vperm.slane %v5153, %v5158
        %v5161 = vunpack.c.l.s4 1983009808
        %v5162 = vunpack.c.0.s8 %v5161
        %v5163 = vperm.slane %v5155, %v5162
        %v5164 = vrot.slane %v5127, 4
        %v5165 = vsel %vm852, %v5164, %v5125
        %v5166 = vrot.slane %v5125, 4
        %v5167 = vsel %vm852, %v5127, %v5166
        %v5169 = vunpack.c.l.s4 1983009808
        %v5170 = vunpack.c.0.s8 %v5169
        %v5171 = vperm.slane %v5165, %v5170
        %v5173 = vunpack.c.l.s4 1983009808
        %v5174 = vunpack.c.0.s8 %v5173
        %v5175 = vperm.slane %v5167, %v5174
        %v5176 = vrot.slane %v5147, 4
        %v5177 = vsel %vm852, %v5176, %v5135
        %v5178 = vrot.slane %v5135, 4
        %v5179 = vsel %vm852, %v5147, %v5178
        %v5181 = vunpack.c.l.s4 1934713408
        %v5182 = vunpack.c.0.s8 %v5181
        %v5183 = vperm.slane %v5177, %v5182
        %v5185 = vunpack.c.l.s4 1934713408
        %v5186 = vunpack.c.0.s8 %v5185
        %v5187 = vperm.slane %v5179, %v5186
        %v5188 = vrot.slane %v5151, 4
        %v5189 = vsel %vm852, %v5188, %v5139
        %v5190 = vrot.slane %v5139, 4
        %v5191 = vsel %vm852, %v5151, %v5190
        %v5193 = vunpack.c.l.s4 1934713408
        %v5194 = vunpack.c.0.s8 %v5193
        %v5195 = vperm.slane %v5189, %v5194
        %v5197 = vunpack.c.l.s4 1934713408
        %v5198 = vunpack.c.0.s8 %v5197
        %v5199 = vperm.slane %v5191, %v5198
        %v5200 = vrot.slane %v5171, 4
        %v5201 = vsel %vm852, %v5200, %v5159
        %v5202 = vrot.slane %v5159, 4
        %v5203 = vsel %vm852, %v5171, %v5202
        %v5205 = vunpack.c.l.s4 1934713408
        %v5206 = vunpack.c.0.s8 %v5205
        %v5207 = vperm.slane %v5201, %v5206
        %v5209 = vunpack.c.l.s4 1934713408
        %v5210 = vunpack.c.0.s8 %v5209
        %v5211 = vperm.slane %v5203, %v5210
        %v5212 = vrot.slane %v5175, 4
        %v5213 = vsel %vm852, %v5212, %v5163
        %v5214 = vrot.slane %v5163, 4
        %v5215 = vsel %vm852, %v5175, %v5214
        %v5217 = vunpack.c.l.s4 1934713408
        %v5218 = vunpack.c.0.s8 %v5217
        %v5219 = vperm.slane %v5213, %v5218
        %v5221 = vunpack.c.l.s4 1934713408
        %v5222 = vunpack.c.0.s8 %v5221
        %v5223 = vperm.slane %v5215, %v5222
        %v5224 = vrot.slane %v5207, 4
        %v5225 = vsel %vm852, %v5224, %v5183
        %v5226 = vrot.slane %v5183, 4
        %v5227 = vsel %vm852, %v5207, %v5226
        %v5228 = vrot.slane %v5211, 4
        %v5229 = vsel %vm852, %v5228, %v5187
        %v5230 = vrot.slane %v5187, 4
        %v5231 = vsel %vm852, %v5211, %v5230
        %v5232 = vrot.slane %v5219, 4
        %v5233 = vsel %vm852, %v5232, %v5195
        %v5234 = vrot.slane %v5195, 4
        %v5235 = vsel %vm852, %v5219, %v5234
        %v5236 = vrot.slane %v5223, 4
        %v5237 = vsel %vm852, %v5236, %v5199
        %v5238 = vrot.slane %v5199, 4
        %v5239 = vsel %vm852, %v5223, %v5238
        %5241 = vrot.lane.b32.xlu0 %v5227, 16
        %v5242 = vpop.permute.xlu0 %5241
        %5245 = vrot.lane.b32.xlu0 %v5229, 32
        %v5246 = vpop.permute.xlu0 %5245
        %5249 = vrot.lane.b32.xlu0 %v5231, 48
        %v5250 = vpop.permute.xlu0 %5249
        %5253 = vrot.lane.b32.xlu0 %v5233, 64
        %v5254 = vpop.permute.xlu0 %5253
        %5257 = vrot.lane.b32.xlu0 %v5235, 80
        %v5258 = vpop.permute.xlu0 %5257
        %5261 = vrot.lane.b32.xlu0 %v5237, 96
        %v5262 = vpop.permute.xlu0 %5261
        %5265 = vrot.lane.b32.xlu0 %v5239, 112
        %v5266 = vpop.permute.xlu0 %5265
        %v5268 = vsel %vm1036, %v5225, %v5242
        %v5269 = vsel %vm1038, %v5268, %v5246
        %v5270 = vsel %vm1040, %v5269, %v5250
        %v5271 = vsel %vm1042, %v5270, %v5254
        %v5272 = vsel %vm1044, %v5271, %v5258
        %v5273 = vsel %vm1046, %v5272, %v5262
        %v5274 = vsel %vm1048, %v5273, %v5266
        %5283 = vrot.lane.b32.xlu0 %v5120, 127
        %v5284 = vpop.permute.xlu0 %5283
        %5285 = vrot.lane.b32.xlu0 %v5121, 127
        %v5286 = vpop.permute.xlu0 %5285
        %5287 = vrot.lane.b32.xlu0 %v5122, 127
        %v5288 = vpop.permute.xlu0 %5287
        %5289 = vrot.lane.b32.xlu0 %v5123, 127
        %v5290 = vpop.permute.xlu0 %5289
        %5291 = vrot.lane.b32.xlu0 %v5124, 127
        %v5292 = vpop.permute.xlu0 %5291
        %5293 = vrot.lane.b32.xlu0 %v5125, 127
        %v5294 = vpop.permute.xlu0 %5293
        %5295 = vrot.lane.b32.xlu0 %v5126, 127
        %v5296 = vpop.permute.xlu0 %5295
        %5297 = vrot.lane.b32.xlu0 %v5127, 127
        %v5298 = vpop.permute.xlu0 %5297
        %v5307 = vrot.slane %v5288, 4
        %v5308 = vsel %vm852, %v5307, %v5284
        %v5309 = vrot.slane %v5284, 4
        %v5310 = vsel %vm852, %v5288, %v5309
        %v5312 = vunpack.c.l.s4 1983009808
        %v5313 = vunpack.c.0.s8 %v5312
        %v5314 = vperm.slane %v5308, %v5313
        %v5316 = vunpack.c.l.s4 1983009808
        %v5317 = vunpack.c.0.s8 %v5316
        %v5318 = vperm.slane %v5310, %v5317
        %v5319 = vrot.slane %v5290, 4
        %v5320 = vsel %vm852, %v5319, %v5286
        %v5321 = vrot.slane %v5286, 4
        %v5322 = vsel %vm852, %v5290, %v5321
        %v5324 = vunpack.c.l.s4 1983009808
        %v5325 = vunpack.c.0.s8 %v5324
        %v5326 = vperm.slane %v5320, %v5325
        %v5328 = vunpack.c.l.s4 1983009808
        %v5329 = vunpack.c.0.s8 %v5328
        %v5330 = vperm.slane %v5322, %v5329
        %v5331 = vrot.slane %v5296, 4
        %v5332 = vsel %vm852, %v5331, %v5292
        %v5333 = vrot.slane %v5292, 4
        %v5334 = vsel %vm852, %v5296, %v5333
        %v5336 = vunpack.c.l.s4 1983009808
        %v5337 = vunpack.c.0.s8 %v5336
        %v5338 = vperm.slane %v5332, %v5337
        %v5340 = vunpack.c.l.s4 1983009808
        %v5341 = vunpack.c.0.s8 %v5340
        %v5342 = vperm.slane %v5334, %v5341
        %v5343 = vrot.slane %v5298, 4
        %v5344 = vsel %vm852, %v5343, %v5294
        %v5345 = vrot.slane %v5294, 4
        %v5346 = vsel %vm852, %v5298, %v5345
        %v5348 = vunpack.c.l.s4 1983009808
        %v5349 = vunpack.c.0.s8 %v5348
        %v5350 = vperm.slane %v5344, %v5349
        %v5352 = vunpack.c.l.s4 1983009808
        %v5353 = vunpack.c.0.s8 %v5352
        %v5354 = vperm.slane %v5346, %v5353
        %v5355 = vrot.slane %v5326, 4
        %v5356 = vsel %vm852, %v5355, %v5314
        %v5357 = vrot.slane %v5314, 4
        %v5358 = vsel %vm852, %v5326, %v5357
        %v5360 = vunpack.c.l.s4 1934713408
        %v5361 = vunpack.c.0.s8 %v5360
        %v5362 = vperm.slane %v5356, %v5361
        %v5364 = vunpack.c.l.s4 1934713408
        %v5365 = vunpack.c.0.s8 %v5364
        %v5366 = vperm.slane %v5358, %v5365
        %v5367 = vrot.slane %v5330, 4
        %v5368 = vsel %vm852, %v5367, %v5318
        %v5369 = vrot.slane %v5318, 4
        %v5370 = vsel %vm852, %v5330, %v5369
        %v5372 = vunpack.c.l.s4 1934713408
        %v5373 = vunpack.c.0.s8 %v5372
        %v5374 = vperm.slane %v5368, %v5373
        %v5376 = vunpack.c.l.s4 1934713408
        %v5377 = vunpack.c.0.s8 %v5376
        %v5378 = vperm.slane %v5370, %v5377
        %v5379 = vrot.slane %v5350, 4
        %v5380 = vsel %vm852, %v5379, %v5338
        %v5381 = vrot.slane %v5338, 4
        %v5382 = vsel %vm852, %v5350, %v5381
        %v5384 = vunpack.c.l.s4 1934713408
        %v5385 = vunpack.c.0.s8 %v5384
        %v5386 = vperm.slane %v5380, %v5385
        %v5388 = vunpack.c.l.s4 1934713408
        %v5389 = vunpack.c.0.s8 %v5388
        %v5390 = vperm.slane %v5382, %v5389
        %v5391 = vrot.slane %v5354, 4
        %v5392 = vsel %vm852, %v5391, %v5342
        %v5393 = vrot.slane %v5342, 4
        %v5394 = vsel %vm852, %v5354, %v5393
        %v5396 = vunpack.c.l.s4 1934713408
        %v5397 = vunpack.c.0.s8 %v5396
        %v5398 = vperm.slane %v5392, %v5397
        %v5400 = vunpack.c.l.s4 1934713408
        %v5401 = vunpack.c.0.s8 %v5400
        %v5402 = vperm.slane %v5394, %v5401
        %v5403 = vrot.slane %v5386, 4
        %v5404 = vsel %vm852, %v5403, %v5362
        %v5405 = vrot.slane %v5362, 4
        %v5406 = vsel %vm852, %v5386, %v5405
        %v5407 = vrot.slane %v5390, 4
        %v5408 = vsel %vm852, %v5407, %v5366
        %v5409 = vrot.slane %v5366, 4
        %v5410 = vsel %vm852, %v5390, %v5409
        %v5411 = vrot.slane %v5398, 4
        %v5412 = vsel %vm852, %v5411, %v5374
        %v5413 = vrot.slane %v5374, 4
        %v5414 = vsel %vm852, %v5398, %v5413
        %v5415 = vrot.slane %v5402, 4
        %v5416 = vsel %vm852, %v5415, %v5378
        %v5417 = vrot.slane %v5378, 4
        %v5418 = vsel %vm852, %v5402, %v5417
        %5420 = vrot.lane.b32.xlu0 %v5406, 16
        %v5421 = vpop.permute.xlu0 %5420
        %5424 = vrot.lane.b32.xlu0 %v5408, 32
        %v5425 = vpop.permute.xlu0 %5424
        %5428 = vrot.lane.b32.xlu0 %v5410, 48
        %v5429 = vpop.permute.xlu0 %5428
        %5432 = vrot.lane.b32.xlu0 %v5412, 64
        %v5433 = vpop.permute.xlu0 %5432
        %5436 = vrot.lane.b32.xlu0 %v5414, 80
        %v5437 = vpop.permute.xlu0 %5436
        %5440 = vrot.lane.b32.xlu0 %v5416, 96
        %v5441 = vpop.permute.xlu0 %5440
        %5444 = vrot.lane.b32.xlu0 %v5418, 112
        %v5445 = vpop.permute.xlu0 %5444
        %v5447 = vsel %vm1036, %v5404, %v5421
        %v5448 = vsel %vm1038, %v5447, %v5425
        %v5449 = vsel %vm1040, %v5448, %v5429
        %v5450 = vsel %vm1042, %v5449, %v5433
        %v5451 = vsel %vm1044, %v5450, %v5437
        %v5452 = vsel %vm1046, %v5451, %v5441
        %v5453 = vsel %vm1048, %v5452, %v5445
        %5454 = vrot.lane.b32.xlu0 %v5120, 126
        %v5455 = vpop.permute.xlu0 %5454
        %5456 = vrot.lane.b32.xlu0 %v5121, 126
        %v5457 = vpop.permute.xlu0 %5456
        %5458 = vrot.lane.b32.xlu0 %v5122, 126
        %v5459 = vpop.permute.xlu0 %5458
        %5460 = vrot.lane.b32.xlu0 %v5123, 126
        %v5461 = vpop.permute.xlu0 %5460
        %5462 = vrot.lane.b32.xlu0 %v5124, 126
        %v5463 = vpop.permute.xlu0 %5462
        %5464 = vrot.lane.b32.xlu0 %v5125, 126
        %v5465 = vpop.permute.xlu0 %5464
        %5466 = vrot.lane.b32.xlu0 %v5126, 126
        %v5467 = vpop.permute.xlu0 %5466
        %5468 = vrot.lane.b32.xlu0 %v5127, 126
        %v5469 = vpop.permute.xlu0 %5468
        %v5478 = vrot.slane %v5459, 4
        %v5479 = vsel %vm852, %v5478, %v5455
        %v5480 = vrot.slane %v5455, 4
        %v5481 = vsel %vm852, %v5459, %v5480
        %v5483 = vunpack.c.l.s4 1983009808
        %v5484 = vunpack.c.0.s8 %v5483
        %v5485 = vperm.slane %v5479, %v5484
        %v5487 = vunpack.c.l.s4 1983009808
        %v5488 = vunpack.c.0.s8 %v5487
        %v5489 = vperm.slane %v5481, %v5488
        %v5490 = vrot.slane %v5461, 4
        %v5491 = vsel %vm852, %v5490, %v5457
        %v5492 = vrot.slane %v5457, 4
        %v5493 = vsel %vm852, %v5461, %v5492
        %v5495 = vunpack.c.l.s4 1983009808
        %v5496 = vunpack.c.0.s8 %v5495
        %v5497 = vperm.slane %v5491, %v5496
        %v5499 = vunpack.c.l.s4 1983009808
        %v5500 = vunpack.c.0.s8 %v5499
        %v5501 = vperm.slane %v5493, %v5500
        %v5502 = vrot.slane %v5467, 4
        %v5503 = vsel %vm852, %v5502, %v5463
        %v5504 = vrot.slane %v5463, 4
        %v5505 = vsel %vm852, %v5467, %v5504
        %v5507 = vunpack.c.l.s4 1983009808
        %v5508 = vunpack.c.0.s8 %v5507
        %v5509 = vperm.slane %v5503, %v5508
        %v5511 = vunpack.c.l.s4 1983009808
        %v5512 = vunpack.c.0.s8 %v5511
        %v5513 = vperm.slane %v5505, %v5512
        %v5514 = vrot.slane %v5469, 4
        %v5515 = vsel %vm852, %v5514, %v5465
        %v5516 = vrot.slane %v5465, 4
        %v5517 = vsel %vm852, %v5469, %v5516
        %v5519 = vunpack.c.l.s4 1983009808
        %v5520 = vunpack.c.0.s8 %v5519
        %v5521 = vperm.slane %v5515, %v5520
        %v5523 = vunpack.c.l.s4 1983009808
        %v5524 = vunpack.c.0.s8 %v5523
        %v5525 = vperm.slane %v5517, %v5524
        %v5526 = vrot.slane %v5497, 4
        %v5527 = vsel %vm852, %v5526, %v5485
        %v5528 = vrot.slane %v5485, 4
        %v5529 = vsel %vm852, %v5497, %v5528
        %v5531 = vunpack.c.l.s4 1934713408
        %v5532 = vunpack.c.0.s8 %v5531
        %v5533 = vperm.slane %v5527, %v5532
        %v5535 = vunpack.c.l.s4 1934713408
        %v5536 = vunpack.c.0.s8 %v5535
        %v5537 = vperm.slane %v5529, %v5536
        %v5538 = vrot.slane %v5501, 4
        %v5539 = vsel %vm852, %v5538, %v5489
        %v5540 = vrot.slane %v5489, 4
        %v5541 = vsel %vm852, %v5501, %v5540
        %v5543 = vunpack.c.l.s4 1934713408
        %v5544 = vunpack.c.0.s8 %v5543
        %v5545 = vperm.slane %v5539, %v5544
        %v5547 = vunpack.c.l.s4 1934713408
        %v5548 = vunpack.c.0.s8 %v5547
        %v5549 = vperm.slane %v5541, %v5548
        %v5550 = vrot.slane %v5521, 4
        %v5551 = vsel %vm852, %v5550, %v5509
        %v5552 = vrot.slane %v5509, 4
        %v5553 = vsel %vm852, %v5521, %v5552
        %v5555 = vunpack.c.l.s4 1934713408
        %v5556 = vunpack.c.0.s8 %v5555
        %v5557 = vperm.slane %v5551, %v5556
        %v5559 = vunpack.c.l.s4 1934713408
        %v5560 = vunpack.c.0.s8 %v5559
        %v5561 = vperm.slane %v5553, %v5560
        %v5562 = vrot.slane %v5525, 4
        %v5563 = vsel %vm852, %v5562, %v5513
        %v5564 = vrot.slane %v5513, 4
        %v5565 = vsel %vm852, %v5525, %v5564
        %v5567 = vunpack.c.l.s4 1934713408
        %v5568 = vunpack.c.0.s8 %v5567
        %v5569 = vperm.slane %v5563, %v5568
        %v5571 = vunpack.c.l.s4 1934713408
        %v5572 = vunpack.c.0.s8 %v5571
        %v5573 = vperm.slane %v5565, %v5572
        %v5574 = vrot.slane %v5557, 4
        %v5575 = vsel %vm852, %v5574, %v5533
        %v5576 = vrot.slane %v5533, 4
        %v5577 = vsel %vm852, %v5557, %v5576
        %v5578 = vrot.slane %v5561, 4
        %v5579 = vsel %vm852, %v5578, %v5537
        %v5580 = vrot.slane %v5537, 4
        %v5581 = vsel %vm852, %v5561, %v5580
        %v5582 = vrot.slane %v5569, 4
        %v5583 = vsel %vm852, %v5582, %v5545
        %v5584 = vrot.slane %v5545, 4
        %v5585 = vsel %vm852, %v5569, %v5584
        %v5586 = vrot.slane %v5573, 4
        %v5587 = vsel %vm852, %v5586, %v5549
        %v5588 = vrot.slane %v5549, 4
        %v5589 = vsel %vm852, %v5573, %v5588
        %5591 = vrot.lane.b32.xlu0 %v5577, 16
        %v5592 = vpop.permute.xlu0 %5591
        %5595 = vrot.lane.b32.xlu0 %v5579, 32
        %v5596 = vpop.permute.xlu0 %5595
        %5599 = vrot.lane.b32.xlu0 %v5581, 48
        %v5600 = vpop.permute.xlu0 %5599
        %5603 = vrot.lane.b32.xlu0 %v5583, 64
        %v5604 = vpop.permute.xlu0 %5603
        %5607 = vrot.lane.b32.xlu0 %v5585, 80
        %v5608 = vpop.permute.xlu0 %5607
        %5611 = vrot.lane.b32.xlu0 %v5587, 96
        %v5612 = vpop.permute.xlu0 %5611
        %5615 = vrot.lane.b32.xlu0 %v5589, 112
        %v5616 = vpop.permute.xlu0 %5615
        %v5618 = vsel %vm1036, %v5575, %v5592
        %v5619 = vsel %vm1038, %v5618, %v5596
        %v5620 = vsel %vm1040, %v5619, %v5600
        %v5621 = vsel %vm1042, %v5620, %v5604
        %v5622 = vsel %vm1044, %v5621, %v5608
        %v5623 = vsel %vm1046, %v5622, %v5612
        %v5624 = vsel %vm1048, %v5623, %v5616
        %v5625 = vld [vmem:[%s7] sm:$0xff]
        %v5626 = vld [vmem:[%s8] sm:$0xff]
        %5628 = vset.pattern.permute.xlu0 0
        %5629 = vperm.xlu0 %5628, %v5626
        %v5630 = vpop.permute.xlu0 %5629
        %v5633 = vsel %vm2962, %v5625, 0
        %5635 = vmatpush.msra.mxu0 0.0
        %5636 = vmatpush.msra.mxu0 0.0
        %5637 = vmatpush.msra.mxu0 0.0
        %5638 = vmatpush.msra.mxu0 0.0
        %5639 = vmatpush.msra.mxu0 0.0
        %5640 = vmatpush.msra.mxu0 0.0
        %5641 = vmatpush.msra.mxu0 0.0
        %v5642 = vand.u32 %v5624, 4294901760
        %5643 = vmatpush.msra.mxu0 %v5642
        %v5644 = vand.u32 %v5453, 4294901760
        %5645 = vmatpush.msra.mxu0 %v5644
        %v5646 = vand.u32 %v5274, 4294901760
        %5647 = vmatpush.msra.mxu0 %v5646
        %v5648 = vand.u32 %v5119, 4294901760
        %5649 = vmatpush.msra.mxu0 %v5648
        %v5650 = vand.u32 %v4948, 4294901760
        %5651 = vmatpush.msra.mxu0 %v5650
        %v5652 = vand.u32 %v4769, 4294901760
        %5653 = vmatpush.msra.mxu0 %v5652
        %v5654 = vand.u32 %v4614, 4294901760
        %5655 = vmatpush.msra.mxu0 %v5654
        %v5656 = vand.u32 %v4443, 4294901760
        %5657 = vmatpush.msra.mxu0 %v5656
        %v5658 = vand.u32 %v4264, 4294901760
        %5659 = vmatpush.msra.mxu0 %v5658
        %v5660 = vand.u32 %v5633, 4294901760
        %v5661 = vsub.f32 %v5633, %v5660
        %v5662 = vand.u32 %v5661, 4294901760
        %v5663 = vsub.f32 %v5661, %v5662
        %v5664 = vand.u32 %v5663, 4294901760
        %5665 = vmatmul.f32.gmra.mxu0 %v5664
        %v5666 = vpop.f32.mrf.mxu0
        %v5667 = vadd.f32 %v5630, %v5666
        %5668 = vdwg.mxu0
        %5669 = vmatpush.msra.mxu0 0.0
        %5670 = vmatpush.msra.mxu0 0.0
        %5671 = vmatpush.msra.mxu0 0.0
        %5672 = vmatpush.msra.mxu0 0.0
        %5673 = vmatpush.msra.mxu0 0.0
        %5674 = vmatpush.msra.mxu0 0.0
        %5675 = vmatpush.msra.mxu0 0.0
        %v5676 = vand.u32 %v5624, 4294901760
        %v5677 = vsub.f32 %v5624, %v5676
        %v5678 = vand.u32 %v5677, 4294901760
        %v5679 = vsub.f32 %v5677, %v5678
        %v5680 = vand.u32 %v5679, 4294901760
        %5681 = vmatpush.msra.mxu0 %v5680
        %v5682 = vand.u32 %v5453, 4294901760
        %v5683 = vsub.f32 %v5453, %v5682
        %v5684 = vand.u32 %v5683, 4294901760
        %v5685 = vsub.f32 %v5683, %v5684
        %v5686 = vand.u32 %v5685, 4294901760
        %5687 = vmatpush.msra.mxu0 %v5686
        %v5688 = vand.u32 %v5274, 4294901760
        %v5689 = vsub.f32 %v5274, %v5688
        %v5690 = vand.u32 %v5689, 4294901760
        %v5691 = vsub.f32 %v5689, %v5690
        %v5692 = vand.u32 %v5691, 4294901760
        %5693 = vmatpush.msra.mxu0 %v5692
        %v5694 = vand.u32 %v5119, 4294901760
        %v5695 = vsub.f32 %v5119, %v5694
        %v5696 = vand.u32 %v5695, 4294901760
        %v5697 = vsub.f32 %v5695, %v5696
        %v5698 = vand.u32 %v5697, 4294901760
        %5699 = vmatpush.msra.mxu0 %v5698
        %v5700 = vand.u32 %v4948, 4294901760
        %v5701 = vsub.f32 %v4948, %v5700
        %v5702 = vand.u32 %v5701, 4294901760
        %v5703 = vsub.f32 %v5701, %v5702
        %v5704 = vand.u32 %v5703, 4294901760
        %5705 = vmatpush.msra.mxu0 %v5704
        %v5706 = vand.u32 %v4769, 4294901760
        %v5707 = vsub.f32 %v4769, %v5706
        %v5708 = vand.u32 %v5707, 4294901760
        %v5709 = vsub.f32 %v5707, %v5708
        %v5710 = vand.u32 %v5709, 4294901760
        %5711 = vmatpush.msra.mxu0 %v5710
        %v5712 = vand.u32 %v4614, 4294901760
        %v5713 = vsub.f32 %v4614, %v5712
        %v5714 = vand.u32 %v5713, 4294901760
        %v5715 = vsub.f32 %v5713, %v5714
        %v5716 = vand.u32 %v5715, 4294901760
        %5717 = vmatpush.msra.mxu0 %v5716
        %v5718 = vand.u32 %v4443, 4294901760
        %v5719 = vsub.f32 %v4443, %v5718
        %v5720 = vand.u32 %v5719, 4294901760
        %v5721 = vsub.f32 %v5719, %v5720
        %v5722 = vand.u32 %v5721, 4294901760
        %5723 = vmatpush.msra.mxu0 %v5722
        %v5724 = vand.u32 %v4264, 4294901760
        %v5725 = vsub.f32 %v4264, %v5724
        %v5726 = vand.u32 %v5725, 4294901760
        %v5727 = vsub.f32 %v5725, %v5726
        %v5728 = vand.u32 %v5727, 4294901760
        %5729 = vmatpush.msra.mxu0 %v5728
        %v5730 = vand.u32 %v5633, 4294901760
        %5731 = vmatmul.f32.gmra.mxu0 %v5730
        %v5732 = vpop.f32.mrf.mxu0
        %v5733 = vadd.f32 %v5667, %v5732
        %5734 = vdwg.mxu0
        %5735 = vmatpush.msra.mxu0 0.0
        %5736 = vmatpush.msra.mxu0 0.0
        %5737 = vmatpush.msra.mxu0 0.0
        %5738 = vmatpush.msra.mxu0 0.0
        %5739 = vmatpush.msra.mxu0 0.0
        %5740 = vmatpush.msra.mxu0 0.0
        %5741 = vmatpush.msra.mxu0 0.0
        %v5742 = vand.u32 %v5624, 4294901760
        %v5743 = vsub.f32 %v5624, %v5742
        %5744 = vmatpush.msra.mxu0 %v5743
        %v5745 = vand.u32 %v5453, 4294901760
        %v5746 = vsub.f32 %v5453, %v5745
        %5747 = vmatpush.msra.mxu0 %v5746
        %v5748 = vand.u32 %v5274, 4294901760
        %v5749 = vsub.f32 %v5274, %v5748
        %5750 = vmatpush.msra.mxu0 %v5749
        %v5751 = vand.u32 %v5119, 4294901760
        %v5752 = vsub.f32 %v5119, %v5751
        %5753 = vmatpush.msra.mxu0 %v5752
        %v5754 = vand.u32 %v4948, 4294901760
        %v5755 = vsub.f32 %v4948, %v5754
        %5756 = vmatpush.msra.mxu0 %v5755
        %v5757 = vand.u32 %v4769, 4294901760
        %v5758 = vsub.f32 %v4769, %v5757
        %5759 = vmatpush.msra.mxu0 %v5758
        %v5760 = vand.u32 %v4614, 4294901760
        %v5761 = vsub.f32 %v4614, %v5760
        %5762 = vmatpush.msra.mxu0 %v5761
        %v5763 = vand.u32 %v4443, 4294901760
        %v5764 = vsub.f32 %v4443, %v5763
        %5765 = vmatpush.msra.mxu0 %v5764
        %v5766 = vand.u32 %v4264, 4294901760
        %v5767 = vsub.f32 %v4264, %v5766
        %5768 = vmatpush.msra.mxu0 %v5767
        %v5769 = vand.u32 %v5633, 4294901760
        %v5770 = vsub.f32 %v5633, %v5769
        %5771 = vmatmul.f32.gmra.mxu0 %v5770
        %v5772 = vpop.f32.mrf.mxu0
        %v5773 = vadd.f32 %v5733, %v5772
        %5774 = vdwg.mxu0
        %5775 = vmatpush.msra.mxu0 0.0
        %5776 = vmatpush.msra.mxu0 0.0
        %5777 = vmatpush.msra.mxu0 0.0
        %5778 = vmatpush.msra.mxu0 0.0
        %5779 = vmatpush.msra.mxu0 0.0
        %5780 = vmatpush.msra.mxu0 0.0
        %5781 = vmatpush.msra.mxu0 0.0
        %v5782 = vand.u32 %v5624, 4294901760
        %5783 = vmatpush.msra.mxu0 %v5782
        %v5784 = vand.u32 %v5453, 4294901760
        %5785 = vmatpush.msra.mxu0 %v5784
        %v5786 = vand.u32 %v5274, 4294901760
        %5787 = vmatpush.msra.mxu0 %v5786
        %v5788 = vand.u32 %v5119, 4294901760
        %5789 = vmatpush.msra.mxu0 %v5788
        %v5790 = vand.u32 %v4948, 4294901760
        %5791 = vmatpush.msra.mxu0 %v5790
        %v5792 = vand.u32 %v4769, 4294901760
        %5793 = vmatpush.msra.mxu0 %v5792
        %v5794 = vand.u32 %v4614, 4294901760
        %5795 = vmatpush.msra.mxu0 %v5794
        %v5796 = vand.u32 %v4443, 4294901760
        %5797 = vmatpush.msra.mxu0 %v5796
        %v5798 = vand.u32 %v4264, 4294901760
        %5799 = vmatpush.msra.mxu0 %v5798
        %v5800 = vand.u32 %v5633, 4294901760
        %v5801 = vsub.f32 %v5633, %v5800
        %v5802 = vand.u32 %v5801, 4294901760
        %5803 = vmatmul.f32.gmra.mxu0 %v5802
        %v5804 = vpop.f32.mrf.mxu0
        %v5805 = vadd.f32 %v5773, %v5804
        %5806 = vdwg.mxu0
        %5807 = vmatpush.msra.mxu0 0.0
        %5808 = vmatpush.msra.mxu0 0.0
        %5809 = vmatpush.msra.mxu0 0.0
        %5810 = vmatpush.msra.mxu0 0.0
        %5811 = vmatpush.msra.mxu0 0.0
        %5812 = vmatpush.msra.mxu0 0.0
        %5813 = vmatpush.msra.mxu0 0.0
        %v5814 = vand.u32 %v5624, 4294901760
        %v5815 = vsub.f32 %v5624, %v5814
        %v5816 = vand.u32 %v5815, 4294901760
        %5817 = vmatpush.msra.mxu0 %v5816
        %v5818 = vand.u32 %v5453, 4294901760
        %v5819 = vsub.f32 %v5453, %v5818
        %v5820 = vand.u32 %v5819, 4294901760
        %5821 = vmatpush.msra.mxu0 %v5820
        %v5822 = vand.u32 %v5274, 4294901760
        %v5823 = vsub.f32 %v5274, %v5822
        %v5824 = vand.u32 %v5823, 4294901760
        %5825 = vmatpush.msra.mxu0 %v5824
        %v5826 = vand.u32 %v5119, 4294901760
        %v5827 = vsub.f32 %v5119, %v5826
        %v5828 = vand.u32 %v5827, 4294901760
        %5829 = vmatpush.msra.mxu0 %v5828
        %v5830 = vand.u32 %v4948, 4294901760
        %v5831 = vsub.f32 %v4948, %v5830
        %v5832 = vand.u32 %v5831, 4294901760
        %5833 = vmatpush.msra.mxu0 %v5832
        %v5834 = vand.u32 %v4769, 4294901760
        %v5835 = vsub.f32 %v4769, %v5834
        %v5836 = vand.u32 %v5835, 4294901760
        %5837 = vmatpush.msra.mxu0 %v5836
        %v5838 = vand.u32 %v4614, 4294901760
        %v5839 = vsub.f32 %v4614, %v5838
        %v5840 = vand.u32 %v5839, 4294901760
        %5841 = vmatpush.msra.mxu0 %v5840
        %v5842 = vand.u32 %v4443, 4294901760
        %v5843 = vsub.f32 %v4443, %v5842
        %v5844 = vand.u32 %v5843, 4294901760
        %5845 = vmatpush.msra.mxu0 %v5844
        %v5846 = vand.u32 %v4264, 4294901760
        %v5847 = vsub.f32 %v4264, %v5846
        %v5848 = vand.u32 %v5847, 4294901760
        %5849 = vmatpush.msra.mxu0 %v5848
        %v5850 = vand.u32 %v5633, 4294901760
        %5851 = vmatmul.f32.gmra.mxu0 %v5850
        %v5852 = vpop.f32.mrf.mxu0
        %v5853 = vadd.f32 %v5805, %v5852
        %5854 = vdwg.mxu0
        %5855 = vmatpush.msra.mxu0 0.0
        %5856 = vmatpush.msra.mxu0 0.0
        %5857 = vmatpush.msra.mxu0 0.0
        %5858 = vmatpush.msra.mxu0 0.0
        %5859 = vmatpush.msra.mxu0 0.0
        %5860 = vmatpush.msra.mxu0 0.0
        %5861 = vmatpush.msra.mxu0 0.0
        %v5862 = vand.u32 %v5624, 4294901760
        %5863 = vmatpush.msra.mxu0 %v5862
        %v5864 = vand.u32 %v5453, 4294901760
        %5865 = vmatpush.msra.mxu0 %v5864
        %v5866 = vand.u32 %v5274, 4294901760
        %5867 = vmatpush.msra.mxu0 %v5866
        %v5868 = vand.u32 %v5119, 4294901760
        %5869 = vmatpush.msra.mxu0 %v5868
        %v5870 = vand.u32 %v4948, 4294901760
        %5871 = vmatpush.msra.mxu0 %v5870
        %v5872 = vand.u32 %v4769, 4294901760
        %5873 = vmatpush.msra.mxu0 %v5872
        %v5874 = vand.u32 %v4614, 4294901760
        %5875 = vmatpush.msra.mxu0 %v5874
        %v5876 = vand.u32 %v4443, 4294901760
        %5877 = vmatpush.msra.mxu0 %v5876
        %v5878 = vand.u32 %v4264, 4294901760
        %5879 = vmatpush.msra.mxu0 %v5878
        %v5880 = vand.u32 %v5633, 4294901760
        %5881 = vmatmul.f32.gmra.mxu0 %v5880
        %v5882 = vpop.f32.mrf.mxu0
        %v5883 = vadd.f32 %v5853, %v5882
        %5884 = vdwg.mxu0
        %5885 = vst [vmem:[%s617] sm:$0xff] %v5883
        %p5886 = scmp.lt.s32.totalorder %s24, 1
        %s5887 = scalar_select %p5886, %s24, 1
        %p5888 = scmp.lt.s32.totalorder %s25, 1
        %s5889 = scalar_select %p5888, %s25, 1
        %s5890 = smul.addr %s5887, 2
        %s5891 = sadd.s32 %s5889, %s5890
        %s5892 = smul.addr %s5891, 8
        %s5893 = scalar_lea.vmem %s9, %s5892
        // Predicated region
        $region195: #{bottleneck_forward.1} parent=157 // pred_check
          %p5894 = pneg %p274
        $region196: #{bottleneck_forward.1} parent=157 // pred_check_branch
          %5896 = sbr.rel (%p5894) target = $region198
        $region197: #{bottleneck_forward.1} parent=157 // pred_region
          _
        $region198: #{bottleneck_forward.1} parent=157 // pred_fallthru
          _
      $region158: #{bottleneck_forward.1} parent=5 // pred_fallthru
        _
      %p5897 = scmp.le.s32.totalorder 2, %s15
      // Predicated region
      $region199: #{bottleneck_forward.1} parent=5 // pred_check
        %p5898 = pneg %p5897
      $region200: #{bottleneck_forward.1} parent=5 // pred_check_branch
        %5900 = sbr.rel (%p5898) target = $region202
      $region201: #{bottleneck_forward.1} parent=5 // pred_region
        %s5901 = ssub.s32 %s15, 2
        // Predicated region
        $region203: #{bottleneck_forward.1} parent=201 // pred_check
          %p5902 = pneg %p280
        $region204: #{bottleneck_forward.1} parent=201 // pred_check_branch
          %5904 = sbr.rel (%p5902) target = $region206
        $region205: #{bottleneck_forward.1} parent=201 // pred_region
          %p5905 = scmp.lt.s32.totalorder %s26, 1
          %s5906 = scalar_select %p5905, %s26, 1
          %p5907 = scmp.lt.s32.totalorder %s27, 1
          %s5908 = scalar_select %p5907, %s27, 1
          %s5909 = smul.addr %s5906, 2
          %s5910 = sadd.s32 %s5908, %s5909
          %s5911 = smul.addr %s5910, 8
          %s5912 = scalar_lea.vmem %s9, %s5911
        $region206: #{bottleneck_forward.1} parent=201 // pred_fallthru
          _
      $region202: #{bottleneck_forward.1} parent=5 // pred_fallthru
        _
    $region6: #{bottleneck_forward.1} parent=1 // loop_footer
      %s19 = sadd.s32 1, %s15
    $region7: #{bottleneck_forward.1} parent=1 // loop_footer_branch
      %14 = sbr.rel target = $region3
    $region8: #{bottleneck_forward.1} parent=1 // loop_exit
      _

</llo_original>
